<compile_context>
chip_gen: v7x
topology: tpu7x:2x2x1
jax: 0.10.0
libtpu: 0.0.40
codegen_flags: <defaults>
</compile_context>

<pallas_src>
import functools

import jax
import jax.numpy as jnp
from jax.experimental import pallas as pl
from jax.experimental.pallas import tpu as pltpu

_VMEM_LIMIT = 32 * 1024 * 1024  # within scoped/physical VMEM on v5e/v6e/v7x


def _round_up(x, m):
    return (x + m - 1) // m * m


def _pick_tile(m, candidates=(512, 256, 128, 64, 32, 16, 8)):
    """Largest candidate tile that evenly divides m (None if m % 8 != 0)."""
    for t in candidates:
        if m % t == 0:
            return t
    return None


# ----------------------------------------------------------------------------
# Pallas kernel: K-tiled GEMM, f32 accumulator, fused LeakyReLU epilogue
# ----------------------------------------------------------------------------
def gemm_lrelu_kernel(x_ref, w_ref, o_ref, acc_ref, *, alpha, apply_act):
    @pl.when(pl.program_id(1) == 0)
    def _init():
        acc_ref[...] = jnp.zeros_like(acc_ref)

    acc_ref[...] += jnp.dot(x_ref[...], w_ref[...],
                            preferred_element_type=jnp.float32)

    @pl.when(pl.program_id(1) == pl.num_programs(1) - 1)
    def _finalize():
        acc = acc_ref[...]
        if apply_act:
            acc = jnp.where(acc >= 0.0, acc, alpha * acc)
        o_ref[...] = acc.astype(o_ref.dtype)


def pallas_gemm(x, w, *, alpha, apply_act, out_dtype=jnp.bfloat16):
    """x: (M, K) bf16, w: (K, N) bf16 -> (M, N) out_dtype (LeakyReLU fused)."""
    M, K = x.shape
    Kw, N = w.shape
    assert K == Kw

    # Pad only K (to a 128 multiple); zero K-padding is exact for the matmul.
    Kp = _round_up(K, 128)
    if Kp != K:
        x = jnp.pad(x, ((0, 0), (0, Kp - K)))
        w = jnp.pad(w, ((0, Kp - K), (0, 0)))

    # Pick an M tile that divides M (no padded copy of the patch matrix).
    TM = _pick_tile(M)
    Mfull = M
    if TM is None:                      # rare: M not a multiple of 8
        Mfull = _round_up(M, 8)
        x = jnp.pad(x, ((0, Mfull - M), (0, 0)))
        TM = _pick_tile(Mfull)
    TK = _pick_tile(Kp, (512, 256, 128))

    kernel = functools.partial(gemm_lrelu_kernel, alpha=alpha,
                               apply_act=apply_act)

    out = pl.pallas_call(
        kernel,
        out_shape=jax.ShapeDtypeStruct((Mfull, N), out_dtype),
        grid_spec=pltpu.PrefetchScalarGridSpec(
            num_scalar_prefetch=0,
            grid=(Mfull // TM, Kp // TK),
            in_specs=[
                pl.BlockSpec((TM, TK), lambda i, k: (i, k)),
                pl.BlockSpec((TK, N), lambda i, k: (k, 0)),
            ],
            out_specs=pl.BlockSpec((TM, N), lambda i, k: (i, 0)),
            scratch_shapes=[pltpu.VMEM((TM, N), jnp.float32)],
        ),
        compiler_params=pltpu.CompilerParams(
            dimension_semantics=("parallel", "arbitrary"),
            vmem_limit_bytes=_VMEM_LIMIT),
    )(x, w)
    return out[:M] if Mfull != M else out


# ----------------------------------------------------------------------------
# Fused head kernel: conv4 GEMM + LeakyReLU + conv5 (weighted global reduce)
# ----------------------------------------------------------------------------
def head_kernel(x_ref, w_ref, w5t_ref, sel_ref, o_ref, acc_ref, *, alpha):
    k = pl.program_id(0)

    @pl.when(k == 0)
    def _init():
        acc_ref[...] = jnp.zeros_like(acc_ref)

    acc_ref[...] += jnp.dot(x_ref[...], w_ref[...],
                            preferred_element_type=jnp.float32)

    @pl.when(k == pl.num_programs(0) - 1)
    def _finalize():
        act = acc_ref[...]                                  # (M4, C4) f32
        act = jnp.where(act >= 0.0, act, alpha * act)       # LeakyReLU
        contrib = act * w5t_ref[...]                        # tap-weighted
        grouped = jnp.dot(sel_ref[...], contrib,            # (Bp, C4)
                          preferred_element_type=jnp.float32)
        o_ref[...] = jnp.sum(grouped, axis=1, keepdims=True)  # (Bp, 1)


def conv4_conv5_fused(x_nhwc, w4, w5, *, alpha):
    """x: (B, 8, 8, C3) bf16.  conv4: 4x4 s2 p1 + LReLU; conv5: 4x4 s1 p0 -> (B,1)."""
    C4, C3, KH, KW = w4.shape
    patches, B, OH, OW = _im2col(x_nhwc, KH, KW, 2, 1)      # (B*16, 16*C3) bf16
    M4 = B * OH * OW
    K4 = KH * KW * C3

    w4_mat = jnp.transpose(w4, (2, 3, 1, 0)).reshape(K4, C4).astype(jnp.bfloat16)
    Kp = _round_up(K4, 128)
    if Kp != K4:
        patches = jnp.pad(patches, ((0, 0), (0, Kp - K4)))
        w4_mat = jnp.pad(w4_mat, ((0, Kp - K4), (0, 0)))
    TK = _pick_tile(Kp, (512, 256, 128))

    # conv5 weight arranged per (tap, channel), tiled once per batch element.
    w5_tap = jnp.transpose(w5, (2, 3, 1, 0)).reshape(OH * OW, C4).astype(jnp.float32)
    w5_tiled = jnp.tile(w5_tap, (B, 1))                     # (M4, C4) f32

    # Batch-group selection matrix (rows padded to a sublane multiple of 8).
    Bp = _round_up(B, 8)
    sel = (jnp.arange(M4)[None, :] // (OH * OW)
           == jnp.arange(Bp)[:, None]).astype(jnp.float32)  # (Bp, M4)

    out = pl.pallas_call(
        functools.partial(head_kernel, alpha=alpha),
        out_shape=jax.ShapeDtypeStruct((Bp, 1), jnp.float32),
        grid_spec=pltpu.PrefetchScalarGridSpec(
            num_scalar_prefetch=0,
            grid=(Kp // TK,),
            in_specs=[
                pl.BlockSpec((M4, TK), lambda k: (0, k)),
                pl.BlockSpec((TK, C4), lambda k: (k, 0)),
                pl.BlockSpec((M4, C4), lambda k: (0, 0)),
                pl.BlockSpec((Bp, M4), lambda k: (0, 0)),
            ],
            out_specs=pl.BlockSpec((Bp, 1), lambda k: (0, 0)),
            scratch_shapes=[pltpu.VMEM((M4, C4), jnp.float32)],
        ),
        compiler_params=pltpu.CompilerParams(
            dimension_semantics=("arbitrary",),
            vmem_limit_bytes=_VMEM_LIMIT),
    )(patches, w4_mat, w5_tiled, sel)
    return out[:B]                                           # (B, 1) f32


# ----------------------------------------------------------------------------
# Conv2d (no bias) via im2col + Pallas GEMM
# ----------------------------------------------------------------------------
def _im2col(x_nhwc, kh, kw, stride, pad):
    # TODO(synk): im2col stays as XLA glue; a fully in-kernel gather needs
    # strided VMEM slicing that is not robust to lower for this layout.
    if pad > 0:
        x_nhwc = jnp.pad(x_nhwc, ((0, 0), (pad, pad), (pad, pad), (0, 0)))
    N, H, W, C = x_nhwc.shape
    OH = (H - kh) // stride + 1
    OW = (W - kw) // stride + 1
    cols = []
    for i in range(kh):
        for j in range(kw):
            cols.append(
                x_nhwc[:, i:i + stride * (OH - 1) + 1:stride,
                       j:j + stride * (OW - 1) + 1:stride, :])
    p = jnp.stack(cols, axis=3)                      # (N, OH, OW, KH*KW, C)
    p = p.reshape(N * OH * OW, kh * kw * C)          # (M, K)
    return p, N, OH, OW


def conv2d_pallas(x_nhwc, w_oikk, *, stride, pad, lrelu_alpha=None,
                  out_dtype=jnp.bfloat16):
    """w_oikk has PyTorch Conv2d layout (C_out, C_in, KH, KW)."""
    C_out, C_in, KH, KW = w_oikk.shape
    patches, N, OH, OW = _im2col(x_nhwc, KH, KW, stride, pad)
    # Match patch ordering ((kh,kw) major, channel minor):
    w_mat = jnp.transpose(w_oikk, (2, 3, 1, 0)).reshape(KH * KW * C_in, C_out)
    out = pallas_gemm(
        patches, w_mat.astype(jnp.bfloat16),
        alpha=(0.0 if lrelu_alpha is None else lrelu_alpha),
        apply_act=(lrelu_alpha is not None),
        out_dtype=out_dtype,
    )
    return out.reshape(N, OH, OW, C_out)


# ----------------------------------------------------------------------------
# Critic forward pass
# ----------------------------------------------------------------------------
def critic_forward(x_nchw, weights):
    """Equivalent to Critic.forward: 4x (conv s2 p1 + LeakyReLU(0.2)) + conv s1 p0."""
    w1, w2, w3, w4, w5 = weights
    x = jnp.transpose(x_nchw, (0, 2, 3, 1)).astype(jnp.bfloat16)  # NCHW -> NHWC
    x = conv2d_pallas(x, w1, stride=2, pad=1, lrelu_alpha=0.2)
    x = conv2d_pallas(x, w2, stride=2, pad=1, lrelu_alpha=0.2)
    x = conv2d_pallas(x, w3, stride=2, pad=1, lrelu_alpha=0.2)

    B = x.shape[0]
    if x.shape[1] == 8 and x.shape[2] == 8 and B * 16 <= 512:
        # Fused conv4 + LeakyReLU + conv5 head (single Pallas call).
        out = conv4_conv5_fused(x, w4, w5, alpha=0.2)        # (B, 1) f32
        return out.reshape(B, 1, 1, 1)

    # Generic fallback (large batch / non-standard spatial size).
    x = conv2d_pallas(x, w4, stride=2, pad=1, lrelu_alpha=0.2)
    x = conv2d_pallas(x, w5, stride=1, pad=0, lrelu_alpha=None,
                      out_dtype=jnp.float32)
    return jnp.transpose(x, (0, 3, 1, 2)).astype(jnp.float32)


def init_critic_weights(key, nc, ndf):
    """Deterministic synthetic init (PyTorch Conv2d weight shapes, bias=False)."""
    ks = jax.random.split(key, 5)

    def w(k, c_out, c_in, ksize=4):
        fan_in = c_in * ksize * ksize
        return jax.random.normal(k, (c_out, c_in, ksize, ksize),
                                 jnp.float32) * (2.0 / fan_in) ** 0.5

    return (
        w(ks[0], ndf, nc),
        w(ks[1], ndf * 2, ndf),
        w(ks[2], ndf * 4, ndf * 2),
        w(ks[3], ndf * 8, ndf * 4),
        w(ks[4], 1, ndf * 8),
    )


if __name__ == "__main__":
    # 5 convs (4x stride-2 then a 4x4 valid conv) require 64x64 spatial input;
    # keep nc=3, ndf=8, batch=2 small.
    nc, ndf, batch, spatial = 3, 8, 2, 64

    key = jax.random.PRNGKey(0)
    wkey, xkey = jax.random.split(key)
    weights = init_critic_weights(wkey, nc, ndf)
    x = jax.random.normal(xkey, (batch, nc, spatial, spatial), jnp.float32)

    fwd = jax.jit(critic_forward)
    out = fwd(x, weights)
    out = jax.block_until_ready(out)

    assert out.shape == (batch, 1, 1, 1), out.shape
    assert out.dtype == jnp.float32
    print("KERNEL_OK")
</pallas_src>

<mosaic_0001>
module attributes {stable_mosaic.version = 11 : i64} {
  func.func @gemm_lrelu_kernel(%arg0: i32, %arg1: i32, %arg2: memref<512x128xbf16, #tpu.memory_space<vmem>>, %arg3: memref<128x8xbf16, #tpu.memory_space<vmem>>, %arg4: memref<512x8xbf16, #tpu.memory_space<vmem>>, %arg5: memref<512x8xf32, #tpu.memory_space<vmem>>) attributes {dimension_semantics = [#tpu.dimension_semantics<parallel>, #tpu.dimension_semantics<arbitrary>], iteration_bounds = array<i64: 4, 1>, scalar_prefetch = 0 : i64, scratch_operands = 1 : i64, tpu.core_type = #tpu.core_type<tc>, window_params = [{transform_indices = @transform_0, window_bounds = array<i64: 512, 128>}, {transform_indices = @transform_1, window_bounds = array<i64: 128, 8>}, {transform_indices = @transform_2, window_bounds = array<i64: 512, 8>}]} {
    %c0_i32 = arith.constant 0 : i32
    %0 = arith.cmpi eq, %arg1, %c0_i32 : i32
    %1 = arith.extui %0 : i1 to i32
    %c0_i32_0 = arith.constant 0 : i32
    %2 = arith.cmpi ne, %1, %c0_i32_0 : i32
    scf.if %2 {
      %cst_10 = arith.constant 0.000000e+00 : f32
      %12 = vector.broadcast %cst_10 : f32 to vector<512x8xf32>
      %c0_11 = arith.constant 0 : index
      %c0_12 = arith.constant 0 : index
      %13 = vector.load %arg5[%c0_11, %c0_12] : memref<512x8xf32, #tpu.memory_space<vmem>>, vector<512x8xf32>
      tpu.vector_store %arg5[%c0_11, %c0_12], %12 {strides = array<i32>} : memref<512x8xf32, #tpu.memory_space<vmem>>, vector<512x8xf32>,
    } else {
    }
    %c0 = arith.constant 0 : index
    %c0_1 = arith.constant 0 : index
    %3 = vector.load %arg5[%c0, %c0_1] : memref<512x8xf32, #tpu.memory_space<vmem>>, vector<512x8xf32>
    %c0_2 = arith.constant 0 : index
    %c0_3 = arith.constant 0 : index
    %4 = vector.load %arg2[%c0_2, %c0_3] : memref<512x128xbf16, #tpu.memory_space<vmem>>, vector<512x128xbf16>
    %c0_4 = arith.constant 0 : index
    %c0_5 = arith.constant 0 : index
    %5 = vector.load %arg3[%c0_4, %c0_5] : memref<128x8xbf16, #tpu.memory_space<vmem>>, vector<128x8xbf16>
    %cst = arith.constant dense<0.000000e+00> : vector<512x8xf32>
    %6 = tpu.matmul %4, %5, %cst {dimension_numbers = #tpu.dot_dimension_numbers<[1], [0], [0], [1], [0, 0, 1, 1], [], []>} : vector<512x128xbf16>, vector<128x8xbf16>, vector<512x8xf32> -> vector<512x8xf32>
    %7 = arith.addf %3, %6 : vector<512x8xf32>
    %c0_6 = arith.constant 0 : index
    %c0_7 = arith.constant 0 : index
    %8 = vector.load %arg5[%c0_6, %c0_7] : memref<512x8xf32, #tpu.memory_space<vmem>>, vector<512x8xf32>
    tpu.vector_store %arg5[%c0_6, %c0_7], %7 {strides = array<i32>} : memref<512x8xf32, #tpu.memory_space<vmem>>, vector<512x8xf32>,
    %c0_i32_8 = arith.constant 0 : i32
    %9 = arith.cmpi eq, %arg1, %c0_i32_8 : i32
    %10 = arith.extui %9 : i1 to i32
    %c0_i32_9 = arith.constant 0 : i32
    %11 = arith.cmpi ne, %10, %c0_i32_9 : i32
    scf.if %11 {
      %c0_10 = arith.constant 0 : index
      %c0_11 = arith.constant 0 : index
      %12 = vector.load %arg5[%c0_10, %c0_11] : memref<512x8xf32, #tpu.memory_space<vmem>>, vector<512x8xf32>
      %cst_12 = arith.constant 0.000000e+00 : f32
      %13 = vector.broadcast %cst_12 : f32 to vector<512x8xf32>
      %14 = arith.cmpf oge, %12, %13 : vector<512x8xf32>
      %cst_13 = arith.constant 2.000000e-01 : f32
      %15 = vector.broadcast %cst_13 : f32 to vector<512x8xf32>
      %16 = arith.mulf %15, %12 : vector<512x8xf32>
      %17 = arith.select %14, %12, %16 : vector<512x8xi1>, vector<512x8xf32>
      %18 = arith.truncf %17 : vector<512x8xf32> to vector<512x8xbf16>
      %c0_14 = arith.constant 0 : index
      %c0_15 = arith.constant 0 : index
      %19 = vector.load %arg4[%c0_14, %c0_15] : memref<512x8xbf16, #tpu.memory_space<vmem>>, vector<512x8xbf16>
      tpu.vector_store %arg4[%c0_14, %c0_15], %18 {strides = array<i32>} : memref<512x8xbf16, #tpu.memory_space<vmem>>, vector<512x8xbf16>,
    } else {
    }
    return
  }
  func.func @transform_0(%arg0: i32, %arg1: i32) -> (i32, i32) {
    %c0_i32 = arith.constant 0 : i32
    return %arg0, %arg1 : i32, i32
  }
  func.func @transform_1(%arg0: i32, %arg1: i32) -> (i32, i32) {
    %c0_i32 = arith.constant 0 : i32
    %c0_i32_0 = arith.constant 0 : i32
    return %arg1, %c0_i32 : i32, i32
  }
  func.func @transform_2(%arg0: i32, %arg1: i32) -> (i32, i32) {
    %c0_i32 = arith.constant 0 : i32
    %c0_i32_0 = arith.constant 0 : i32
    return %arg0, %c0_i32 : i32, i32
  }
}

module attributes {stable_mosaic.version = 11 : i64} {
  func.func @gemm_lrelu_kernel(%arg0: i32, %arg1: i32, %arg2: memref<512x128xbf16, #tpu.memory_space<vmem>>, %arg3: memref<128x16xbf16, #tpu.memory_space<vmem>>, %arg4: memref<512x16xbf16, #tpu.memory_space<vmem>>, %arg5: memref<512x16xf32, #tpu.memory_space<vmem>>) attributes {dimension_semantics = [#tpu.dimension_semantics<parallel>, #tpu.dimension_semantics<arbitrary>], iteration_bounds = array<i64: 1, 1>, scalar_prefetch = 0 : i64, scratch_operands = 1 : i64, tpu.core_type = #tpu.core_type<tc>, window_params = [{transform_indices = @transform_0, window_bounds = array<i64: 512, 128>}, {transform_indices = @transform_1, window_bounds = array<i64: 128, 16>}, {transform_indices = @transform_2, window_bounds = array<i64: 512, 16>}]} {
    %c0_i32 = arith.constant 0 : i32
    %0 = arith.cmpi eq, %arg1, %c0_i32 : i32
    %1 = arith.extui %0 : i1 to i32
    %c0_i32_0 = arith.constant 0 : i32
    %2 = arith.cmpi ne, %1, %c0_i32_0 : i32
    scf.if %2 {
      %cst_10 = arith.constant 0.000000e+00 : f32
      %12 = vector.broadcast %cst_10 : f32 to vector<512x16xf32>
      %c0_11 = arith.constant 0 : index
      %c0_12 = arith.constant 0 : index
      %13 = vector.load %arg5[%c0_11, %c0_12] : memref<512x16xf32, #tpu.memory_space<vmem>>, vector<512x16xf32>
      tpu.vector_store %arg5[%c0_11, %c0_12], %12 {strides = array<i32>} : memref<512x16xf32, #tpu.memory_space<vmem>>, vector<512x16xf32>,
    } else {
    }
    %c0 = arith.constant 0 : index
    %c0_1 = arith.constant 0 : index
    %3 = vector.load %arg5[%c0, %c0_1] : memref<512x16xf32, #tpu.memory_space<vmem>>, vector<512x16xf32>
    %c0_2 = arith.constant 0 : index
    %c0_3 = arith.constant 0 : index
    %4 = vector.load %arg2[%c0_2, %c0_3] : memref<512x128xbf16, #tpu.memory_space<vmem>>, vector<512x128xbf16>
    %c0_4 = arith.constant 0 : index
    %c0_5 = arith.constant 0 : index
    %5 = vector.load %arg3[%c0_4, %c0_5] : memref<128x16xbf16, #tpu.memory_space<vmem>>, vector<128x16xbf16>
    %cst = arith.constant dense<0.000000e+00> : vector<512x16xf32>
    %6 = tpu.matmul %4, %5, %cst {dimension_numbers = #tpu.dot_dimension_numbers<[1], [0], [0], [1], [0, 0, 1, 1], [], []>} : vector<512x128xbf16>, vector<128x16xbf16>, vector<512x16xf32> -> vector<512x16xf32>
    %7 = arith.addf %3, %6 : vector<512x16xf32>
    %c0_6 = arith.constant 0 : index
    %c0_7 = arith.constant 0 : index
    %8 = vector.load %arg5[%c0_6, %c0_7] : memref<512x16xf32, #tpu.memory_space<vmem>>, vector<512x16xf32>
    tpu.vector_store %arg5[%c0_6, %c0_7], %7 {strides = array<i32>} : memref<512x16xf32, #tpu.memory_space<vmem>>, vector<512x16xf32>,
    %c0_i32_8 = arith.constant 0 : i32
    %9 = arith.cmpi eq, %arg1, %c0_i32_8 : i32
    %10 = arith.extui %9 : i1 to i32
    %c0_i32_9 = arith.constant 0 : i32
    %11 = arith.cmpi ne, %10, %c0_i32_9 : i32
    scf.if %11 {
      %c0_10 = arith.constant 0 : index
      %c0_11 = arith.constant 0 : index
      %12 = vector.load %arg5[%c0_10, %c0_11] : memref<512x16xf32, #tpu.memory_space<vmem>>, vector<512x16xf32>
      %cst_12 = arith.constant 0.000000e+00 : f32
      %13 = vector.broadcast %cst_12 : f32 to vector<512x16xf32>
      %14 = arith.cmpf oge, %12, %13 : vector<512x16xf32>
      %cst_13 = arith.constant 2.000000e-01 : f32
      %15 = vector.broadcast %cst_13 : f32 to vector<512x16xf32>
      %16 = arith.mulf %15, %12 : vector<512x16xf32>
      %17 = arith.select %14, %12, %16 : vector<512x16xi1>, vector<512x16xf32>
      %18 = arith.truncf %17 : vector<512x16xf32> to vector<512x16xbf16>
      %c0_14 = arith.constant 0 : index
      %c0_15 = arith.constant 0 : index
      %19 = vector.load %arg4[%c0_14, %c0_15] : memref<512x16xbf16, #tpu.memory_space<vmem>>, vector<512x16xbf16>
      tpu.vector_store %arg4[%c0_14, %c0_15], %18 {strides = array<i32>} : memref<512x16xbf16, #tpu.memory_space<vmem>>, vector<512x16xbf16>,
    } else {
    }
    return
  }
  func.func @transform_0(%arg0: i32, %arg1: i32) -> (i32, i32) {
    %c0_i32 = arith.constant 0 : i32
    return %arg0, %arg1 : i32, i32
  }
  func.func @transform_1(%arg0: i32, %arg1: i32) -> (i32, i32) {
    %c0_i32 = arith.constant 0 : i32
    %c0_i32_0 = arith.constant 0 : i32
    return %arg1, %c0_i32 : i32, i32
  }
  func.func @transform_2(%arg0: i32, %arg1: i32) -> (i32, i32) {
    %c0_i32 = arith.constant 0 : i32
    %c0_i32_0 = arith.constant 0 : i32
    return %arg0, %c0_i32 : i32, i32
  }
}

module attributes {stable_mosaic.version = 11 : i64} {
  func.func @gemm_lrelu_kernel(%arg0: i32, %arg1: i32, %arg2: memref<128x256xbf16, #tpu.memory_space<vmem>>, %arg3: memref<256x32xbf16, #tpu.memory_space<vmem>>, %arg4: memref<128x32xbf16, #tpu.memory_space<vmem>>, %arg5: memref<128x32xf32, #tpu.memory_space<vmem>>) attributes {dimension_semantics = [#tpu.dimension_semantics<parallel>, #tpu.dimension_semantics<arbitrary>], iteration_bounds = array<i64: 1, 1>, scalar_prefetch = 0 : i64, scratch_operands = 1 : i64, tpu.core_type = #tpu.core_type<tc>, window_params = [{transform_indices = @transform_0, window_bounds = array<i64: 128, 256>}, {transform_indices = @transform_1, window_bounds = array<i64: 256, 32>}, {transform_indices = @transform_2, window_bounds = array<i64: 128, 32>}]} {
    %c0_i32 = arith.constant 0 : i32
    %0 = arith.cmpi eq, %arg1, %c0_i32 : i32
    %1 = arith.extui %0 : i1 to i32
    %c0_i32_0 = arith.constant 0 : i32
    %2 = arith.cmpi ne, %1, %c0_i32_0 : i32
    scf.if %2 {
      %cst_10 = arith.constant 0.000000e+00 : f32
      %12 = vector.broadcast %cst_10 : f32 to vector<128x32xf32>
      %c0_11 = arith.constant 0 : index
      %c0_12 = arith.constant 0 : index
      %13 = vector.load %arg5[%c0_11, %c0_12] : memref<128x32xf32, #tpu.memory_space<vmem>>, vector<128x32xf32>
      tpu.vector_store %arg5[%c0_11, %c0_12], %12 {strides = array<i32>} : memref<128x32xf32, #tpu.memory_space<vmem>>, vector<128x32xf32>,
    } else {
    }
    %c0 = arith.constant 0 : index
    %c0_1 = arith.constant 0 : index
    %3 = vector.load %arg5[%c0, %c0_1] : memref<128x32xf32, #tpu.memory_space<vmem>>, vector<128x32xf32>
    %c0_2 = arith.constant 0 : index
    %c0_3 = arith.constant 0 : index
    %4 = vector.load %arg2[%c0_2, %c0_3] : memref<128x256xbf16, #tpu.memory_space<vmem>>, vector<128x256xbf16>
    %c0_4 = arith.constant 0 : index
    %c0_5 = arith.constant 0 : index
    %5 = vector.load %arg3[%c0_4, %c0_5] : memref<256x32xbf16, #tpu.memory_space<vmem>>, vector<256x32xbf16>
    %cst = arith.constant dense<0.000000e+00> : vector<128x32xf32>
    %6 = tpu.matmul %4, %5, %cst {dimension_numbers = #tpu.dot_dimension_numbers<[1], [0], [0], [1], [0, 0, 1, 1], [], []>} : vector<128x256xbf16>, vector<256x32xbf16>, vector<128x32xf32> -> vector<128x32xf32>
    %7 = arith.addf %3, %6 : vector<128x32xf32>
    %c0_6 = arith.constant 0 : index
    %c0_7 = arith.constant 0 : index
    %8 = vector.load %arg5[%c0_6, %c0_7] : memref<128x32xf32, #tpu.memory_space<vmem>>, vector<128x32xf32>
    tpu.vector_store %arg5[%c0_6, %c0_7], %7 {strides = array<i32>} : memref<128x32xf32, #tpu.memory_space<vmem>>, vector<128x32xf32>,
    %c0_i32_8 = arith.constant 0 : i32
    %9 = arith.cmpi eq, %arg1, %c0_i32_8 : i32
    %10 = arith.extui %9 : i1 to i32
    %c0_i32_9 = arith.constant 0 : i32
    %11 = arith.cmpi ne, %10, %c0_i32_9 : i32
    scf.if %11 {
      %c0_10 = arith.constant 0 : index
      %c0_11 = arith.constant 0 : index
      %12 = vector.load %arg5[%c0_10, %c0_11] : memref<128x32xf32, #tpu.memory_space<vmem>>, vector<128x32xf32>
      %cst_12 = arith.constant 0.000000e+00 : f32
      %13 = vector.broadcast %cst_12 : f32 to vector<128x32xf32>
      %14 = arith.cmpf oge, %12, %13 : vector<128x32xf32>
      %cst_13 = arith.constant 2.000000e-01 : f32
      %15 = vector.broadcast %cst_13 : f32 to vector<128x32xf32>
      %16 = arith.mulf %15, %12 : vector<128x32xf32>
      %17 = arith.select %14, %12, %16 : vector<128x32xi1>, vector<128x32xf32>
      %18 = arith.truncf %17 : vector<128x32xf32> to vector<128x32xbf16>
      %c0_14 = arith.constant 0 : index
      %c0_15 = arith.constant 0 : index
      %19 = vector.load %arg4[%c0_14, %c0_15] : memref<128x32xbf16, #tpu.memory_space<vmem>>, vector<128x32xbf16>
      tpu.vector_store %arg4[%c0_14, %c0_15], %18 {strides = array<i32>} : memref<128x32xbf16, #tpu.memory_space<vmem>>, vector<128x32xbf16>,
    } else {
    }
    return
  }
  func.func @transform_0(%arg0: i32, %arg1: i32) -> (i32, i32) {
    %c0_i32 = arith.constant 0 : i32
    return %arg0, %arg1 : i32, i32
  }
  func.func @transform_1(%arg0: i32, %arg1: i32) -> (i32, i32) {
    %c0_i32 = arith.constant 0 : i32
    %c0_i32_0 = arith.constant 0 : i32
    return %arg1, %c0_i32 : i32, i32
  }
  func.func @transform_2(%arg0: i32, %arg1: i32) -> (i32, i32) {
    %c0_i32 = arith.constant 0 : i32
    %c0_i32_0 = arith.constant 0 : i32
    return %arg0, %c0_i32 : i32, i32
  }
}

module attributes {stable_mosaic.version = 11 : i64} {
  func.func @head_kernel(%arg0: i32, %arg1: memref<32x512xbf16, #tpu.memory_space<vmem>>, %arg2: memref<512x64xbf16, #tpu.memory_space<vmem>>, %arg3: memref<32x64xf32, #tpu.memory_space<vmem>>, %arg4: memref<8x32xf32, #tpu.memory_space<vmem>>, %arg5: memref<8x1xf32, #tpu.memory_space<vmem>>, %arg6: memref<32x64xf32, #tpu.memory_space<vmem>>) attributes {dimension_semantics = [#tpu.dimension_semantics<arbitrary>], iteration_bounds = array<i64: 1>, scalar_prefetch = 0 : i64, scratch_operands = 1 : i64, tpu.core_type = #tpu.core_type<tc>, window_params = [{transform_indices = @transform_0, window_bounds = array<i64: 32, 512>}, {transform_indices = @transform_1, window_bounds = array<i64: 512, 64>}, {pipeline_mode = #tpu.pipeline_mode<synchronous>, transform_indices = @transform_2, window_bounds = array<i64: 32, 64>}, {pipeline_mode = #tpu.pipeline_mode<synchronous>, transform_indices = @transform_3, window_bounds = array<i64: 8, 32>}, {pipeline_mode = #tpu.pipeline_mode<synchronous>, transform_indices = @transform_4, window_bounds = array<i64: 8, 1>}]} {
    %c0_i32 = arith.constant 0 : i32
    %0 = arith.cmpi eq, %arg0, %c0_i32 : i32
    %1 = arith.extui %0 : i1 to i32
    %c0_i32_0 = arith.constant 0 : i32
    %2 = arith.cmpi ne, %1, %c0_i32_0 : i32
    scf.if %2 {
      %cst_10 = arith.constant 0.000000e+00 : f32
      %12 = vector.broadcast %cst_10 : f32 to vector<32x64xf32>
      %c0_11 = arith.constant 0 : index
      %c0_12 = arith.constant 0 : index
      %13 = vector.load %arg6[%c0_11, %c0_12] : memref<32x64xf32, #tpu.memory_space<vmem>>, vector<32x64xf32>
      tpu.vector_store %arg6[%c0_11, %c0_12], %12 {strides = array<i32>} : memref<32x64xf32, #tpu.memory_space<vmem>>, vector<32x64xf32>,
    } else {
    }
    %c0 = arith.constant 0 : index
    %c0_1 = arith.constant 0 : index
    %3 = vector.load %arg6[%c0, %c0_1] : memref<32x64xf32, #tpu.memory_space<vmem>>, vector<32x64xf32>
    %c0_2 = arith.constant 0 : index
    %c0_3 = arith.constant 0 : index
    %4 = vector.load %arg1[%c0_2, %c0_3] : memref<32x512xbf16, #tpu.memory_space<vmem>>, vector<32x512xbf16>
    %c0_4 = arith.constant 0 : index
    %c0_5 = arith.constant 0 : index
    %5 = vector.load %arg2[%c0_4, %c0_5] : memref<512x64xbf16, #tpu.memory_space<vmem>>, vector<512x64xbf16>
    %cst = arith.constant dense<0.000000e+00> : vector<32x64xf32>
    %6 = tpu.matmul %4, %5, %cst {dimension_numbers = #tpu.dot_dimension_numbers<[1], [0], [0], [1], [0, 0, 1, 1], [], []>} : vector<32x512xbf16>, vector<512x64xbf16>, vector<32x64xf32> -> vector<32x64xf32>
    %7 = arith.addf %3, %6 : vector<32x64xf32>
    %c0_6 = arith.constant 0 : index
    %c0_7 = arith.constant 0 : index
    %8 = vector.load %arg6[%c0_6, %c0_7] : memref<32x64xf32, #tpu.memory_space<vmem>>, vector<32x64xf32>
    tpu.vector_store %arg6[%c0_6, %c0_7], %7 {strides = array<i32>} : memref<32x64xf32, #tpu.memory_space<vmem>>, vector<32x64xf32>,
    %c0_i32_8 = arith.constant 0 : i32
    %9 = arith.cmpi eq, %arg0, %c0_i32_8 : i32
    %10 = arith.extui %9 : i1 to i32
    %c0_i32_9 = arith.constant 0 : i32
    %11 = arith.cmpi ne, %10, %c0_i32_9 : i32
    scf.if %11 {
      %c0_10 = arith.constant 0 : index
      %c0_11 = arith.constant 0 : index
      %12 = vector.load %arg6[%c0_10, %c0_11] : memref<32x64xf32, #tpu.memory_space<vmem>>, vector<32x64xf32>
      %cst_12 = arith.constant 0.000000e+00 : f32
      %13 = vector.broadcast %cst_12 : f32 to vector<32x64xf32>
      %14 = arith.cmpf oge, %12, %13 : vector<32x64xf32>
      %cst_13 = arith.constant 2.000000e-01 : f32
      %15 = vector.broadcast %cst_13 : f32 to vector<32x64xf32>
      %16 = arith.mulf %15, %12 : vector<32x64xf32>
      %17 = arith.select %14, %12, %16 : vector<32x64xi1>, vector<32x64xf32>
      %c0_14 = arith.constant 0 : index
      %c0_15 = arith.constant 0 : index
      %18 = vector.load %arg3[%c0_14, %c0_15] : memref<32x64xf32, #tpu.memory_space<vmem>>, vector<32x64xf32>
      %19 = arith.mulf %17, %18 : vector<32x64xf32>
      %c0_16 = arith.constant 0 : index
      %c0_17 = arith.constant 0 : index
      %20 = vector.load %arg4[%c0_16, %c0_17] : memref<8x32xf32, #tpu.memory_space<vmem>>, vector<8x32xf32>
      %cst_18 = arith.constant dense<0.000000e+00> : vector<8x64xf32>
      %21 = tpu.matmul %20, %19, %cst_18 {dimension_numbers = #tpu.dot_dimension_numbers<[1], [0], [0], [1], [0, 0, 1, 1], [], []>} : vector<8x32xf32>, vector<32x64xf32>, vector<8x64xf32> -> vector<8x64xf32>
      %cst_19 = arith.constant dense<0.000000e+00> : vector<8xf32>
      %22 = vector.multi_reduction <add>, %21, %cst_19 [1] : vector<8x64xf32> to vector<8xf32>
      %23 = vector.shape_cast %22 : vector<8xf32> to vector<8x1xf32>
      %c0_20 = arith.constant 0 : index
      %c0_21 = arith.constant 0 : index
      %24 = vector.load %arg5[%c0_20, %c0_21] : memref<8x1xf32, #tpu.memory_space<vmem>>, vector<8x1xf32>
      tpu.vector_store %arg5[%c0_20, %c0_21], %23 {strides = array<i32>} : memref<8x1xf32, #tpu.memory_space<vmem>>, vector<8x1xf32>,
    } else {
    }
    return
  }
  func.func @transform_0(%arg0: i32) -> (i32, i32) {
    %c0_i32 = arith.constant 0 : i32
    %c0_i32_0 = arith.constant 0 : i32
    return %c0_i32, %arg0 : i32, i32
  }
  func.func @transform_1(%arg0: i32) -> (i32, i32) {
    %c0_i32 = arith.constant 0 : i32
    %c0_i32_0 = arith.constant 0 : i32
    return %arg0, %c0_i32 : i32, i32
  }
  func.func @transform_2(%arg0: i32) -> (i32, i32) {
    %c0_i32 = arith.constant 0 : i32
    %c0_i32_0 = arith.constant 0 : i32
    %c0_i32_1 = arith.constant 0 : i32
    return %c0_i32, %c0_i32_0 : i32, i32
  }
  func.func @transform_3(%arg0: i32) -> (i32, i32) {
    %c0_i32 = arith.constant 0 : i32
    %c0_i32_0 = arith.constant 0 : i32
    %c0_i32_1 = arith.constant 0 : i32
    return %c0_i32, %c0_i32_0 : i32, i32
  }
  func.func @transform_4(%arg0: i32) -> (i32, i32) {
    %c0_i32 = arith.constant 0 : i32
    %c0_i32_0 = arith.constant 0 : i32
    %c0_i32_1 = arith.constant 0 : i32
    return %c0_i32, %c0_i32_0 : i32, i32
  }
}

</mosaic_0001>

<llo_original>
// kernel: critic_forward.4
$region0: #{critic_forward.4}
  #allocation0 [shape = 'u32[]', space=smem, size = 0x4, offset = 0x4, fixed_abs, tag = 'smem constant byte address 0x4 - core index']
  #allocation1 [shape = 'u32[144,128]{1,0:T(1,128)}', space=vmem, size = 0x12000, scoped, tag = 'internal scratch']
  #allocation2 [shape = 'f32[512,8]{1,0:T(8,128)}', space=vmem, size = 0x40000, scoped, tag = 'scratch operand']
  %s0 = inlined_call_operand.vmem [shape: bf16[2048,128], index: 0, kind: input, shape index: {}]
  %s1 = inlined_call_operand.vmem [shape: bf16[128,8], index: 1, kind: input, shape index: {}]
  %s2 = inlined_call_operand.vmem [shape: bf16[2048,8], index: 2, kind: output, shape index: {}]
  %s3 = sld [smem:[#allocation0]]
  $region49: #{critic_forward.4} parent=0
    _
  %s5 = ssub.s32 1, %s3
  %s6 = scalar_select 0, %s5, %s3
  loop: start=0, step=1, limit=6
  $region2: #{critic_forward.4} parent=0 // loop_pre_header
    _
  $region3: #{critic_forward.4} parent=0 // loop_header
    %s8 = sphi 0, %s12
    %p9 = scmp.ge.s32.totalorder %s8, 6
    %s15 = sphi 0, %s27
    %s16 = sphi 0, %s23
    %s17 = sphi 0, %s15
    %s18 = sphi 0, %s16
    %s19 = sphi 0, %s17
    %s20 = sphi 0, %s18
    %s32 = sphi 0, %s34
    %s35 = sphi 0, %s32
    %s36 = sphi 0, %s35
    %s52 = sphi 0, %s36
    %s58 = sphi 0, %s60
    %s61 = sphi 0, %s58
    %s62 = sphi 0, %s61
    %s78 = sphi 0, %s62
    %s84 = sphi 0, %s86
    %s87 = sphi 0, %s84
    %s88 = sphi 0, %s87
    %s104 = sphi 0, %s88
  $region4: #{critic_forward.4} parent=0 // loop_header_branch
    %11 = sbr.rel (%p9) target = $region8
  $region5: #{critic_forward.4} parent=0 // loop_body
    %s13 = ssub.s32 %s8, 1
    %s14 = ssub.s32 %s8, 2
    %s21 = sadd.s32 1, %s16
    %p22 = scmp.ge.s32.totalorder %s21, 1
    %s23 = scalar_select %p22, 0, %s21
    %s24 = sadd.s32 1, %s15
    %s25 = scalar_select %p22, %s24, %s15
    %p26 = scmp.ge.s32.totalorder %s25, 4
    %s27 = scalar_select %p26, 0, %s25
    %s28 = ssub.s32 %s15, %s27
    %s29 = ssub.s32 %s16, %s23
    %s30 = sor.u32 %s28, %s29
    %p31 = scmp.eq.s32.totalorder %s30, 0
    %s33 = sadd.s32 %s32, 1
    %s34 = scalar_select %p31, %s32, %s33
    %p37 = pneg %p31
    %p38 = scmp.eq.s32.totalorder %s8, 3
    %p39 = por %p37, %p38
    %p40 = scmp.ne.s32.totalorder %s32, %s35
    %p41 = scmp.eq.s32.totalorder %s8, 0
    %p42 = por %p40, %p41
    %p43 = scmp.ne.s32.totalorder %s32, %s35
    %p44 = scmp.eq.s32.totalorder %s13, 3
    %p45 = por %p43, %p44
    %p46 = scmp.ne.s32.totalorder %s35, %s36
    %p47 = scmp.eq.s32.totalorder %s13, 0
    %p48 = por %p46, %p47
    %p49 = scmp.ne.s32.totalorder %s35, %s36
    %p50 = scmp.eq.s32.totalorder %s14, 3
    %p51 = por %p49, %p50
    %p53 = scmp.ne.s32.totalorder %s36, %s52
    %p54 = scmp.eq.s32.totalorder %s14, 0
    %p55 = por %p53, %p54
    %s56 = ssub.s32 %s16, %s23
    %p57 = scmp.eq.s32.totalorder %s56, 0
    %s59 = sadd.s32 %s58, 1
    %s60 = scalar_select %p57, %s58, %s59
    %p63 = pneg %p57
    %p64 = scmp.eq.s32.totalorder %s8, 3
    %p65 = por %p63, %p64
    %p66 = scmp.ne.s32.totalorder %s58, %s61
    %p67 = scmp.eq.s32.totalorder %s8, 0
    %p68 = por %p66, %p67
    %p69 = scmp.ne.s32.totalorder %s58, %s61
    %p70 = scmp.eq.s32.totalorder %s13, 3
    %p71 = por %p69, %p70
    %p72 = scmp.ne.s32.totalorder %s61, %s62
    %p73 = scmp.eq.s32.totalorder %s13, 0
    %p74 = por %p72, %p73
    %p75 = scmp.ne.s32.totalorder %s61, %s62
    %p76 = scmp.eq.s32.totalorder %s14, 3
    %p77 = por %p75, %p76
    %p79 = scmp.ne.s32.totalorder %s62, %s78
    %p80 = scmp.eq.s32.totalorder %s14, 0
    %p81 = por %p79, %p80
    %s82 = ssub.s32 %s15, %s27
    %p83 = scmp.eq.s32.totalorder %s82, 0
    %s85 = sadd.s32 %s84, 1
    %s86 = scalar_select %p83, %s84, %s85
    %p89 = pneg %p83
    %p90 = scmp.eq.s32.totalorder %s8, 3
    %p91 = por %p89, %p90
    %p92 = scmp.ne.s32.totalorder %s84, %s87
    %p93 = scmp.eq.s32.totalorder %s8, 0
    %p94 = por %p92, %p93
    %p95 = scmp.ne.s32.totalorder %s84, %s87
    %p96 = scmp.eq.s32.totalorder %s13, 3
    %p97 = por %p95, %p96
    %p98 = scmp.ne.s32.totalorder %s87, %s88
    %p99 = scmp.eq.s32.totalorder %s13, 0
    %p100 = por %p98, %p99
    %p101 = scmp.ne.s32.totalorder %s87, %s88
    %p102 = scmp.eq.s32.totalorder %s14, 3
    %p103 = por %p101, %p102
    %p105 = scmp.ne.s32.totalorder %s88, %s104
    %p106 = scmp.eq.s32.totalorder %s14, 0
    %p107 = por %p105, %p106
    %p108 = scmp.le.s32.totalorder 1, %s8
    %p109 = scmp.lt.s32.totalorder %s8, 5
    %p110 = pnand %p108, %p109
    %p111 = pneg %p110
    // Predicated region
    $region9: #{critic_forward.4} parent=5 // pred_check
      _
    $region10: #{critic_forward.4} parent=5 // pred_check_branch
      %113 = sbr.rel (%p110) target = $region12
    $region11: #{critic_forward.4} parent=5 // pred_region
      %s114 = ssub.s32 %s8, 1
      // Predicated region
      $region13: #{critic_forward.4} parent=11 // pred_check
        %p115 = pneg %p74
      $region14: #{critic_forward.4} parent=11 // pred_check_branch
        %117 = sbr.rel (%p115) target = $region16
      $region15: #{critic_forward.4} parent=11 // pred_region
        %s118 = smul.u32 16, %s18
        %p119 = scmp.lt.s32.totalorder %s118, 15
        %s120 = scalar_select %p119, %s118, 15
        %s121 = smul.addr %s120, 4
        %s122 = scalar_lea.vmem %s1, %s121
        %s123 = smul.u32 16, %s18
      $region16: #{critic_forward.4} parent=11 // pred_fallthru
        _
    $region12: #{critic_forward.4} parent=5 // pred_fallthru
      _
    %p124 = scmp.lt.s32.totalorder %s8, 4
    // Predicated region
    $region17: #{critic_forward.4} parent=5 // pred_check
      %p125 = pneg %p124
    $region18: #{critic_forward.4} parent=5 // pred_check_branch
      %127 = sbr.rel (%p125) target = $region20
    $region19: #{critic_forward.4} parent=5 // pred_region
      // Predicated region
      $region21: #{critic_forward.4} parent=19 // pred_check
        %p128 = pneg %p42
      $region22: #{critic_forward.4} parent=19 // pred_check_branch
        %130 = sbr.rel (%p128) target = $region24
      $region23: #{critic_forward.4} parent=19 // pred_region
        %s131 = smul.u32 64, %s15
        %p132 = scmp.lt.s32.totalorder %s131, 255
        %s133 = scalar_select %p132, %s131, 255
        %p134 = scmp.lt.s32.totalorder %s16, 0
        %s135 = scalar_select %p134, %s16, 0
        %s136 = sadd.s32 %s135, %s133
        %s137 = smul.addr %s136, 4
        %s138 = scalar_lea.vmem %s0, %s137
        %s139 = smul.u32 64, %s15
      $region24: #{critic_forward.4} parent=19 // pred_fallthru
        _
    $region20: #{critic_forward.4} parent=5 // pred_fallthru
      _
    %p140 = scmp.le.s32.totalorder 1, %s8
    %p141 = scmp.lt.s32.totalorder %s8, 5
    %p142 = pnand %p140, %p141
    %p143 = pneg %p142
    // Predicated region
    $region25: #{critic_forward.4} parent=5 // pred_check
      _
    $region26: #{critic_forward.4} parent=5 // pred_check_branch
      %145 = sbr.rel (%p142) target = $region28
    $region27: #{critic_forward.4} parent=5 // pred_region
      %s146 = ssub.s32 %s8, 1
      %s147 = smul.u32 64, %s17
      %p148 = scmp.lt.s32.totalorder %s147, 255
      %s149 = scalar_select %p148, %s147, 255
      %p150 = scmp.lt.s32.totalorder %s18, 0
      %s151 = scalar_select %p150, %s18, 0
      %s152 = sadd.s32 %s151, %s149
      %s153 = smul.addr %s152, 4
      %s154 = scalar_lea.vmem %s0, %s153
      %p155 = pneg %p48
      %p156 = pneg %p45
      %s157 = smul.u32 16, %s18
      %p158 = scmp.lt.s32.totalorder %s157, 15
      %s159 = scalar_select %p158, %s157, 15
      %s160 = smul.addr %s159, 4
      %s161 = scalar_lea.vmem %s1, %s160
      %p162 = pneg %p74
      %p163 = pneg %p71
      %p164 = pneg %p100
      %p165 = pneg %p97
      %s166 = smul.u32 64, %s17
      %p167 = scmp.lt.s32.totalorder %s166, 255
      %s168 = scalar_select %p167, %s166, 255
      %s169 = smul.addr %s168, 4
      %s170 = scalar_lea.vmem %s2, %s169
      %s171 = smul.u32 64, %s17
      %p172 = scmp.lt.s32.totalorder %s171, 255
      %s173 = scalar_select %p172, %s171, 255
      %p174 = scmp.lt.s32.totalorder %s18, 0
      %s175 = scalar_select %p174, %s18, 0
      %s176 = sadd.s32 %s175, %s173
      %s177 = smul.addr %s176, 4
      %s178 = scalar_lea.vmem %s0, %s177
      %s179 = smul.u32 64, %s17
      %s180 = smul.u32 16, %s18
      %p181 = scmp.lt.s32.totalorder %s180, 15
      %s182 = scalar_select %p181, %s180, 15
      %s183 = smul.addr %s182, 4
      %s184 = scalar_lea.vmem %s1, %s183
      %s185 = smul.u32 16, %s18
      %s186 = smul.u32 64, %s17
      %p187 = scmp.lt.s32.totalorder %s186, 255
      %s188 = scalar_select %p187, %s186, 255
      %s189 = smul.addr %s188, 4
      %s190 = scalar_lea.vmem %s2, %s189
      %s191 = smul.u32 64, %s17
      %p193 = scmp.eq.s32.totalorder %s18, 0
      // Predicated region
      $region29: #{critic_forward.4} parent=27 // pred_check
        %p194 = pneg %p193
      $region30: #{critic_forward.4} parent=27 // pred_check_branch
        %196 = sbr.rel (%p194) target = $region32
      $region31: #{critic_forward.4} parent=27 // pred_region
        %vm197 = vcmask 64512
        %198 = vst.msk [vmem:[#allocation2] sm:$0xff] %vm197, 0.0
        %199 = vst.msk [vmem:[#allocation2 + $0x8] sm:$0xff] %vm197, 0.0
        %200 = vst.msk [vmem:[#allocation2 + $0x10] sm:$0xff] %vm197, 0.0
        %201 = vst.msk [vmem:[#allocation2 + $0x18] sm:$0xff] %vm197, 0.0
        %202 = vst.msk [vmem:[#allocation2 + $0x20] sm:$0xff] %vm197, 0.0
        %203 = vst.msk [vmem:[#allocation2 + $0x28] sm:$0xff] %vm197, 0.0
        %204 = vst.msk [vmem:[#allocation2 + $0x30] sm:$0xff] %vm197, 0.0
        %205 = vst.msk [vmem:[#allocation2 + $0x38] sm:$0xff] %vm197, 0.0
        %206 = vst.msk [vmem:[#allocation2 + $0x40] sm:$0xff] %vm197, 0.0
        %207 = vst.msk [vmem:[#allocation2 + $0x48] sm:$0xff] %vm197, 0.0
        %208 = vst.msk [vmem:[#allocation2 + $0x50] sm:$0xff] %vm197, 0.0
        %209 = vst.msk [vmem:[#allocation2 + $0x58] sm:$0xff] %vm197, 0.0
        %210 = vst.msk [vmem:[#allocation2 + $0x60] sm:$0xff] %vm197, 0.0
        %211 = vst.msk [vmem:[#allocation2 + $0x68] sm:$0xff] %vm197, 0.0
        %212 = vst.msk [vmem:[#allocation2 + $0x70] sm:$0xff] %vm197, 0.0
        %213 = vst.msk [vmem:[#allocation2 + $0x78] sm:$0xff] %vm197, 0.0
        %214 = vst.msk [vmem:[#allocation2 + $0x80] sm:$0xff] %vm197, 0.0
        %215 = vst.msk [vmem:[#allocation2 + $0x88] sm:$0xff] %vm197, 0.0
        %216 = vst.msk [vmem:[#allocation2 + $0x90] sm:$0xff] %vm197, 0.0
        %217 = vst.msk [vmem:[#allocation2 + $0x98] sm:$0xff] %vm197, 0.0
        %218 = vst.msk [vmem:[#allocation2 + $0xa0] sm:$0xff] %vm197, 0.0
        %219 = vst.msk [vmem:[#allocation2 + $0xa8] sm:$0xff] %vm197, 0.0
        %220 = vst.msk [vmem:[#allocation2 + $0xb0] sm:$0xff] %vm197, 0.0
        %221 = vst.msk [vmem:[#allocation2 + $0xb8] sm:$0xff] %vm197, 0.0
        %222 = vst.msk [vmem:[#allocation2 + $0xc0] sm:$0xff] %vm197, 0.0
        %223 = vst.msk [vmem:[#allocation2 + $0xc8] sm:$0xff] %vm197, 0.0
        %224 = vst.msk [vmem:[#allocation2 + $0xd0] sm:$0xff] %vm197, 0.0
        %225 = vst.msk [vmem:[#allocation2 + $0xd8] sm:$0xff] %vm197, 0.0
        %226 = vst.msk [vmem:[#allocation2 + $0xe0] sm:$0xff] %vm197, 0.0
        %227 = vst.msk [vmem:[#allocation2 + $0xe8] sm:$0xff] %vm197, 0.0
        %228 = vst.msk [vmem:[#allocation2 + $0xf0] sm:$0xff] %vm197, 0.0
        %229 = vst.msk [vmem:[#allocation2 + $0xf8] sm:$0xff] %vm197, 0.0
        %230 = vst.msk [vmem:[#allocation2 + $0x100] sm:$0xff] %vm197, 0.0
        %231 = vst.msk [vmem:[#allocation2 + $0x108] sm:$0xff] %vm197, 0.0
        %232 = vst.msk [vmem:[#allocation2 + $0x110] sm:$0xff] %vm197, 0.0
        %233 = vst.msk [vmem:[#allocation2 + $0x118] sm:$0xff] %vm197, 0.0
        %234 = vst.msk [vmem:[#allocation2 + $0x120] sm:$0xff] %vm197, 0.0
        %235 = vst.msk [vmem:[#allocation2 + $0x128] sm:$0xff] %vm197, 0.0
        %236 = vst.msk [vmem:[#allocation2 + $0x130] sm:$0xff] %vm197, 0.0
        %237 = vst.msk [vmem:[#allocation2 + $0x138] sm:$0xff] %vm197, 0.0
        %238 = vst.msk [vmem:[#allocation2 + $0x140] sm:$0xff] %vm197, 0.0
        %239 = vst.msk [vmem:[#allocation2 + $0x148] sm:$0xff] %vm197, 0.0
        %240 = vst.msk [vmem:[#allocation2 + $0x150] sm:$0xff] %vm197, 0.0
        %241 = vst.msk [vmem:[#allocation2 + $0x158] sm:$0xff] %vm197, 0.0
        %242 = vst.msk [vmem:[#allocation2 + $0x160] sm:$0xff] %vm197, 0.0
        %243 = vst.msk [vmem:[#allocation2 + $0x168] sm:$0xff] %vm197, 0.0
        %244 = vst.msk [vmem:[#allocation2 + $0x170] sm:$0xff] %vm197, 0.0
        %245 = vst.msk [vmem:[#allocation2 + $0x178] sm:$0xff] %vm197, 0.0
        %246 = vst.msk [vmem:[#allocation2 + $0x180] sm:$0xff] %vm197, 0.0
        %247 = vst.msk [vmem:[#allocation2 + $0x188] sm:$0xff] %vm197, 0.0
        %248 = vst.msk [vmem:[#allocation2 + $0x190] sm:$0xff] %vm197, 0.0
        %249 = vst.msk [vmem:[#allocation2 + $0x198] sm:$0xff] %vm197, 0.0
        %250 = vst.msk [vmem:[#allocation2 + $0x1a0] sm:$0xff] %vm197, 0.0
        %251 = vst.msk [vmem:[#allocation2 + $0x1a8] sm:$0xff] %vm197, 0.0
        %252 = vst.msk [vmem:[#allocation2 + $0x1b0] sm:$0xff] %vm197, 0.0
        %253 = vst.msk [vmem:[#allocation2 + $0x1b8] sm:$0xff] %vm197, 0.0
        %254 = vst.msk [vmem:[#allocation2 + $0x1c0] sm:$0xff] %vm197, 0.0
        %255 = vst.msk [vmem:[#allocation2 + $0x1c8] sm:$0xff] %vm197, 0.0
        %256 = vst.msk [vmem:[#allocation2 + $0x1d0] sm:$0xff] %vm197, 0.0
        %257 = vst.msk [vmem:[#allocation2 + $0x1d8] sm:$0xff] %vm197, 0.0
        %258 = vst.msk [vmem:[#allocation2 + $0x1e0] sm:$0xff] %vm197, 0.0
        %259 = vst.msk [vmem:[#allocation2 + $0x1e8] sm:$0xff] %vm197, 0.0
        %260 = vst.msk [vmem:[#allocation2 + $0x1f0] sm:$0xff] %vm197, 0.0
        %261 = vst.msk [vmem:[#allocation2 + $0x1f8] sm:$0xff] %vm197, 0.0
      $region32: #{critic_forward.4} parent=27 // pred_fallthru
        _
      %v262 = vld [vmem:[#allocation2] sm:$0xff]
      %v263 = vld [vmem:[#allocation2 + $0x8] sm:$0xff]
      %v264 = vld [vmem:[#allocation2 + $0x10] sm:$0xff]
      %v265 = vld [vmem:[#allocation2 + $0x18] sm:$0xff]
      %v266 = vld [vmem:[#allocation2 + $0x20] sm:$0xff]
      %v267 = vld [vmem:[#allocation2 + $0x28] sm:$0xff]
      %v268 = vld [vmem:[#allocation2 + $0x30] sm:$0xff]
      %v269 = vld [vmem:[#allocation2 + $0x38] sm:$0xff]
      %v270 = vld [vmem:[#allocation2 + $0x40] sm:$0xff]
      %v271 = vld [vmem:[#allocation2 + $0x48] sm:$0xff]
      %v272 = vld [vmem:[#allocation2 + $0x50] sm:$0xff]
      %v273 = vld [vmem:[#allocation2 + $0x58] sm:$0xff]
      %v274 = vld [vmem:[#allocation2 + $0x60] sm:$0xff]
      %v275 = vld [vmem:[#allocation2 + $0x68] sm:$0xff]
      %v276 = vld [vmem:[#allocation2 + $0x70] sm:$0xff]
      %v277 = vld [vmem:[#allocation2 + $0x78] sm:$0xff]
      %v278 = vld [vmem:[#allocation2 + $0x80] sm:$0xff]
      %v279 = vld [vmem:[#allocation2 + $0x88] sm:$0xff]
      %v280 = vld [vmem:[#allocation2 + $0x90] sm:$0xff]
      %v281 = vld [vmem:[#allocation2 + $0x98] sm:$0xff]
      %v282 = vld [vmem:[#allocation2 + $0xa0] sm:$0xff]
      %v283 = vld [vmem:[#allocation2 + $0xa8] sm:$0xff]
      %v284 = vld [vmem:[#allocation2 + $0xb0] sm:$0xff]
      %v285 = vld [vmem:[#allocation2 + $0xb8] sm:$0xff]
      %v286 = vld [vmem:[#allocation2 + $0xc0] sm:$0xff]
      %v287 = vld [vmem:[#allocation2 + $0xc8] sm:$0xff]
      %v288 = vld [vmem:[#allocation2 + $0xd0] sm:$0xff]
      %v289 = vld [vmem:[#allocation2 + $0xd8] sm:$0xff]
      %v290 = vld [vmem:[#allocation2 + $0xe0] sm:$0xff]
      %v291 = vld [vmem:[#allocation2 + $0xe8] sm:$0xff]
      %v292 = vld [vmem:[#allocation2 + $0xf0] sm:$0xff]
      %v293 = vld [vmem:[#allocation2 + $0xf8] sm:$0xff]
      %v294 = vld [vmem:[#allocation2 + $0x100] sm:$0xff]
      %v295 = vld [vmem:[#allocation2 + $0x108] sm:$0xff]
      %v296 = vld [vmem:[#allocation2 + $0x110] sm:$0xff]
      %v297 = vld [vmem:[#allocation2 + $0x118] sm:$0xff]
      %v298 = vld [vmem:[#allocation2 + $0x120] sm:$0xff]
      %v299 = vld [vmem:[#allocation2 + $0x128] sm:$0xff]
      %v300 = vld [vmem:[#allocation2 + $0x130] sm:$0xff]
      %v301 = vld [vmem:[#allocation2 + $0x138] sm:$0xff]
      %v302 = vld [vmem:[#allocation2 + $0x140] sm:$0xff]
      %v303 = vld [vmem:[#allocation2 + $0x148] sm:$0xff]
      %v304 = vld [vmem:[#allocation2 + $0x150] sm:$0xff]
      %v305 = vld [vmem:[#allocation2 + $0x158] sm:$0xff]
      %v306 = vld [vmem:[#allocation2 + $0x160] sm:$0xff]
      %v307 = vld [vmem:[#allocation2 + $0x168] sm:$0xff]
      %v308 = vld [vmem:[#allocation2 + $0x170] sm:$0xff]
      %v309 = vld [vmem:[#allocation2 + $0x178] sm:$0xff]
      %v310 = vld [vmem:[#allocation2 + $0x180] sm:$0xff]
      %v311 = vld [vmem:[#allocation2 + $0x188] sm:$0xff]
      %v312 = vld [vmem:[#allocation2 + $0x190] sm:$0xff]
      %v313 = vld [vmem:[#allocation2 + $0x198] sm:$0xff]
      %v314 = vld [vmem:[#allocation2 + $0x1a0] sm:$0xff]
      %v315 = vld [vmem:[#allocation2 + $0x1a8] sm:$0xff]
      %v316 = vld [vmem:[#allocation2 + $0x1b0] sm:$0xff]
      %v317 = vld [vmem:[#allocation2 + $0x1b8] sm:$0xff]
      %v318 = vld [vmem:[#allocation2 + $0x1c0] sm:$0xff]
      %v319 = vld [vmem:[#allocation2 + $0x1c8] sm:$0xff]
      %v320 = vld [vmem:[#allocation2 + $0x1d0] sm:$0xff]
      %v321 = vld [vmem:[#allocation2 + $0x1d8] sm:$0xff]
      %v322 = vld [vmem:[#allocation2 + $0x1e0] sm:$0xff]
      %v323 = vld [vmem:[#allocation2 + $0x1e8] sm:$0xff]
      %v324 = vld [vmem:[#allocation2 + $0x1f0] sm:$0xff]
      %v325 = vld [vmem:[#allocation2 + $0x1f8] sm:$0xff]
      %v326 = vld [vmem:[%s178] sm:$0xf]
      %v327 = vld [vmem:[%s178 + $0x4] sm:$0xf]
      %v328 = vld [vmem:[%s178 + $0x8] sm:$0xf]
      %v329 = vld [vmem:[%s178 + $0xc] sm:$0xf]
      %v330 = vld [vmem:[%s178 + $0x10] sm:$0xf]
      %v331 = vld [vmem:[%s178 + $0x14] sm:$0xf]
      %v332 = vld [vmem:[%s178 + $0x18] sm:$0xf]
      %v333 = vld [vmem:[%s178 + $0x1c] sm:$0xf]
      %v334 = vld [vmem:[%s178 + $0x20] sm:$0xf]
      %v335 = vld [vmem:[%s178 + $0x24] sm:$0xf]
      %v336 = vld [vmem:[%s178 + $0x28] sm:$0xf]
      %v337 = vld [vmem:[%s178 + $0x2c] sm:$0xf]
      %v338 = vld [vmem:[%s178 + $0x30] sm:$0xf]
      %v339 = vld [vmem:[%s178 + $0x34] sm:$0xf]
      %v340 = vld [vmem:[%s178 + $0x38] sm:$0xf]
      %v341 = vld [vmem:[%s178 + $0x3c] sm:$0xf]
      %v342 = vld [vmem:[%s178 + $0x40] sm:$0xf]
      %v343 = vld [vmem:[%s178 + $0x44] sm:$0xf]
      %v344 = vld [vmem:[%s178 + $0x48] sm:$0xf]
      %v345 = vld [vmem:[%s178 + $0x4c] sm:$0xf]
      %v346 = vld [vmem:[%s178 + $0x50] sm:$0xf]
      %v347 = vld [vmem:[%s178 + $0x54] sm:$0xf]
      %v348 = vld [vmem:[%s178 + $0x58] sm:$0xf]
      %v349 = vld [vmem:[%s178 + $0x5c] sm:$0xf]
      %v350 = vld [vmem:[%s178 + $0x60] sm:$0xf]
      %v351 = vld [vmem:[%s178 + $0x64] sm:$0xf]
      %v352 = vld [vmem:[%s178 + $0x68] sm:$0xf]
      %v353 = vld [vmem:[%s178 + $0x6c] sm:$0xf]
      %v354 = vld [vmem:[%s178 + $0x70] sm:$0xf]
      %v355 = vld [vmem:[%s178 + $0x74] sm:$0xf]
      %v356 = vld [vmem:[%s178 + $0x78] sm:$0xf]
      %v357 = vld [vmem:[%s178 + $0x7c] sm:$0xf]
      %v358 = vld [vmem:[%s178 + $0x80] sm:$0xf]
      %v359 = vld [vmem:[%s178 + $0x84] sm:$0xf]
      %v360 = vld [vmem:[%s178 + $0x88] sm:$0xf]
      %v361 = vld [vmem:[%s178 + $0x8c] sm:$0xf]
      %v362 = vld [vmem:[%s178 + $0x90] sm:$0xf]
      %v363 = vld [vmem:[%s178 + $0x94] sm:$0xf]
      %v364 = vld [vmem:[%s178 + $0x98] sm:$0xf]
      %v365 = vld [vmem:[%s178 + $0x9c] sm:$0xf]
      %v366 = vld [vmem:[%s178 + $0xa0] sm:$0xf]
      %v367 = vld [vmem:[%s178 + $0xa4] sm:$0xf]
      %v368 = vld [vmem:[%s178 + $0xa8] sm:$0xf]
      %v369 = vld [vmem:[%s178 + $0xac] sm:$0xf]
      %v370 = vld [vmem:[%s178 + $0xb0] sm:$0xf]
      %v371 = vld [vmem:[%s178 + $0xb4] sm:$0xf]
      %v372 = vld [vmem:[%s178 + $0xb8] sm:$0xf]
      %v373 = vld [vmem:[%s178 + $0xbc] sm:$0xf]
      %v374 = vld [vmem:[%s178 + $0xc0] sm:$0xf]
      %v375 = vld [vmem:[%s178 + $0xc4] sm:$0xf]
      %v376 = vld [vmem:[%s178 + $0xc8] sm:$0xf]
      %v377 = vld [vmem:[%s178 + $0xcc] sm:$0xf]
      %v378 = vld [vmem:[%s178 + $0xd0] sm:$0xf]
      %v379 = vld [vmem:[%s178 + $0xd4] sm:$0xf]
      %v380 = vld [vmem:[%s178 + $0xd8] sm:$0xf]
      %v381 = vld [vmem:[%s178 + $0xdc] sm:$0xf]
      %v382 = vld [vmem:[%s178 + $0xe0] sm:$0xf]
      %v383 = vld [vmem:[%s178 + $0xe4] sm:$0xf]
      %v384 = vld [vmem:[%s178 + $0xe8] sm:$0xf]
      %v385 = vld [vmem:[%s178 + $0xec] sm:$0xf]
      %v386 = vld [vmem:[%s178 + $0xf0] sm:$0xf]
      %v387 = vld [vmem:[%s178 + $0xf4] sm:$0xf]
      %v388 = vld [vmem:[%s178 + $0xf8] sm:$0xf]
      %v389 = vld [vmem:[%s178 + $0xfc] sm:$0xf]
      %v390 = vld [vmem:[%s184] sm:$0xf]
      %v391 = vld [vmem:[%s184 + $0x4] sm:$0xf]
      %v392 = vld [vmem:[%s184 + $0x8] sm:$0xf]
      %v393 = vld [vmem:[%s184 + $0xc] sm:$0xf]
      %v394 = vld [vmem:[%s184 + $0x10] sm:$0xf]
      %v395 = vld [vmem:[%s184 + $0x14] sm:$0xf]
      %v396 = vld [vmem:[%s184 + $0x18] sm:$0xf]
      %v397 = vld [vmem:[%s184 + $0x1c] sm:$0xf]
      %v398 = vld [vmem:[%s184 + $0x20] sm:$0xf]
      %v399 = vld [vmem:[%s184 + $0x24] sm:$0xf]
      %v400 = vld [vmem:[%s184 + $0x28] sm:$0xf]
      %v401 = vld [vmem:[%s184 + $0x2c] sm:$0xf]
      %v402 = vld [vmem:[%s184 + $0x30] sm:$0xf]
      %v403 = vld [vmem:[%s184 + $0x34] sm:$0xf]
      %v404 = vld [vmem:[%s184 + $0x38] sm:$0xf]
      %v405 = vld [vmem:[%s184 + $0x3c] sm:$0xf]
      %v470 = vunpack.c.l.b16 %v326
      %v471 = vunpack.c.l.b16 %v327
      %v472 = vunpack.c.l.b16 %v328
      %v473 = vunpack.c.l.b16 %v329
      %v474 = vunpack.c.l.b16 %v330
      %v475 = vunpack.c.l.b16 %v331
      %v476 = vunpack.c.l.b16 %v332
      %v477 = vunpack.c.l.b16 %v333
      %v478 = vunpack.c.l.b16 %v334
      %v479 = vunpack.c.l.b16 %v335
      %v480 = vunpack.c.l.b16 %v336
      %v481 = vunpack.c.l.b16 %v337
      %v482 = vunpack.c.l.b16 %v338
      %v483 = vunpack.c.l.b16 %v339
      %v484 = vunpack.c.l.b16 %v340
      %v485 = vunpack.c.l.b16 %v341
      %v486 = vunpack.c.l.b16 %v342
      %v487 = vunpack.c.l.b16 %v343
      %v488 = vunpack.c.l.b16 %v344
      %v489 = vunpack.c.l.b16 %v345
      %v490 = vunpack.c.l.b16 %v346
      %v491 = vunpack.c.l.b16 %v347
      %v492 = vunpack.c.l.b16 %v348
      %v493 = vunpack.c.l.b16 %v349
      %v494 = vunpack.c.l.b16 %v350
      %v495 = vunpack.c.l.b16 %v351
      %v496 = vunpack.c.l.b16 %v352
      %v497 = vunpack.c.l.b16 %v353
      %v498 = vunpack.c.l.b16 %v354
      %v499 = vunpack.c.l.b16 %v355
      %v500 = vunpack.c.l.b16 %v356
      %v501 = vunpack.c.l.b16 %v357
      %v502 = vunpack.c.l.b16 %v358
      %v503 = vunpack.c.l.b16 %v359
      %v504 = vunpack.c.l.b16 %v360
      %v505 = vunpack.c.l.b16 %v361
      %v506 = vunpack.c.l.b16 %v362
      %v507 = vunpack.c.l.b16 %v363
      %v508 = vunpack.c.l.b16 %v364
      %v509 = vunpack.c.l.b16 %v365
      %v510 = vunpack.c.l.b16 %v366
      %v511 = vunpack.c.l.b16 %v367
      %v512 = vunpack.c.l.b16 %v368
      %v513 = vunpack.c.l.b16 %v369
      %v514 = vunpack.c.l.b16 %v370
      %v515 = vunpack.c.l.b16 %v371
      %v516 = vunpack.c.l.b16 %v372
      %v517 = vunpack.c.l.b16 %v373
      %v518 = vunpack.c.l.b16 %v374
      %v519 = vunpack.c.l.b16 %v375
      %v520 = vunpack.c.l.b16 %v376
      %v521 = vunpack.c.l.b16 %v377
      %v522 = vunpack.c.l.b16 %v378
      %v523 = vunpack.c.l.b16 %v379
      %v524 = vunpack.c.l.b16 %v380
      %v525 = vunpack.c.l.b16 %v381
      %v526 = vunpack.c.l.b16 %v382
      %v527 = vunpack.c.l.b16 %v383
      %v528 = vunpack.c.l.b16 %v384
      %v529 = vunpack.c.l.b16 %v385
      %v530 = vunpack.c.l.b16 %v386
      %v531 = vunpack.c.l.b16 %v387
      %v532 = vunpack.c.l.b16 %v388
      %v533 = vunpack.c.l.b16 %v389
      %v534 = vpack.c.b16 %v471, %v470
      %v535 = vpack.c.b16 %v473, %v472
      %v536 = vpack.c.b16 %v475, %v474
      %v537 = vpack.c.b16 %v477, %v476
      %v538 = vpack.c.b16 %v479, %v478
      %v539 = vpack.c.b16 %v481, %v480
      %v540 = vpack.c.b16 %v483, %v482
      %v541 = vpack.c.b16 %v485, %v484
      %v542 = vpack.c.b16 %v487, %v486
      %v543 = vpack.c.b16 %v489, %v488
      %v544 = vpack.c.b16 %v491, %v490
      %v545 = vpack.c.b16 %v493, %v492
      %v546 = vpack.c.b16 %v495, %v494
      %v547 = vpack.c.b16 %v497, %v496
      %v548 = vpack.c.b16 %v499, %v498
      %v549 = vpack.c.b16 %v501, %v500
      %v550 = vpack.c.b16 %v503, %v502
      %v551 = vpack.c.b16 %v505, %v504
      %v552 = vpack.c.b16 %v507, %v506
      %v553 = vpack.c.b16 %v509, %v508
      %v554 = vpack.c.b16 %v511, %v510
      %v555 = vpack.c.b16 %v513, %v512
      %v556 = vpack.c.b16 %v515, %v514
      %v557 = vpack.c.b16 %v517, %v516
      %v558 = vpack.c.b16 %v519, %v518
      %v559 = vpack.c.b16 %v521, %v520
      %v560 = vpack.c.b16 %v523, %v522
      %v561 = vpack.c.b16 %v525, %v524
      %v562 = vpack.c.b16 %v527, %v526
      %v563 = vpack.c.b16 %v529, %v528
      %v564 = vpack.c.b16 %v531, %v530
      %v565 = vpack.c.b16 %v533, %v532
      %v614 = vunpack.c.l.b16 %v390
      %v615 = vunpack.c.l.b16 %v391
      %v616 = vunpack.c.l.b16 %v392
      %v617 = vunpack.c.l.b16 %v393
      %v618 = vunpack.c.l.b16 %v394
      %v619 = vunpack.c.l.b16 %v395
      %v620 = vunpack.c.l.b16 %v396
      %v621 = vunpack.c.l.b16 %v397
      %v622 = vunpack.c.l.b16 %v398
      %v623 = vunpack.c.l.b16 %v399
      %v624 = vunpack.c.l.b16 %v400
      %v625 = vunpack.c.l.b16 %v401
      %v626 = vunpack.c.l.b16 %v402
      %v627 = vunpack.c.l.b16 %v403
      %v628 = vunpack.c.l.b16 %v404
      %v629 = vunpack.c.l.b16 %v405
      %v630 = vpack.c.b16 %v615, %v614
      %v631 = vpack.c.b16 %v617, %v616
      %v632 = vpack.c.b16 %v619, %v618
      %v633 = vpack.c.b16 %v621, %v620
      %v634 = vpack.c.b16 %v623, %v622
      %v635 = vpack.c.b16 %v625, %v624
      %v636 = vpack.c.b16 %v627, %v626
      %v637 = vpack.c.b16 %v629, %v628
      %646 = vmatprep.subr.bf16.mxu0 0
      %647 = vmatpush1.bf16.msra.mxu0 %v630
      %648 = vmatprep.subr.bf16.mxu0 0
      %649 = vmatpush1.bf16.msra.mxu0 %v631
      %650 = vmatprep.subr.bf16.mxu0 0
      %651 = vmatpush1.bf16.msra.mxu0 %v632
      %652 = vmatprep.subr.bf16.mxu0 0
      %653 = vmatpush1.bf16.msra.mxu0 %v633
      %654 = vmatprep.subr.bf16.mxu0 0
      %655 = vmatpush1.bf16.msra.mxu0 %v634
      %656 = vmatprep.subr.bf16.mxu0 0
      %657 = vmatpush1.bf16.msra.mxu0 %v635
      %658 = vmatprep.subr.bf16.mxu0 0
      %659 = vmatpush1.bf16.msra.mxu0 %v636
      %660 = vmatprep.subr.bf16.mxu0 0
      %661 = vmatpush1.bf16.msra.mxu0 %v637
      %662 = vmatprep.subr.bf16.mxu0 0
      %663 = vmatpush1.bf16.msra.mxu0 0
      %664 = vmatprep.subr.bf16.mxu0 0
      %665 = vmatpush1.bf16.msra.mxu0 0
      %666 = vmatprep.subr.bf16.mxu0 0
      %667 = vmatpush1.bf16.msra.mxu0 0
      %668 = vmatprep.subr.bf16.mxu0 0
      %669 = vmatpush1.bf16.msra.mxu0 0
      %670 = vmatprep.subr.bf16.mxu0 0
      %671 = vmatpush1.bf16.msra.mxu0 0
      %672 = vmatprep.subr.bf16.mxu0 0
      %673 = vmatpush1.bf16.msra.mxu0 0
      %674 = vmatprep.subr.bf16.mxu0 0
      %675 = vmatpush1.bf16.msra.mxu0 0
      %676 = vmatprep.subr.bf16.mxu0 0
      %677 = vmatpush1.bf16.msra.mxu0 0
      %678 = vmatprep.mubr.bf16.mxu0 0
      %679 = vmatmul.mubr.bf16.gmra.mrb[0].mxu0 %v534
      %v680 = vpop.f32.mrb[0].mxu0
      %v681 = vadd.f32 0.0, %v680
      %v682 = vpop.f32.mrb[0].mxu0
      %v683 = vpop.f32.mrb[0].mxu0
      %v684 = vadd.f32 0.0, %v683
      %v685 = vpop.f32.mrb[0].mxu0
      %686 = vmatprep.mubr.bf16.mxu0 0
      %687 = vmatmul.mubr.bf16.gmra.mrb[0].mxu0 %v535
      %v688 = vpop.f32.mrb[0].mxu0
      %v689 = vadd.f32 0.0, %v688
      %v690 = vpop.f32.mrb[0].mxu0
      %v691 = vpop.f32.mrb[0].mxu0
      %v692 = vadd.f32 0.0, %v691
      %v693 = vpop.f32.mrb[0].mxu0
      %694 = vmatprep.mubr.bf16.mxu0 0
      %695 = vmatmul.mubr.bf16.gmra.mrb[0].mxu0 %v536
      %v696 = vpop.f32.mrb[0].mxu0
      %v697 = vadd.f32 0.0, %v696
      %v698 = vpop.f32.mrb[0].mxu0
      %v699 = vpop.f32.mrb[0].mxu0
      %v700 = vadd.f32 0.0, %v699
      %v701 = vpop.f32.mrb[0].mxu0
      %702 = vmatprep.mubr.bf16.mxu0 0
      %703 = vmatmul.mubr.bf16.gmra.mrb[0].mxu0 %v537
      %v704 = vpop.f32.mrb[0].mxu0
      %v705 = vadd.f32 0.0, %v704
      %v706 = vpop.f32.mrb[0].mxu0
      %v707 = vpop.f32.mrb[0].mxu0
      %v708 = vadd.f32 0.0, %v707
      %v709 = vpop.f32.mrb[0].mxu0
      %710 = vmatprep.mubr.bf16.mxu0 0
      %711 = vmatmul.mubr.bf16.gmra.mrb[0].mxu0 %v538
      %v712 = vpop.f32.mrb[0].mxu0
      %v713 = vadd.f32 0.0, %v712
      %v714 = vpop.f32.mrb[0].mxu0
      %v715 = vpop.f32.mrb[0].mxu0
      %v716 = vadd.f32 0.0, %v715
      %v717 = vpop.f32.mrb[0].mxu0
      %718 = vmatprep.mubr.bf16.mxu0 0
      %719 = vmatmul.mubr.bf16.gmra.mrb[0].mxu0 %v539
      %v720 = vpop.f32.mrb[0].mxu0
      %v721 = vadd.f32 0.0, %v720
      %v722 = vpop.f32.mrb[0].mxu0
      %v723 = vpop.f32.mrb[0].mxu0
      %v724 = vadd.f32 0.0, %v723
      %v725 = vpop.f32.mrb[0].mxu0
      %726 = vmatprep.mubr.bf16.mxu0 0
      %727 = vmatmul.mubr.bf16.gmra.mrb[0].mxu0 %v540
      %v728 = vpop.f32.mrb[0].mxu0
      %v729 = vadd.f32 0.0, %v728
      %v730 = vpop.f32.mrb[0].mxu0
      %v731 = vpop.f32.mrb[0].mxu0
      %v732 = vadd.f32 0.0, %v731
      %v733 = vpop.f32.mrb[0].mxu0
      %734 = vmatprep.mubr.bf16.mxu0 0
      %735 = vmatmul.mubr.bf16.gmra.mrb[0].mxu0 %v541
      %v736 = vpop.f32.mrb[0].mxu0
      %v737 = vadd.f32 0.0, %v736
      %v738 = vpop.f32.mrb[0].mxu0
      %v739 = vpop.f32.mrb[0].mxu0
      %v740 = vadd.f32 0.0, %v739
      %v741 = vpop.f32.mrb[0].mxu0
      %742 = vmatprep.mubr.bf16.mxu0 0
      %743 = vmatmul.mubr.bf16.gmra.mrb[0].mxu0 %v542
      %v744 = vpop.f32.mrb[0].mxu0
      %v745 = vadd.f32 0.0, %v744
      %v746 = vpop.f32.mrb[0].mxu0
      %v747 = vpop.f32.mrb[0].mxu0
      %v748 = vadd.f32 0.0, %v747
      %v749 = vpop.f32.mrb[0].mxu0
      %750 = vmatprep.mubr.bf16.mxu0 0
      %751 = vmatmul.mubr.bf16.gmra.mrb[0].mxu0 %v543
      %v752 = vpop.f32.mrb[0].mxu0
      %v753 = vadd.f32 0.0, %v752
      %v754 = vpop.f32.mrb[0].mxu0
      %v755 = vpop.f32.mrb[0].mxu0
      %v756 = vadd.f32 0.0, %v755
      %v757 = vpop.f32.mrb[0].mxu0
      %758 = vmatprep.mubr.bf16.mxu0 0
      %759 = vmatmul.mubr.bf16.gmra.mrb[0].mxu0 %v544
      %v760 = vpop.f32.mrb[0].mxu0
      %v761 = vadd.f32 0.0, %v760
      %v762 = vpop.f32.mrb[0].mxu0
      %v763 = vpop.f32.mrb[0].mxu0
      %v764 = vadd.f32 0.0, %v763
      %v765 = vpop.f32.mrb[0].mxu0
      %766 = vmatprep.mubr.bf16.mxu0 0
      %767 = vmatmul.mubr.bf16.gmra.mrb[0].mxu0 %v545
      %v768 = vpop.f32.mrb[0].mxu0
      %v769 = vadd.f32 0.0, %v768
      %v770 = vpop.f32.mrb[0].mxu0
      %v771 = vpop.f32.mrb[0].mxu0
      %v772 = vadd.f32 0.0, %v771
      %v773 = vpop.f32.mrb[0].mxu0
      %774 = vmatprep.mubr.bf16.mxu0 0
      %775 = vmatmul.mubr.bf16.gmra.mrb[0].mxu0 %v546
      %v776 = vpop.f32.mrb[0].mxu0
      %v777 = vadd.f32 0.0, %v776
      %v778 = vpop.f32.mrb[0].mxu0
      %v779 = vpop.f32.mrb[0].mxu0
      %v780 = vadd.f32 0.0, %v779
      %v781 = vpop.f32.mrb[0].mxu0
      %782 = vmatprep.mubr.bf16.mxu0 0
      %783 = vmatmul.mubr.bf16.gmra.mrb[0].mxu0 %v547
      %v784 = vpop.f32.mrb[0].mxu0
      %v785 = vadd.f32 0.0, %v784
      %v786 = vpop.f32.mrb[0].mxu0
      %v787 = vpop.f32.mrb[0].mxu0
      %v788 = vadd.f32 0.0, %v787
      %v789 = vpop.f32.mrb[0].mxu0
      %790 = vmatprep.mubr.bf16.mxu0 0
      %791 = vmatmul.mubr.bf16.gmra.mrb[0].mxu0 %v548
      %v792 = vpop.f32.mrb[0].mxu0
      %v793 = vadd.f32 0.0, %v792
      %v794 = vpop.f32.mrb[0].mxu0
      %v795 = vpop.f32.mrb[0].mxu0
      %v796 = vadd.f32 0.0, %v795
      %v797 = vpop.f32.mrb[0].mxu0
      %798 = vmatprep.mubr.bf16.mxu0 0
      %799 = vmatmul.mubr.bf16.gmra.mrb[0].mxu0 %v549
      %v800 = vpop.f32.mrb[0].mxu0
      %v801 = vadd.f32 0.0, %v800
      %v802 = vpop.f32.mrb[0].mxu0
      %v803 = vpop.f32.mrb[0].mxu0
      %v804 = vadd.f32 0.0, %v803
      %v805 = vpop.f32.mrb[0].mxu0
      %806 = vmatprep.mubr.bf16.mxu0 0
      %807 = vmatmul.mubr.bf16.gmra.mrb[0].mxu0 %v550
      %v808 = vpop.f32.mrb[0].mxu0
      %v809 = vadd.f32 0.0, %v808
      %v810 = vpop.f32.mrb[0].mxu0
      %v811 = vpop.f32.mrb[0].mxu0
      %v812 = vadd.f32 0.0, %v811
      %v813 = vpop.f32.mrb[0].mxu0
      %814 = vmatprep.mubr.bf16.mxu0 0
      %815 = vmatmul.mubr.bf16.gmra.mrb[0].mxu0 %v551
      %v816 = vpop.f32.mrb[0].mxu0
      %v817 = vadd.f32 0.0, %v816
      %v818 = vpop.f32.mrb[0].mxu0
      %v819 = vpop.f32.mrb[0].mxu0
      %v820 = vadd.f32 0.0, %v819
      %v821 = vpop.f32.mrb[0].mxu0
      %822 = vmatprep.mubr.bf16.mxu0 0
      %823 = vmatmul.mubr.bf16.gmra.mrb[0].mxu0 %v552
      %v824 = vpop.f32.mrb[0].mxu0
      %v825 = vadd.f32 0.0, %v824
      %v826 = vpop.f32.mrb[0].mxu0
      %v827 = vpop.f32.mrb[0].mxu0
      %v828 = vadd.f32 0.0, %v827
      %v829 = vpop.f32.mrb[0].mxu0
      %830 = vmatprep.mubr.bf16.mxu0 0
      %831 = vmatmul.mubr.bf16.gmra.mrb[0].mxu0 %v553
      %v832 = vpop.f32.mrb[0].mxu0
      %v833 = vadd.f32 0.0, %v832
      %v834 = vpop.f32.mrb[0].mxu0
      %v835 = vpop.f32.mrb[0].mxu0
      %v836 = vadd.f32 0.0, %v835
      %v837 = vpop.f32.mrb[0].mxu0
      %838 = vmatprep.mubr.bf16.mxu0 0
      %839 = vmatmul.mubr.bf16.gmra.mrb[0].mxu0 %v554
      %v840 = vpop.f32.mrb[0].mxu0
      %v841 = vadd.f32 0.0, %v840
      %v842 = vpop.f32.mrb[0].mxu0
      %v843 = vpop.f32.mrb[0].mxu0
      %v844 = vadd.f32 0.0, %v843
      %v845 = vpop.f32.mrb[0].mxu0
      %846 = vmatprep.mubr.bf16.mxu0 0
      %847 = vmatmul.mubr.bf16.gmra.mrb[0].mxu0 %v555
      %v848 = vpop.f32.mrb[0].mxu0
      %v849 = vadd.f32 0.0, %v848
      %v850 = vpop.f32.mrb[0].mxu0
      %v851 = vpop.f32.mrb[0].mxu0
      %v852 = vadd.f32 0.0, %v851
      %v853 = vpop.f32.mrb[0].mxu0
      %854 = vmatprep.mubr.bf16.mxu0 0
      %855 = vmatmul.mubr.bf16.gmra.mrb[0].mxu0 %v556
      %v856 = vpop.f32.mrb[0].mxu0
      %v857 = vadd.f32 0.0, %v856
      %v858 = vpop.f32.mrb[0].mxu0
      %v859 = vpop.f32.mrb[0].mxu0
      %v860 = vadd.f32 0.0, %v859
      %v861 = vpop.f32.mrb[0].mxu0
      %862 = vmatprep.mubr.bf16.mxu0 0
      %863 = vmatmul.mubr.bf16.gmra.mrb[0].mxu0 %v557
      %v864 = vpop.f32.mrb[0].mxu0
      %v865 = vadd.f32 0.0, %v864
      %v866 = vpop.f32.mrb[0].mxu0
      %v867 = vpop.f32.mrb[0].mxu0
      %v868 = vadd.f32 0.0, %v867
      %v869 = vpop.f32.mrb[0].mxu0
      %870 = vmatprep.mubr.bf16.mxu0 0
      %871 = vmatmul.mubr.bf16.gmra.mrb[0].mxu0 %v558
      %v872 = vpop.f32.mrb[0].mxu0
      %v873 = vadd.f32 0.0, %v872
      %v874 = vpop.f32.mrb[0].mxu0
      %v875 = vpop.f32.mrb[0].mxu0
      %v876 = vadd.f32 0.0, %v875
      %v877 = vpop.f32.mrb[0].mxu0
      %878 = vmatprep.mubr.bf16.mxu0 0
      %879 = vmatmul.mubr.bf16.gmra.mrb[0].mxu0 %v559
      %v880 = vpop.f32.mrb[0].mxu0
      %v881 = vadd.f32 0.0, %v880
      %v882 = vpop.f32.mrb[0].mxu0
      %v883 = vpop.f32.mrb[0].mxu0
      %v884 = vadd.f32 0.0, %v883
      %v885 = vpop.f32.mrb[0].mxu0
      %886 = vmatprep.mubr.bf16.mxu0 0
      %887 = vmatmul.mubr.bf16.gmra.mrb[0].mxu0 %v560
      %v888 = vpop.f32.mrb[0].mxu0
      %v889 = vadd.f32 0.0, %v888
      %v890 = vpop.f32.mrb[0].mxu0
      %v891 = vpop.f32.mrb[0].mxu0
      %v892 = vadd.f32 0.0, %v891
      %v893 = vpop.f32.mrb[0].mxu0
      %894 = vmatprep.mubr.bf16.mxu0 0
      %895 = vmatmul.mubr.bf16.gmra.mrb[0].mxu0 %v561
      %v896 = vpop.f32.mrb[0].mxu0
      %v897 = vadd.f32 0.0, %v896
      %v898 = vpop.f32.mrb[0].mxu0
      %v899 = vpop.f32.mrb[0].mxu0
      %v900 = vadd.f32 0.0, %v899
      %v901 = vpop.f32.mrb[0].mxu0
      %902 = vmatprep.mubr.bf16.mxu0 0
      %903 = vmatmul.mubr.bf16.gmra.mrb[0].mxu0 %v562
      %v904 = vpop.f32.mrb[0].mxu0
      %v905 = vadd.f32 0.0, %v904
      %v906 = vpop.f32.mrb[0].mxu0
      %v907 = vpop.f32.mrb[0].mxu0
      %v908 = vadd.f32 0.0, %v907
      %v909 = vpop.f32.mrb[0].mxu0
      %910 = vmatprep.mubr.bf16.mxu0 0
      %911 = vmatmul.mubr.bf16.gmra.mrb[0].mxu0 %v563
      %v912 = vpop.f32.mrb[0].mxu0
      %v913 = vadd.f32 0.0, %v912
      %v914 = vpop.f32.mrb[0].mxu0
      %v915 = vpop.f32.mrb[0].mxu0
      %v916 = vadd.f32 0.0, %v915
      %v917 = vpop.f32.mrb[0].mxu0
      %918 = vmatprep.mubr.bf16.mxu0 0
      %919 = vmatmul.mubr.bf16.gmra.mrb[0].mxu0 %v564
      %v920 = vpop.f32.mrb[0].mxu0
      %v921 = vadd.f32 0.0, %v920
      %v922 = vpop.f32.mrb[0].mxu0
      %v923 = vpop.f32.mrb[0].mxu0
      %v924 = vadd.f32 0.0, %v923
      %v925 = vpop.f32.mrb[0].mxu0
      %926 = vmatprep.mubr.bf16.mxu0 0
      %927 = vmatmul.mubr.bf16.gmra.mrb[0].mxu0 %v565
      %v928 = vpop.f32.mrb[0].mxu0
      %v929 = vadd.f32 0.0, %v928
      %v930 = vpop.f32.mrb[0].mxu0
      %v931 = vpop.f32.mrb[0].mxu0
      %v932 = vadd.f32 0.0, %v931
      %v933 = vpop.f32.mrb[0].mxu0
      %934 = vdwg.mxu0
      %v935 = vadd.f32 %v262, %v681
      %v936 = vadd.f32 %v263, %v684
      %v937 = vadd.f32 %v264, %v689
      %v938 = vadd.f32 %v265, %v692
      %v939 = vadd.f32 %v266, %v697
      %v940 = vadd.f32 %v267, %v700
      %v941 = vadd.f32 %v268, %v705
      %v942 = vadd.f32 %v269, %v708
      %v943 = vadd.f32 %v270, %v713
      %v944 = vadd.f32 %v271, %v716
      %v945 = vadd.f32 %v272, %v721
      %v946 = vadd.f32 %v273, %v724
      %v947 = vadd.f32 %v274, %v729
      %v948 = vadd.f32 %v275, %v732
      %v949 = vadd.f32 %v276, %v737
      %v950 = vadd.f32 %v277, %v740
      %v951 = vadd.f32 %v278, %v745
      %v952 = vadd.f32 %v279, %v748
      %v953 = vadd.f32 %v280, %v753
      %v954 = vadd.f32 %v281, %v756
      %v955 = vadd.f32 %v282, %v761
      %v956 = vadd.f32 %v283, %v764
      %v957 = vadd.f32 %v284, %v769
      %v958 = vadd.f32 %v285, %v772
      %v959 = vadd.f32 %v286, %v777
      %v960 = vadd.f32 %v287, %v780
      %v961 = vadd.f32 %v288, %v785
      %v962 = vadd.f32 %v289, %v788
      %v963 = vadd.f32 %v290, %v793
      %v964 = vadd.f32 %v291, %v796
      %v965 = vadd.f32 %v292, %v801
      %v966 = vadd.f32 %v293, %v804
      %v967 = vadd.f32 %v294, %v809
      %v968 = vadd.f32 %v295, %v812
      %v969 = vadd.f32 %v296, %v817
      %v970 = vadd.f32 %v297, %v820
      %v971 = vadd.f32 %v298, %v825
      %v972 = vadd.f32 %v299, %v828
      %v973 = vadd.f32 %v300, %v833
      %v974 = vadd.f32 %v301, %v836
      %v975 = vadd.f32 %v302, %v841
      %v976 = vadd.f32 %v303, %v844
      %v977 = vadd.f32 %v304, %v849
      %v978 = vadd.f32 %v305, %v852
      %v979 = vadd.f32 %v306, %v857
      %v980 = vadd.f32 %v307, %v860
      %v981 = vadd.f32 %v308, %v865
      %v982 = vadd.f32 %v309, %v868
      %v983 = vadd.f32 %v310, %v873
      %v984 = vadd.f32 %v311, %v876
      %v985 = vadd.f32 %v312, %v881
      %v986 = vadd.f32 %v313, %v884
      %v987 = vadd.f32 %v314, %v889
      %v988 = vadd.f32 %v315, %v892
      %v989 = vadd.f32 %v316, %v897
      %v990 = vadd.f32 %v317, %v900
      %v991 = vadd.f32 %v318, %v905
      %v992 = vadd.f32 %v319, %v908
      %v993 = vadd.f32 %v320, %v913
      %v994 = vadd.f32 %v321, %v916
      %v995 = vadd.f32 %v322, %v921
      %v996 = vadd.f32 %v323, %v924
      %v997 = vadd.f32 %v324, %v929
      %v998 = vadd.f32 %v325, %v932
      %vm999 = vcmask 64512
      %1000 = vst.msk [vmem:[#allocation2] sm:$0xff] %vm999, %v935
      %1001 = vst.msk [vmem:[#allocation2 + $0x8] sm:$0xff] %vm999, %v936
      %1002 = vst.msk [vmem:[#allocation2 + $0x10] sm:$0xff] %vm999, %v937
      %1003 = vst.msk [vmem:[#allocation2 + $0x18] sm:$0xff] %vm999, %v938
      %1004 = vst.msk [vmem:[#allocation2 + $0x20] sm:$0xff] %vm999, %v939
      %1005 = vst.msk [vmem:[#allocation2 + $0x28] sm:$0xff] %vm999, %v940
      %1006 = vst.msk [vmem:[#allocation2 + $0x30] sm:$0xff] %vm999, %v941
      %1007 = vst.msk [vmem:[#allocation2 + $0x38] sm:$0xff] %vm999, %v942
      %1008 = vst.msk [vmem:[#allocation2 + $0x40] sm:$0xff] %vm999, %v943
      %1009 = vst.msk [vmem:[#allocation2 + $0x48] sm:$0xff] %vm999, %v944
      %1010 = vst.msk [vmem:[#allocation2 + $0x50] sm:$0xff] %vm999, %v945
      %1011 = vst.msk [vmem:[#allocation2 + $0x58] sm:$0xff] %vm999, %v946
      %1012 = vst.msk [vmem:[#allocation2 + $0x60] sm:$0xff] %vm999, %v947
      %1013 = vst.msk [vmem:[#allocation2 + $0x68] sm:$0xff] %vm999, %v948
      %1014 = vst.msk [vmem:[#allocation2 + $0x70] sm:$0xff] %vm999, %v949
      %1015 = vst.msk [vmem:[#allocation2 + $0x78] sm:$0xff] %vm999, %v950
      %1016 = vst.msk [vmem:[#allocation2 + $0x80] sm:$0xff] %vm999, %v951
      %1017 = vst.msk [vmem:[#allocation2 + $0x88] sm:$0xff] %vm999, %v952
      %1018 = vst.msk [vmem:[#allocation2 + $0x90] sm:$0xff] %vm999, %v953
      %1019 = vst.msk [vmem:[#allocation2 + $0x98] sm:$0xff] %vm999, %v954
      %1020 = vst.msk [vmem:[#allocation2 + $0xa0] sm:$0xff] %vm999, %v955
      %1021 = vst.msk [vmem:[#allocation2 + $0xa8] sm:$0xff] %vm999, %v956
      %1022 = vst.msk [vmem:[#allocation2 + $0xb0] sm:$0xff] %vm999, %v957
      %1023 = vst.msk [vmem:[#allocation2 + $0xb8] sm:$0xff] %vm999, %v958
      %1024 = vst.msk [vmem:[#allocation2 + $0xc0] sm:$0xff] %vm999, %v959
      %1025 = vst.msk [vmem:[#allocation2 + $0xc8] sm:$0xff] %vm999, %v960
      %1026 = vst.msk [vmem:[#allocation2 + $0xd0] sm:$0xff] %vm999, %v961
      %1027 = vst.msk [vmem:[#allocation2 + $0xd8] sm:$0xff] %vm999, %v962
      %1028 = vst.msk [vmem:[#allocation2 + $0xe0] sm:$0xff] %vm999, %v963
      %1029 = vst.msk [vmem:[#allocation2 + $0xe8] sm:$0xff] %vm999, %v964
      %1030 = vst.msk [vmem:[#allocation2 + $0xf0] sm:$0xff] %vm999, %v965
      %1031 = vst.msk [vmem:[#allocation2 + $0xf8] sm:$0xff] %vm999, %v966
      %1032 = vst.msk [vmem:[#allocation2 + $0x100] sm:$0xff] %vm999, %v967
      %1033 = vst.msk [vmem:[#allocation2 + $0x108] sm:$0xff] %vm999, %v968
      %1034 = vst.msk [vmem:[#allocation2 + $0x110] sm:$0xff] %vm999, %v969
      %1035 = vst.msk [vmem:[#allocation2 + $0x118] sm:$0xff] %vm999, %v970
      %1036 = vst.msk [vmem:[#allocation2 + $0x120] sm:$0xff] %vm999, %v971
      %1037 = vst.msk [vmem:[#allocation2 + $0x128] sm:$0xff] %vm999, %v972
      %1038 = vst.msk [vmem:[#allocation2 + $0x130] sm:$0xff] %vm999, %v973
      %1039 = vst.msk [vmem:[#allocation2 + $0x138] sm:$0xff] %vm999, %v974
      %1040 = vst.msk [vmem:[#allocation2 + $0x140] sm:$0xff] %vm999, %v975
      %1041 = vst.msk [vmem:[#allocation2 + $0x148] sm:$0xff] %vm999, %v976
      %1042 = vst.msk [vmem:[#allocation2 + $0x150] sm:$0xff] %vm999, %v977
      %1043 = vst.msk [vmem:[#allocation2 + $0x158] sm:$0xff] %vm999, %v978
      %1044 = vst.msk [vmem:[#allocation2 + $0x160] sm:$0xff] %vm999, %v979
      %1045 = vst.msk [vmem:[#allocation2 + $0x168] sm:$0xff] %vm999, %v980
      %1046 = vst.msk [vmem:[#allocation2 + $0x170] sm:$0xff] %vm999, %v981
      %1047 = vst.msk [vmem:[#allocation2 + $0x178] sm:$0xff] %vm999, %v982
      %1048 = vst.msk [vmem:[#allocation2 + $0x180] sm:$0xff] %vm999, %v983
      %1049 = vst.msk [vmem:[#allocation2 + $0x188] sm:$0xff] %vm999, %v984
      %1050 = vst.msk [vmem:[#allocation2 + $0x190] sm:$0xff] %vm999, %v985
      %1051 = vst.msk [vmem:[#allocation2 + $0x198] sm:$0xff] %vm999, %v986
      %1052 = vst.msk [vmem:[#allocation2 + $0x1a0] sm:$0xff] %vm999, %v987
      %1053 = vst.msk [vmem:[#allocation2 + $0x1a8] sm:$0xff] %vm999, %v988
      %1054 = vst.msk [vmem:[#allocation2 + $0x1b0] sm:$0xff] %vm999, %v989
      %1055 = vst.msk [vmem:[#allocation2 + $0x1b8] sm:$0xff] %vm999, %v990
      %1056 = vst.msk [vmem:[#allocation2 + $0x1c0] sm:$0xff] %vm999, %v991
      %1057 = vst.msk [vmem:[#allocation2 + $0x1c8] sm:$0xff] %vm999, %v992
      %1058 = vst.msk [vmem:[#allocation2 + $0x1d0] sm:$0xff] %vm999, %v993
      %1059 = vst.msk [vmem:[#allocation2 + $0x1d8] sm:$0xff] %vm999, %v994
      %1060 = vst.msk [vmem:[#allocation2 + $0x1e0] sm:$0xff] %vm999, %v995
      %1061 = vst.msk [vmem:[#allocation2 + $0x1e8] sm:$0xff] %vm999, %v996
      %1062 = vst.msk [vmem:[#allocation2 + $0x1f0] sm:$0xff] %vm999, %v997
      %1063 = vst.msk [vmem:[#allocation2 + $0x1f8] sm:$0xff] %vm999, %v998
      // Predicated region
      $region33: #{critic_forward.4} parent=27 // pred_check
        %p1064 = pneg %p193
      $region34: #{critic_forward.4} parent=27 // pred_check_branch
        %1066 = sbr.rel (%p1064) target = $region36
      $region35: #{critic_forward.4} parent=27 // pred_region
        %v1067 = vld [vmem:[#allocation2] sm:$0xff]
        %v1068 = vld [vmem:[#allocation2 + $0x8] sm:$0xff]
        %v1069 = vld [vmem:[#allocation2 + $0x10] sm:$0xff]
        %v1070 = vld [vmem:[#allocation2 + $0x18] sm:$0xff]
        %v1071 = vld [vmem:[#allocation2 + $0x20] sm:$0xff]
        %v1072 = vld [vmem:[#allocation2 + $0x28] sm:$0xff]
        %v1073 = vld [vmem:[#allocation2 + $0x30] sm:$0xff]
        %v1074 = vld [vmem:[#allocation2 + $0x38] sm:$0xff]
        %v1075 = vld [vmem:[#allocation2 + $0x40] sm:$0xff]
        %v1076 = vld [vmem:[#allocation2 + $0x48] sm:$0xff]
        %v1077 = vld [vmem:[#allocation2 + $0x50] sm:$0xff]
        %v1078 = vld [vmem:[#allocation2 + $0x58] sm:$0xff]
        %v1079 = vld [vmem:[#allocation2 + $0x60] sm:$0xff]
        %v1080 = vld [vmem:[#allocation2 + $0x68] sm:$0xff]
        %v1081 = vld [vmem:[#allocation2 + $0x70] sm:$0xff]
        %v1082 = vld [vmem:[#allocation2 + $0x78] sm:$0xff]
        %v1083 = vld [vmem:[#allocation2 + $0x80] sm:$0xff]
        %v1084 = vld [vmem:[#allocation2 + $0x88] sm:$0xff]
        %v1085 = vld [vmem:[#allocation2 + $0x90] sm:$0xff]
        %v1086 = vld [vmem:[#allocation2 + $0x98] sm:$0xff]
        %v1087 = vld [vmem:[#allocation2 + $0xa0] sm:$0xff]
        %v1088 = vld [vmem:[#allocation2 + $0xa8] sm:$0xff]
        %v1089 = vld [vmem:[#allocation2 + $0xb0] sm:$0xff]
        %v1090 = vld [vmem:[#allocation2 + $0xb8] sm:$0xff]
        %v1091 = vld [vmem:[#allocation2 + $0xc0] sm:$0xff]
        %v1092 = vld [vmem:[#allocation2 + $0xc8] sm:$0xff]
        %v1093 = vld [vmem:[#allocation2 + $0xd0] sm:$0xff]
        %v1094 = vld [vmem:[#allocation2 + $0xd8] sm:$0xff]
        %v1095 = vld [vmem:[#allocation2 + $0xe0] sm:$0xff]
        %v1096 = vld [vmem:[#allocation2 + $0xe8] sm:$0xff]
        %v1097 = vld [vmem:[#allocation2 + $0xf0] sm:$0xff]
        %v1098 = vld [vmem:[#allocation2 + $0xf8] sm:$0xff]
        %v1099 = vld [vmem:[#allocation2 + $0x100] sm:$0xff]
        %v1100 = vld [vmem:[#allocation2 + $0x108] sm:$0xff]
        %v1101 = vld [vmem:[#allocation2 + $0x110] sm:$0xff]
        %v1102 = vld [vmem:[#allocation2 + $0x118] sm:$0xff]
        %v1103 = vld [vmem:[#allocation2 + $0x120] sm:$0xff]
        %v1104 = vld [vmem:[#allocation2 + $0x128] sm:$0xff]
        %v1105 = vld [vmem:[#allocation2 + $0x130] sm:$0xff]
        %v1106 = vld [vmem:[#allocation2 + $0x138] sm:$0xff]
        %v1107 = vld [vmem:[#allocation2 + $0x140] sm:$0xff]
        %v1108 = vld [vmem:[#allocation2 + $0x148] sm:$0xff]
        %v1109 = vld [vmem:[#allocation2 + $0x150] sm:$0xff]
        %v1110 = vld [vmem:[#allocation2 + $0x158] sm:$0xff]
        %v1111 = vld [vmem:[#allocation2 + $0x160] sm:$0xff]
        %v1112 = vld [vmem:[#allocation2 + $0x168] sm:$0xff]
        %v1113 = vld [vmem:[#allocation2 + $0x170] sm:$0xff]
        %v1114 = vld [vmem:[#allocation2 + $0x178] sm:$0xff]
        %v1115 = vld [vmem:[#allocation2 + $0x180] sm:$0xff]
        %v1116 = vld [vmem:[#allocation2 + $0x188] sm:$0xff]
        %v1117 = vld [vmem:[#allocation2 + $0x190] sm:$0xff]
        %v1118 = vld [vmem:[#allocation2 + $0x198] sm:$0xff]
        %v1119 = vld [vmem:[#allocation2 + $0x1a0] sm:$0xff]
        %v1120 = vld [vmem:[#allocation2 + $0x1a8] sm:$0xff]
        %v1121 = vld [vmem:[#allocation2 + $0x1b0] sm:$0xff]
        %v1122 = vld [vmem:[#allocation2 + $0x1b8] sm:$0xff]
        %v1123 = vld [vmem:[#allocation2 + $0x1c0] sm:$0xff]
        %v1124 = vld [vmem:[#allocation2 + $0x1c8] sm:$0xff]
        %v1125 = vld [vmem:[#allocation2 + $0x1d0] sm:$0xff]
        %v1126 = vld [vmem:[#allocation2 + $0x1d8] sm:$0xff]
        %v1127 = vld [vmem:[#allocation2 + $0x1e0] sm:$0xff]
        %v1128 = vld [vmem:[#allocation2 + $0x1e8] sm:$0xff]
        %v1129 = vld [vmem:[#allocation2 + $0x1f0] sm:$0xff]
        %v1130 = vld [vmem:[#allocation2 + $0x1f8] sm:$0xff]
        %vm1131 = vcmp.ge.f32.partialorder %v1067, 0.0
        %vm1132 = vcmp.ge.f32.partialorder %v1068, 0.0
        %vm1133 = vcmp.ge.f32.partialorder %v1069, 0.0
        %vm1134 = vcmp.ge.f32.partialorder %v1070, 0.0
        %vm1135 = vcmp.ge.f32.partialorder %v1071, 0.0
        %vm1136 = vcmp.ge.f32.partialorder %v1072, 0.0
        %vm1137 = vcmp.ge.f32.partialorder %v1073, 0.0
        %vm1138 = vcmp.ge.f32.partialorder %v1074, 0.0
        %vm1139 = vcmp.ge.f32.partialorder %v1075, 0.0
        %vm1140 = vcmp.ge.f32.partialorder %v1076, 0.0
        %vm1141 = vcmp.ge.f32.partialorder %v1077, 0.0
        %vm1142 = vcmp.ge.f32.partialorder %v1078, 0.0
        %vm1143 = vcmp.ge.f32.partialorder %v1079, 0.0
        %vm1144 = vcmp.ge.f32.partialorder %v1080, 0.0
        %vm1145 = vcmp.ge.f32.partialorder %v1081, 0.0
        %vm1146 = vcmp.ge.f32.partialorder %v1082, 0.0
        %vm1147 = vcmp.ge.f32.partialorder %v1083, 0.0
        %vm1148 = vcmp.ge.f32.partialorder %v1084, 0.0
        %vm1149 = vcmp.ge.f32.partialorder %v1085, 0.0
        %vm1150 = vcmp.ge.f32.partialorder %v1086, 0.0
        %vm1151 = vcmp.ge.f32.partialorder %v1087, 0.0
        %vm1152 = vcmp.ge.f32.partialorder %v1088, 0.0
        %vm1153 = vcmp.ge.f32.partialorder %v1089, 0.0
        %vm1154 = vcmp.ge.f32.partialorder %v1090, 0.0
        %vm1155 = vcmp.ge.f32.partialorder %v1091, 0.0
        %vm1156 = vcmp.ge.f32.partialorder %v1092, 0.0
        %vm1157 = vcmp.ge.f32.partialorder %v1093, 0.0
        %vm1158 = vcmp.ge.f32.partialorder %v1094, 0.0
        %vm1159 = vcmp.ge.f32.partialorder %v1095, 0.0
        %vm1160 = vcmp.ge.f32.partialorder %v1096, 0.0
        %vm1161 = vcmp.ge.f32.partialorder %v1097, 0.0
        %vm1162 = vcmp.ge.f32.partialorder %v1098, 0.0
        %vm1163 = vcmp.ge.f32.partialorder %v1099, 0.0
        %vm1164 = vcmp.ge.f32.partialorder %v1100, 0.0
        %vm1165 = vcmp.ge.f32.partialorder %v1101, 0.0
        %vm1166 = vcmp.ge.f32.partialorder %v1102, 0.0
        %vm1167 = vcmp.ge.f32.partialorder %v1103, 0.0
        %vm1168 = vcmp.ge.f32.partialorder %v1104, 0.0
        %vm1169 = vcmp.ge.f32.partialorder %v1105, 0.0
        %vm1170 = vcmp.ge.f32.partialorder %v1106, 0.0
        %vm1171 = vcmp.ge.f32.partialorder %v1107, 0.0
        %vm1172 = vcmp.ge.f32.partialorder %v1108, 0.0
        %vm1173 = vcmp.ge.f32.partialorder %v1109, 0.0
        %vm1174 = vcmp.ge.f32.partialorder %v1110, 0.0
        %vm1175 = vcmp.ge.f32.partialorder %v1111, 0.0
        %vm1176 = vcmp.ge.f32.partialorder %v1112, 0.0
        %vm1177 = vcmp.ge.f32.partialorder %v1113, 0.0
        %vm1178 = vcmp.ge.f32.partialorder %v1114, 0.0
        %vm1179 = vcmp.ge.f32.partialorder %v1115, 0.0
        %vm1180 = vcmp.ge.f32.partialorder %v1116, 0.0
        %vm1181 = vcmp.ge.f32.partialorder %v1117, 0.0
        %vm1182 = vcmp.ge.f32.partialorder %v1118, 0.0
        %vm1183 = vcmp.ge.f32.partialorder %v1119, 0.0
        %vm1184 = vcmp.ge.f32.partialorder %v1120, 0.0
        %vm1185 = vcmp.ge.f32.partialorder %v1121, 0.0
        %vm1186 = vcmp.ge.f32.partialorder %v1122, 0.0
        %vm1187 = vcmp.ge.f32.partialorder %v1123, 0.0
        %vm1188 = vcmp.ge.f32.partialorder %v1124, 0.0
        %vm1189 = vcmp.ge.f32.partialorder %v1125, 0.0
        %vm1190 = vcmp.ge.f32.partialorder %v1126, 0.0
        %vm1191 = vcmp.ge.f32.partialorder %v1127, 0.0
        %vm1192 = vcmp.ge.f32.partialorder %v1128, 0.0
        %vm1193 = vcmp.ge.f32.partialorder %v1129, 0.0
        %vm1194 = vcmp.ge.f32.partialorder %v1130, 0.0
        %v1195 = vmul.f32 %v1067, 0.2
        %v1196 = vmul.f32 %v1068, 0.2
        %v1197 = vmul.f32 %v1069, 0.2
        %v1198 = vmul.f32 %v1070, 0.2
        %v1199 = vmul.f32 %v1071, 0.2
        %v1200 = vmul.f32 %v1072, 0.2
        %v1201 = vmul.f32 %v1073, 0.2
        %v1202 = vmul.f32 %v1074, 0.2
        %v1203 = vmul.f32 %v1075, 0.2
        %v1204 = vmul.f32 %v1076, 0.2
        %v1205 = vmul.f32 %v1077, 0.2
        %v1206 = vmul.f32 %v1078, 0.2
        %v1207 = vmul.f32 %v1079, 0.2
        %v1208 = vmul.f32 %v1080, 0.2
        %v1209 = vmul.f32 %v1081, 0.2
        %v1210 = vmul.f32 %v1082, 0.2
        %v1211 = vmul.f32 %v1083, 0.2
        %v1212 = vmul.f32 %v1084, 0.2
        %v1213 = vmul.f32 %v1085, 0.2
        %v1214 = vmul.f32 %v1086, 0.2
        %v1215 = vmul.f32 %v1087, 0.2
        %v1216 = vmul.f32 %v1088, 0.2
        %v1217 = vmul.f32 %v1089, 0.2
        %v1218 = vmul.f32 %v1090, 0.2
        %v1219 = vmul.f32 %v1091, 0.2
        %v1220 = vmul.f32 %v1092, 0.2
        %v1221 = vmul.f32 %v1093, 0.2
        %v1222 = vmul.f32 %v1094, 0.2
        %v1223 = vmul.f32 %v1095, 0.2
        %v1224 = vmul.f32 %v1096, 0.2
        %v1225 = vmul.f32 %v1097, 0.2
        %v1226 = vmul.f32 %v1098, 0.2
        %v1227 = vmul.f32 %v1099, 0.2
        %v1228 = vmul.f32 %v1100, 0.2
        %v1229 = vmul.f32 %v1101, 0.2
        %v1230 = vmul.f32 %v1102, 0.2
        %v1231 = vmul.f32 %v1103, 0.2
        %v1232 = vmul.f32 %v1104, 0.2
        %v1233 = vmul.f32 %v1105, 0.2
        %v1234 = vmul.f32 %v1106, 0.2
        %v1235 = vmul.f32 %v1107, 0.2
        %v1236 = vmul.f32 %v1108, 0.2
        %v1237 = vmul.f32 %v1109, 0.2
        %v1238 = vmul.f32 %v1110, 0.2
        %v1239 = vmul.f32 %v1111, 0.2
        %v1240 = vmul.f32 %v1112, 0.2
        %v1241 = vmul.f32 %v1113, 0.2
        %v1242 = vmul.f32 %v1114, 0.2
        %v1243 = vmul.f32 %v1115, 0.2
        %v1244 = vmul.f32 %v1116, 0.2
        %v1245 = vmul.f32 %v1117, 0.2
        %v1246 = vmul.f32 %v1118, 0.2
        %v1247 = vmul.f32 %v1119, 0.2
        %v1248 = vmul.f32 %v1120, 0.2
        %v1249 = vmul.f32 %v1121, 0.2
        %v1250 = vmul.f32 %v1122, 0.2
        %v1251 = vmul.f32 %v1123, 0.2
        %v1252 = vmul.f32 %v1124, 0.2
        %v1253 = vmul.f32 %v1125, 0.2
        %v1254 = vmul.f32 %v1126, 0.2
        %v1255 = vmul.f32 %v1127, 0.2
        %v1256 = vmul.f32 %v1128, 0.2
        %v1257 = vmul.f32 %v1129, 0.2
        %v1258 = vmul.f32 %v1130, 0.2
        %v1259 = vsel %vm1131, %v1067, %v1195
        %v1260 = vsel %vm1132, %v1068, %v1196
        %v1261 = vsel %vm1133, %v1069, %v1197
        %v1262 = vsel %vm1134, %v1070, %v1198
        %v1263 = vsel %vm1135, %v1071, %v1199
        %v1264 = vsel %vm1136, %v1072, %v1200
        %v1265 = vsel %vm1137, %v1073, %v1201
        %v1266 = vsel %vm1138, %v1074, %v1202
        %v1267 = vsel %vm1139, %v1075, %v1203
        %v1268 = vsel %vm1140, %v1076, %v1204
        %v1269 = vsel %vm1141, %v1077, %v1205
        %v1270 = vsel %vm1142, %v1078, %v1206
        %v1271 = vsel %vm1143, %v1079, %v1207
        %v1272 = vsel %vm1144, %v1080, %v1208
        %v1273 = vsel %vm1145, %v1081, %v1209
        %v1274 = vsel %vm1146, %v1082, %v1210
        %v1275 = vsel %vm1147, %v1083, %v1211
        %v1276 = vsel %vm1148, %v1084, %v1212
        %v1277 = vsel %vm1149, %v1085, %v1213
        %v1278 = vsel %vm1150, %v1086, %v1214
        %v1279 = vsel %vm1151, %v1087, %v1215
        %v1280 = vsel %vm1152, %v1088, %v1216
        %v1281 = vsel %vm1153, %v1089, %v1217
        %v1282 = vsel %vm1154, %v1090, %v1218
        %v1283 = vsel %vm1155, %v1091, %v1219
        %v1284 = vsel %vm1156, %v1092, %v1220
        %v1285 = vsel %vm1157, %v1093, %v1221
        %v1286 = vsel %vm1158, %v1094, %v1222
        %v1287 = vsel %vm1159, %v1095, %v1223
        %v1288 = vsel %vm1160, %v1096, %v1224
        %v1289 = vsel %vm1161, %v1097, %v1225
        %v1290 = vsel %vm1162, %v1098, %v1226
        %v1291 = vsel %vm1163, %v1099, %v1227
        %v1292 = vsel %vm1164, %v1100, %v1228
        %v1293 = vsel %vm1165, %v1101, %v1229
        %v1294 = vsel %vm1166, %v1102, %v1230
        %v1295 = vsel %vm1167, %v1103, %v1231
        %v1296 = vsel %vm1168, %v1104, %v1232
        %v1297 = vsel %vm1169, %v1105, %v1233
        %v1298 = vsel %vm1170, %v1106, %v1234
        %v1299 = vsel %vm1171, %v1107, %v1235
        %v1300 = vsel %vm1172, %v1108, %v1236
        %v1301 = vsel %vm1173, %v1109, %v1237
        %v1302 = vsel %vm1174, %v1110, %v1238
        %v1303 = vsel %vm1175, %v1111, %v1239
        %v1304 = vsel %vm1176, %v1112, %v1240
        %v1305 = vsel %vm1177, %v1113, %v1241
        %v1306 = vsel %vm1178, %v1114, %v1242
        %v1307 = vsel %vm1179, %v1115, %v1243
        %v1308 = vsel %vm1180, %v1116, %v1244
        %v1309 = vsel %vm1181, %v1117, %v1245
        %v1310 = vsel %vm1182, %v1118, %v1246
        %v1311 = vsel %vm1183, %v1119, %v1247
        %v1312 = vsel %vm1184, %v1120, %v1248
        %v1313 = vsel %vm1185, %v1121, %v1249
        %v1314 = vsel %vm1186, %v1122, %v1250
        %v1315 = vsel %vm1187, %v1123, %v1251
        %v1316 = vsel %vm1188, %v1124, %v1252
        %v1317 = vsel %vm1189, %v1125, %v1253
        %v1318 = vsel %vm1190, %v1126, %v1254
        %v1319 = vsel %vm1191, %v1127, %v1255
        %v1320 = vsel %vm1192, %v1128, %v1256
        %v1321 = vsel %vm1193, %v1129, %v1257
        %v1322 = vsel %vm1194, %v1130, %v1258
        %v1323 = vpack.c.bf16 %v1260, %v1259
        %v1324 = vpack.c.bf16 %v1262, %v1261
        %v1325 = vpack.c.bf16 %v1264, %v1263
        %v1326 = vpack.c.bf16 %v1266, %v1265
        %v1327 = vpack.c.bf16 %v1268, %v1267
        %v1328 = vpack.c.bf16 %v1270, %v1269
        %v1329 = vpack.c.bf16 %v1272, %v1271
        %v1330 = vpack.c.bf16 %v1274, %v1273
        %v1331 = vpack.c.bf16 %v1276, %v1275
        %v1332 = vpack.c.bf16 %v1278, %v1277
        %v1333 = vpack.c.bf16 %v1280, %v1279
        %v1334 = vpack.c.bf16 %v1282, %v1281
        %v1335 = vpack.c.bf16 %v1284, %v1283
        %v1336 = vpack.c.bf16 %v1286, %v1285
        %v1337 = vpack.c.bf16 %v1288, %v1287
        %v1338 = vpack.c.bf16 %v1290, %v1289
        %v1339 = vpack.c.bf16 %v1292, %v1291
        %v1340 = vpack.c.bf16 %v1294, %v1293
        %v1341 = vpack.c.bf16 %v1296, %v1295
        %v1342 = vpack.c.bf16 %v1298, %v1297
        %v1343 = vpack.c.bf16 %v1300, %v1299
        %v1344 = vpack.c.bf16 %v1302, %v1301
        %v1345 = vpack.c.bf16 %v1304, %v1303
        %v1346 = vpack.c.bf16 %v1306, %v1305
        %v1347 = vpack.c.bf16 %v1308, %v1307
        %v1348 = vpack.c.bf16 %v1310, %v1309
        %v1349 = vpack.c.bf16 %v1312, %v1311
        %v1350 = vpack.c.bf16 %v1314, %v1313
        %v1351 = vpack.c.bf16 %v1316, %v1315
        %v1352 = vpack.c.bf16 %v1318, %v1317
        %v1353 = vpack.c.bf16 %v1320, %v1319
        %v1354 = vpack.c.bf16 %v1322, %v1321
        %v1387 = vunpack.c.l.b16 %v1323
        %v1388 = vunpack.c.h.b16 %v1323
        %v1389 = vunpack.c.l.b16 %v1324
        %v1390 = vunpack.c.h.b16 %v1324
        %v1391 = vunpack.c.l.b16 %v1325
        %v1392 = vunpack.c.h.b16 %v1325
        %v1393 = vunpack.c.l.b16 %v1326
        %v1394 = vunpack.c.h.b16 %v1326
        %v1395 = vunpack.c.l.b16 %v1327
        %v1396 = vunpack.c.h.b16 %v1327
        %v1397 = vunpack.c.l.b16 %v1328
        %v1398 = vunpack.c.h.b16 %v1328
        %v1399 = vunpack.c.l.b16 %v1329
        %v1400 = vunpack.c.h.b16 %v1329
        %v1401 = vunpack.c.l.b16 %v1330
        %v1402 = vunpack.c.h.b16 %v1330
        %v1403 = vunpack.c.l.b16 %v1331
        %v1404 = vunpack.c.h.b16 %v1331
        %v1405 = vunpack.c.l.b16 %v1332
        %v1406 = vunpack.c.h.b16 %v1332
        %v1407 = vunpack.c.l.b16 %v1333
        %v1408 = vunpack.c.h.b16 %v1333
        %v1409 = vunpack.c.l.b16 %v1334
        %v1410 = vunpack.c.h.b16 %v1334
        %v1411 = vunpack.c.l.b16 %v1335
        %v1412 = vunpack.c.h.b16 %v1335
        %v1413 = vunpack.c.l.b16 %v1336
        %v1414 = vunpack.c.h.b16 %v1336
        %v1415 = vunpack.c.l.b16 %v1337
        %v1416 = vunpack.c.h.b16 %v1337
        %v1417 = vunpack.c.l.b16 %v1338
        %v1418 = vunpack.c.h.b16 %v1338
        %v1419 = vunpack.c.l.b16 %v1339
        %v1420 = vunpack.c.h.b16 %v1339
        %v1421 = vunpack.c.l.b16 %v1340
        %v1422 = vunpack.c.h.b16 %v1340
        %v1423 = vunpack.c.l.b16 %v1341
        %v1424 = vunpack.c.h.b16 %v1341
        %v1425 = vunpack.c.l.b16 %v1342
        %v1426 = vunpack.c.h.b16 %v1342
        %v1427 = vunpack.c.l.b16 %v1343
        %v1428 = vunpack.c.h.b16 %v1343
        %v1429 = vunpack.c.l.b16 %v1344
        %v1430 = vunpack.c.h.b16 %v1344
        %v1431 = vunpack.c.l.b16 %v1345
        %v1432 = vunpack.c.h.b16 %v1345
        %v1433 = vunpack.c.l.b16 %v1346
        %v1434 = vunpack.c.h.b16 %v1346
        %v1435 = vunpack.c.l.b16 %v1347
        %v1436 = vunpack.c.h.b16 %v1347
        %v1437 = vunpack.c.l.b16 %v1348
        %v1438 = vunpack.c.h.b16 %v1348
        %v1439 = vunpack.c.l.b16 %v1349
        %v1440 = vunpack.c.h.b16 %v1349
        %v1441 = vunpack.c.l.b16 %v1350
        %v1442 = vunpack.c.h.b16 %v1350
        %v1443 = vunpack.c.l.b16 %v1351
        %v1444 = vunpack.c.h.b16 %v1351
        %v1445 = vunpack.c.l.b16 %v1352
        %v1446 = vunpack.c.h.b16 %v1352
        %v1447 = vunpack.c.l.b16 %v1353
        %v1448 = vunpack.c.h.b16 %v1353
        %v1449 = vunpack.c.l.b16 %v1354
        %v1450 = vunpack.c.h.b16 %v1354
        %v1451 = vpack.c.b16 %v1387, %v1387
        %v1452 = vpack.c.b16 %v1388, %v1388
        %v1453 = vpack.c.b16 %v1389, %v1389
        %v1454 = vpack.c.b16 %v1390, %v1390
        %v1455 = vpack.c.b16 %v1391, %v1391
        %v1456 = vpack.c.b16 %v1392, %v1392
        %v1457 = vpack.c.b16 %v1393, %v1393
        %v1458 = vpack.c.b16 %v1394, %v1394
        %v1459 = vpack.c.b16 %v1395, %v1395
        %v1460 = vpack.c.b16 %v1396, %v1396
        %v1461 = vpack.c.b16 %v1397, %v1397
        %v1462 = vpack.c.b16 %v1398, %v1398
        %v1463 = vpack.c.b16 %v1399, %v1399
        %v1464 = vpack.c.b16 %v1400, %v1400
        %v1465 = vpack.c.b16 %v1401, %v1401
        %v1466 = vpack.c.b16 %v1402, %v1402
        %v1467 = vpack.c.b16 %v1403, %v1403
        %v1468 = vpack.c.b16 %v1404, %v1404
        %v1469 = vpack.c.b16 %v1405, %v1405
        %v1470 = vpack.c.b16 %v1406, %v1406
        %v1471 = vpack.c.b16 %v1407, %v1407
        %v1472 = vpack.c.b16 %v1408, %v1408
        %v1473 = vpack.c.b16 %v1409, %v1409
        %v1474 = vpack.c.b16 %v1410, %v1410
        %v1475 = vpack.c.b16 %v1411, %v1411
        %v1476 = vpack.c.b16 %v1412, %v1412
        %v1477 = vpack.c.b16 %v1413, %v1413
        %v1478 = vpack.c.b16 %v1414, %v1414
        %v1479 = vpack.c.b16 %v1415, %v1415
        %v1480 = vpack.c.b16 %v1416, %v1416
        %v1481 = vpack.c.b16 %v1417, %v1417
        %v1482 = vpack.c.b16 %v1418, %v1418
        %v1483 = vpack.c.b16 %v1419, %v1419
        %v1484 = vpack.c.b16 %v1420, %v1420
        %v1485 = vpack.c.b16 %v1421, %v1421
        %v1486 = vpack.c.b16 %v1422, %v1422
        %v1487 = vpack.c.b16 %v1423, %v1423
        %v1488 = vpack.c.b16 %v1424, %v1424
        %v1489 = vpack.c.b16 %v1425, %v1425
        %v1490 = vpack.c.b16 %v1426, %v1426
        %v1491 = vpack.c.b16 %v1427, %v1427
        %v1492 = vpack.c.b16 %v1428, %v1428
        %v1493 = vpack.c.b16 %v1429, %v1429
        %v1494 = vpack.c.b16 %v1430, %v1430
        %v1495 = vpack.c.b16 %v1431, %v1431
        %v1496 = vpack.c.b16 %v1432, %v1432
        %v1497 = vpack.c.b16 %v1433, %v1433
        %v1498 = vpack.c.b16 %v1434, %v1434
        %v1499 = vpack.c.b16 %v1435, %v1435
        %v1500 = vpack.c.b16 %v1436, %v1436
        %v1501 = vpack.c.b16 %v1437, %v1437
        %v1502 = vpack.c.b16 %v1438, %v1438
        %v1503 = vpack.c.b16 %v1439, %v1439
        %v1504 = vpack.c.b16 %v1440, %v1440
        %v1505 = vpack.c.b16 %v1441, %v1441
        %v1506 = vpack.c.b16 %v1442, %v1442
        %v1507 = vpack.c.b16 %v1443, %v1443
        %v1508 = vpack.c.b16 %v1444, %v1444
        %v1509 = vpack.c.b16 %v1445, %v1445
        %v1510 = vpack.c.b16 %v1446, %v1446
        %v1511 = vpack.c.b16 %v1447, %v1447
        %v1512 = vpack.c.b16 %v1448, %v1448
        %v1513 = vpack.c.b16 %v1449, %v1449
        %v1514 = vpack.c.b16 %v1450, %v1450
        %vm1579 = vcmask 60416
        %1580 = vst.msk [vmem:[%s190] sm:$0xf] %vm1579, %v1451
        %1581 = vst.msk [vmem:[%s190 + $0x4] sm:$0xf] %vm1579, %v1452
        %1582 = vst.msk [vmem:[%s190 + $0x8] sm:$0xf] %vm1579, %v1453
        %1583 = vst.msk [vmem:[%s190 + $0xc] sm:$0xf] %vm1579, %v1454
        %1584 = vst.msk [vmem:[%s190 + $0x10] sm:$0xf] %vm1579, %v1455
        %1585 = vst.msk [vmem:[%s190 + $0x14] sm:$0xf] %vm1579, %v1456
        %1586 = vst.msk [vmem:[%s190 + $0x18] sm:$0xf] %vm1579, %v1457
        %1587 = vst.msk [vmem:[%s190 + $0x1c] sm:$0xf] %vm1579, %v1458
        %1588 = vst.msk [vmem:[%s190 + $0x20] sm:$0xf] %vm1579, %v1459
        %1589 = vst.msk [vmem:[%s190 + $0x24] sm:$0xf] %vm1579, %v1460
        %1590 = vst.msk [vmem:[%s190 + $0x28] sm:$0xf] %vm1579, %v1461
        %1591 = vst.msk [vmem:[%s190 + $0x2c] sm:$0xf] %vm1579, %v1462
        %1592 = vst.msk [vmem:[%s190 + $0x30] sm:$0xf] %vm1579, %v1463
        %1593 = vst.msk [vmem:[%s190 + $0x34] sm:$0xf] %vm1579, %v1464
        %1594 = vst.msk [vmem:[%s190 + $0x38] sm:$0xf] %vm1579, %v1465
        %1595 = vst.msk [vmem:[%s190 + $0x3c] sm:$0xf] %vm1579, %v1466
        %1596 = vst.msk [vmem:[%s190 + $0x40] sm:$0xf] %vm1579, %v1467
        %1597 = vst.msk [vmem:[%s190 + $0x44] sm:$0xf] %vm1579, %v1468
        %1598 = vst.msk [vmem:[%s190 + $0x48] sm:$0xf] %vm1579, %v1469
        %1599 = vst.msk [vmem:[%s190 + $0x4c] sm:$0xf] %vm1579, %v1470
        %1600 = vst.msk [vmem:[%s190 + $0x50] sm:$0xf] %vm1579, %v1471
        %1601 = vst.msk [vmem:[%s190 + $0x54] sm:$0xf] %vm1579, %v1472
        %1602 = vst.msk [vmem:[%s190 + $0x58] sm:$0xf] %vm1579, %v1473
        %1603 = vst.msk [vmem:[%s190 + $0x5c] sm:$0xf] %vm1579, %v1474
        %1604 = vst.msk [vmem:[%s190 + $0x60] sm:$0xf] %vm1579, %v1475
        %1605 = vst.msk [vmem:[%s190 + $0x64] sm:$0xf] %vm1579, %v1476
        %1606 = vst.msk [vmem:[%s190 + $0x68] sm:$0xf] %vm1579, %v1477
        %1607 = vst.msk [vmem:[%s190 + $0x6c] sm:$0xf] %vm1579, %v1478
        %1608 = vst.msk [vmem:[%s190 + $0x70] sm:$0xf] %vm1579, %v1479
        %1609 = vst.msk [vmem:[%s190 + $0x74] sm:$0xf] %vm1579, %v1480
        %1610 = vst.msk [vmem:[%s190 + $0x78] sm:$0xf] %vm1579, %v1481
        %1611 = vst.msk [vmem:[%s190 + $0x7c] sm:$0xf] %vm1579, %v1482
        %1612 = vst.msk [vmem:[%s190 + $0x80] sm:$0xf] %vm1579, %v1483
        %1613 = vst.msk [vmem:[%s190 + $0x84] sm:$0xf] %vm1579, %v1484
        %1614 = vst.msk [vmem:[%s190 + $0x88] sm:$0xf] %vm1579, %v1485
        %1615 = vst.msk [vmem:[%s190 + $0x8c] sm:$0xf] %vm1579, %v1486
        %1616 = vst.msk [vmem:[%s190 + $0x90] sm:$0xf] %vm1579, %v1487
        %1617 = vst.msk [vmem:[%s190 + $0x94] sm:$0xf] %vm1579, %v1488
        %1618 = vst.msk [vmem:[%s190 + $0x98] sm:$0xf] %vm1579, %v1489
        %1619 = vst.msk [vmem:[%s190 + $0x9c] sm:$0xf] %vm1579, %v1490
        %1620 = vst.msk [vmem:[%s190 + $0xa0] sm:$0xf] %vm1579, %v1491
        %1621 = vst.msk [vmem:[%s190 + $0xa4] sm:$0xf] %vm1579, %v1492
        %1622 = vst.msk [vmem:[%s190 + $0xa8] sm:$0xf] %vm1579, %v1493
        %1623 = vst.msk [vmem:[%s190 + $0xac] sm:$0xf] %vm1579, %v1494
        %1624 = vst.msk [vmem:[%s190 + $0xb0] sm:$0xf] %vm1579, %v1495
        %1625 = vst.msk [vmem:[%s190 + $0xb4] sm:$0xf] %vm1579, %v1496
        %1626 = vst.msk [vmem:[%s190 + $0xb8] sm:$0xf] %vm1579, %v1497
        %1627 = vst.msk [vmem:[%s190 + $0xbc] sm:$0xf] %vm1579, %v1498
        %1628 = vst.msk [vmem:[%s190 + $0xc0] sm:$0xf] %vm1579, %v1499
        %1629 = vst.msk [vmem:[%s190 + $0xc4] sm:$0xf] %vm1579, %v1500
        %1630 = vst.msk [vmem:[%s190 + $0xc8] sm:$0xf] %vm1579, %v1501
        %1631 = vst.msk [vmem:[%s190 + $0xcc] sm:$0xf] %vm1579, %v1502
        %1632 = vst.msk [vmem:[%s190 + $0xd0] sm:$0xf] %vm1579, %v1503
        %1633 = vst.msk [vmem:[%s190 + $0xd4] sm:$0xf] %vm1579, %v1504
        %1634 = vst.msk [vmem:[%s190 + $0xd8] sm:$0xf] %vm1579, %v1505
        %1635 = vst.msk [vmem:[%s190 + $0xdc] sm:$0xf] %vm1579, %v1506
        %1636 = vst.msk [vmem:[%s190 + $0xe0] sm:$0xf] %vm1579, %v1507
        %1637 = vst.msk [vmem:[%s190 + $0xe4] sm:$0xf] %vm1579, %v1508
        %1638 = vst.msk [vmem:[%s190 + $0xe8] sm:$0xf] %vm1579, %v1509
        %1639 = vst.msk [vmem:[%s190 + $0xec] sm:$0xf] %vm1579, %v1510
        %1640 = vst.msk [vmem:[%s190 + $0xf0] sm:$0xf] %vm1579, %v1511
        %1641 = vst.msk [vmem:[%s190 + $0xf4] sm:$0xf] %vm1579, %v1512
        %1642 = vst.msk [vmem:[%s190 + $0xf8] sm:$0xf] %vm1579, %v1513
        %1643 = vst.msk [vmem:[%s190 + $0xfc] sm:$0xf] %vm1579, %v1514
      $region36: #{critic_forward.4} parent=27 // pred_fallthru
        _
      %s1644 = smul.u32 64, %s17
      %p1645 = scmp.lt.s32.totalorder %s1644, 255
      %s1646 = scalar_select %p1645, %s1644, 255
      %s1647 = smul.addr %s1646, 4
      %s1648 = scalar_lea.vmem %s2, %s1647
      // Predicated region
      $region37: #{critic_forward.4} parent=27 // pred_check
        %p1649 = pneg %p97
      $region38: #{critic_forward.4} parent=27 // pred_check_branch
        %1651 = sbr.rel (%p1649) target = $region40
      $region39: #{critic_forward.4} parent=27 // pred_region
        %s1652 = smul.u32 64, %s17
      $region40: #{critic_forward.4} parent=27 // pred_fallthru
        _
    $region28: #{critic_forward.4} parent=5 // pred_fallthru
      _
    %p1653 = scmp.le.s32.totalorder 2, %s8
    // Predicated region
    $region41: #{critic_forward.4} parent=5 // pred_check
      %p1654 = pneg %p1653
    $region42: #{critic_forward.4} parent=5 // pred_check_branch
      %1656 = sbr.rel (%p1654) target = $region44
    $region43: #{critic_forward.4} parent=5 // pred_region
      %s1657 = ssub.s32 %s8, 2
      // Predicated region
      $region45: #{critic_forward.4} parent=43 // pred_check
        %p1658 = pneg %p103
      $region46: #{critic_forward.4} parent=43 // pred_check_branch
        %1660 = sbr.rel (%p1658) target = $region48
      $region47: #{critic_forward.4} parent=43 // pred_region
        %s1661 = smul.u32 64, %s19
        %p1662 = scmp.lt.s32.totalorder %s1661, 255
        %s1663 = scalar_select %p1662, %s1661, 255
        %s1664 = smul.addr %s1663, 4
        %s1665 = scalar_lea.vmem %s2, %s1664
      $region48: #{critic_forward.4} parent=43 // pred_fallthru
        _
    $region44: #{critic_forward.4} parent=5 // pred_fallthru
      _
  $region6: #{critic_forward.4} parent=0 // loop_footer
    %s12 = sadd.s32 1, %s8
  $region7: #{critic_forward.4} parent=0 // loop_footer_branch
    %7 = sbr.rel target = $region3
  $region8: #{critic_forward.4} parent=0 // loop_exit
    _

// kernel: critic_forward.5
$region0: #{critic_forward.5}
  #allocation0 [shape = 'u32[]', space=smem, size = 0x4, offset = 0x4, fixed_abs, tag = 'smem constant byte address 0x4 - core index']
  #allocation1 [shape = 'u32[144,128]{1,0:T(1,128)}', space=vmem, size = 0x12000, scoped, tag = 'internal scratch']
  #allocation2 [shape = 'f32[512,16]{1,0:T(8,128)}', space=vmem, size = 0x40000, scoped, tag = 'scratch operand']
  %s0 = inlined_call_operand.vmem [shape: bf16[512,128], index: 0, kind: input, shape index: {}]
  %s1 = inlined_call_operand.vmem [shape: bf16[128,16], index: 1, kind: input, shape index: {}]
  %s2 = inlined_call_operand.vmem [shape: bf16[512,16], index: 2, kind: output, shape index: {}]
  %s3 = sld [smem:[#allocation0]]
  $region26: #{critic_forward.5} parent=0
    _
  %s5 = ssub.s32 1, %s3
  %s6 = scalar_select 0, %s5, %s3
  // Predicated region
  $region2: #{critic_forward.5} parent=0 // pred_check
    _
  $region3: #{critic_forward.5} parent=0 // pred_check_branch
    %8 = sbr.rel (0) target = $region5
  $region4: #{critic_forward.5} parent=0 // pred_region
    _
  $region5: #{critic_forward.5} parent=0 // pred_fallthru
    _
  // Predicated region
  $region6: #{critic_forward.5} parent=0 // pred_check
    _
  $region7: #{critic_forward.5} parent=0 // pred_check_branch
    %10 = sbr.rel (0) target = $region9
  $region8: #{critic_forward.5} parent=0 // pred_region
    _
  $region9: #{critic_forward.5} parent=0 // pred_fallthru
    _
  %p12 = scmp.eq.s32.totalorder 0, 0
  // Predicated region
  $region10: #{critic_forward.5} parent=0 // pred_check
    %p13 = pneg %p12
  $region11: #{critic_forward.5} parent=0 // pred_check_branch
    %15 = sbr.rel (%p13) target = $region13
  $region12: #{critic_forward.5} parent=0 // pred_region
    %vm16 = vcmask 130048
    %17 = vst.msk [vmem:[#allocation2] sm:$0xff] %vm16, 0.0
    %18 = vst.msk [vmem:[#allocation2 + $0x8] sm:$0xff] %vm16, 0.0
    %19 = vst.msk [vmem:[#allocation2 + $0x10] sm:$0xff] %vm16, 0.0
    %20 = vst.msk [vmem:[#allocation2 + $0x18] sm:$0xff] %vm16, 0.0
    %21 = vst.msk [vmem:[#allocation2 + $0x20] sm:$0xff] %vm16, 0.0
    %22 = vst.msk [vmem:[#allocation2 + $0x28] sm:$0xff] %vm16, 0.0
    %23 = vst.msk [vmem:[#allocation2 + $0x30] sm:$0xff] %vm16, 0.0
    %24 = vst.msk [vmem:[#allocation2 + $0x38] sm:$0xff] %vm16, 0.0
    %25 = vst.msk [vmem:[#allocation2 + $0x40] sm:$0xff] %vm16, 0.0
    %26 = vst.msk [vmem:[#allocation2 + $0x48] sm:$0xff] %vm16, 0.0
    %27 = vst.msk [vmem:[#allocation2 + $0x50] sm:$0xff] %vm16, 0.0
    %28 = vst.msk [vmem:[#allocation2 + $0x58] sm:$0xff] %vm16, 0.0
    %29 = vst.msk [vmem:[#allocation2 + $0x60] sm:$0xff] %vm16, 0.0
    %30 = vst.msk [vmem:[#allocation2 + $0x68] sm:$0xff] %vm16, 0.0
    %31 = vst.msk [vmem:[#allocation2 + $0x70] sm:$0xff] %vm16, 0.0
    %32 = vst.msk [vmem:[#allocation2 + $0x78] sm:$0xff] %vm16, 0.0
    %33 = vst.msk [vmem:[#allocation2 + $0x80] sm:$0xff] %vm16, 0.0
    %34 = vst.msk [vmem:[#allocation2 + $0x88] sm:$0xff] %vm16, 0.0
    %35 = vst.msk [vmem:[#allocation2 + $0x90] sm:$0xff] %vm16, 0.0
    %36 = vst.msk [vmem:[#allocation2 + $0x98] sm:$0xff] %vm16, 0.0
    %37 = vst.msk [vmem:[#allocation2 + $0xa0] sm:$0xff] %vm16, 0.0
    %38 = vst.msk [vmem:[#allocation2 + $0xa8] sm:$0xff] %vm16, 0.0
    %39 = vst.msk [vmem:[#allocation2 + $0xb0] sm:$0xff] %vm16, 0.0
    %40 = vst.msk [vmem:[#allocation2 + $0xb8] sm:$0xff] %vm16, 0.0
    %41 = vst.msk [vmem:[#allocation2 + $0xc0] sm:$0xff] %vm16, 0.0
    %42 = vst.msk [vmem:[#allocation2 + $0xc8] sm:$0xff] %vm16, 0.0
    %43 = vst.msk [vmem:[#allocation2 + $0xd0] sm:$0xff] %vm16, 0.0
    %44 = vst.msk [vmem:[#allocation2 + $0xd8] sm:$0xff] %vm16, 0.0
    %45 = vst.msk [vmem:[#allocation2 + $0xe0] sm:$0xff] %vm16, 0.0
    %46 = vst.msk [vmem:[#allocation2 + $0xe8] sm:$0xff] %vm16, 0.0
    %47 = vst.msk [vmem:[#allocation2 + $0xf0] sm:$0xff] %vm16, 0.0
    %48 = vst.msk [vmem:[#allocation2 + $0xf8] sm:$0xff] %vm16, 0.0
    %49 = vst.msk [vmem:[#allocation2 + $0x100] sm:$0xff] %vm16, 0.0
    %50 = vst.msk [vmem:[#allocation2 + $0x108] sm:$0xff] %vm16, 0.0
    %51 = vst.msk [vmem:[#allocation2 + $0x110] sm:$0xff] %vm16, 0.0
    %52 = vst.msk [vmem:[#allocation2 + $0x118] sm:$0xff] %vm16, 0.0
    %53 = vst.msk [vmem:[#allocation2 + $0x120] sm:$0xff] %vm16, 0.0
    %54 = vst.msk [vmem:[#allocation2 + $0x128] sm:$0xff] %vm16, 0.0
    %55 = vst.msk [vmem:[#allocation2 + $0x130] sm:$0xff] %vm16, 0.0
    %56 = vst.msk [vmem:[#allocation2 + $0x138] sm:$0xff] %vm16, 0.0
    %57 = vst.msk [vmem:[#allocation2 + $0x140] sm:$0xff] %vm16, 0.0
    %58 = vst.msk [vmem:[#allocation2 + $0x148] sm:$0xff] %vm16, 0.0
    %59 = vst.msk [vmem:[#allocation2 + $0x150] sm:$0xff] %vm16, 0.0
    %60 = vst.msk [vmem:[#allocation2 + $0x158] sm:$0xff] %vm16, 0.0
    %61 = vst.msk [vmem:[#allocation2 + $0x160] sm:$0xff] %vm16, 0.0
    %62 = vst.msk [vmem:[#allocation2 + $0x168] sm:$0xff] %vm16, 0.0
    %63 = vst.msk [vmem:[#allocation2 + $0x170] sm:$0xff] %vm16, 0.0
    %64 = vst.msk [vmem:[#allocation2 + $0x178] sm:$0xff] %vm16, 0.0
    %65 = vst.msk [vmem:[#allocation2 + $0x180] sm:$0xff] %vm16, 0.0
    %66 = vst.msk [vmem:[#allocation2 + $0x188] sm:$0xff] %vm16, 0.0
    %67 = vst.msk [vmem:[#allocation2 + $0x190] sm:$0xff] %vm16, 0.0
    %68 = vst.msk [vmem:[#allocation2 + $0x198] sm:$0xff] %vm16, 0.0
    %69 = vst.msk [vmem:[#allocation2 + $0x1a0] sm:$0xff] %vm16, 0.0
    %70 = vst.msk [vmem:[#allocation2 + $0x1a8] sm:$0xff] %vm16, 0.0
    %71 = vst.msk [vmem:[#allocation2 + $0x1b0] sm:$0xff] %vm16, 0.0
    %72 = vst.msk [vmem:[#allocation2 + $0x1b8] sm:$0xff] %vm16, 0.0
    %73 = vst.msk [vmem:[#allocation2 + $0x1c0] sm:$0xff] %vm16, 0.0
    %74 = vst.msk [vmem:[#allocation2 + $0x1c8] sm:$0xff] %vm16, 0.0
    %75 = vst.msk [vmem:[#allocation2 + $0x1d0] sm:$0xff] %vm16, 0.0
    %76 = vst.msk [vmem:[#allocation2 + $0x1d8] sm:$0xff] %vm16, 0.0
    %77 = vst.msk [vmem:[#allocation2 + $0x1e0] sm:$0xff] %vm16, 0.0
    %78 = vst.msk [vmem:[#allocation2 + $0x1e8] sm:$0xff] %vm16, 0.0
    %79 = vst.msk [vmem:[#allocation2 + $0x1f0] sm:$0xff] %vm16, 0.0
    %80 = vst.msk [vmem:[#allocation2 + $0x1f8] sm:$0xff] %vm16, 0.0
  $region13: #{critic_forward.5} parent=0 // pred_fallthru
    _
  %v81 = vld [vmem:[#allocation2] sm:$0xff]
  %v82 = vld [vmem:[#allocation2 + $0x8] sm:$0xff]
  %v83 = vld [vmem:[#allocation2 + $0x10] sm:$0xff]
  %v84 = vld [vmem:[#allocation2 + $0x18] sm:$0xff]
  %v85 = vld [vmem:[#allocation2 + $0x20] sm:$0xff]
  %v86 = vld [vmem:[#allocation2 + $0x28] sm:$0xff]
  %v87 = vld [vmem:[#allocation2 + $0x30] sm:$0xff]
  %v88 = vld [vmem:[#allocation2 + $0x38] sm:$0xff]
  %v89 = vld [vmem:[#allocation2 + $0x40] sm:$0xff]
  %v90 = vld [vmem:[#allocation2 + $0x48] sm:$0xff]
  %v91 = vld [vmem:[#allocation2 + $0x50] sm:$0xff]
  %v92 = vld [vmem:[#allocation2 + $0x58] sm:$0xff]
  %v93 = vld [vmem:[#allocation2 + $0x60] sm:$0xff]
  %v94 = vld [vmem:[#allocation2 + $0x68] sm:$0xff]
  %v95 = vld [vmem:[#allocation2 + $0x70] sm:$0xff]
  %v96 = vld [vmem:[#allocation2 + $0x78] sm:$0xff]
  %v97 = vld [vmem:[#allocation2 + $0x80] sm:$0xff]
  %v98 = vld [vmem:[#allocation2 + $0x88] sm:$0xff]
  %v99 = vld [vmem:[#allocation2 + $0x90] sm:$0xff]
  %v100 = vld [vmem:[#allocation2 + $0x98] sm:$0xff]
  %v101 = vld [vmem:[#allocation2 + $0xa0] sm:$0xff]
  %v102 = vld [vmem:[#allocation2 + $0xa8] sm:$0xff]
  %v103 = vld [vmem:[#allocation2 + $0xb0] sm:$0xff]
  %v104 = vld [vmem:[#allocation2 + $0xb8] sm:$0xff]
  %v105 = vld [vmem:[#allocation2 + $0xc0] sm:$0xff]
  %v106 = vld [vmem:[#allocation2 + $0xc8] sm:$0xff]
  %v107 = vld [vmem:[#allocation2 + $0xd0] sm:$0xff]
  %v108 = vld [vmem:[#allocation2 + $0xd8] sm:$0xff]
  %v109 = vld [vmem:[#allocation2 + $0xe0] sm:$0xff]
  %v110 = vld [vmem:[#allocation2 + $0xe8] sm:$0xff]
  %v111 = vld [vmem:[#allocation2 + $0xf0] sm:$0xff]
  %v112 = vld [vmem:[#allocation2 + $0xf8] sm:$0xff]
  %v113 = vld [vmem:[#allocation2 + $0x100] sm:$0xff]
  %v114 = vld [vmem:[#allocation2 + $0x108] sm:$0xff]
  %v115 = vld [vmem:[#allocation2 + $0x110] sm:$0xff]
  %v116 = vld [vmem:[#allocation2 + $0x118] sm:$0xff]
  %v117 = vld [vmem:[#allocation2 + $0x120] sm:$0xff]
  %v118 = vld [vmem:[#allocation2 + $0x128] sm:$0xff]
  %v119 = vld [vmem:[#allocation2 + $0x130] sm:$0xff]
  %v120 = vld [vmem:[#allocation2 + $0x138] sm:$0xff]
  %v121 = vld [vmem:[#allocation2 + $0x140] sm:$0xff]
  %v122 = vld [vmem:[#allocation2 + $0x148] sm:$0xff]
  %v123 = vld [vmem:[#allocation2 + $0x150] sm:$0xff]
  %v124 = vld [vmem:[#allocation2 + $0x158] sm:$0xff]
  %v125 = vld [vmem:[#allocation2 + $0x160] sm:$0xff]
  %v126 = vld [vmem:[#allocation2 + $0x168] sm:$0xff]
  %v127 = vld [vmem:[#allocation2 + $0x170] sm:$0xff]
  %v128 = vld [vmem:[#allocation2 + $0x178] sm:$0xff]
  %v129 = vld [vmem:[#allocation2 + $0x180] sm:$0xff]
  %v130 = vld [vmem:[#allocation2 + $0x188] sm:$0xff]
  %v131 = vld [vmem:[#allocation2 + $0x190] sm:$0xff]
  %v132 = vld [vmem:[#allocation2 + $0x198] sm:$0xff]
  %v133 = vld [vmem:[#allocation2 + $0x1a0] sm:$0xff]
  %v134 = vld [vmem:[#allocation2 + $0x1a8] sm:$0xff]
  %v135 = vld [vmem:[#allocation2 + $0x1b0] sm:$0xff]
  %v136 = vld [vmem:[#allocation2 + $0x1b8] sm:$0xff]
  %v137 = vld [vmem:[#allocation2 + $0x1c0] sm:$0xff]
  %v138 = vld [vmem:[#allocation2 + $0x1c8] sm:$0xff]
  %v139 = vld [vmem:[#allocation2 + $0x1d0] sm:$0xff]
  %v140 = vld [vmem:[#allocation2 + $0x1d8] sm:$0xff]
  %v141 = vld [vmem:[#allocation2 + $0x1e0] sm:$0xff]
  %v142 = vld [vmem:[#allocation2 + $0x1e8] sm:$0xff]
  %v143 = vld [vmem:[#allocation2 + $0x1f0] sm:$0xff]
  %v144 = vld [vmem:[#allocation2 + $0x1f8] sm:$0xff]
  %v145 = vld [vmem:[%s0] sm:$0xf]
  %v146 = vld [vmem:[%s0 + $0x4] sm:$0xf]
  %v147 = vld [vmem:[%s0 + $0x8] sm:$0xf]
  %v148 = vld [vmem:[%s0 + $0xc] sm:$0xf]
  %v149 = vld [vmem:[%s0 + $0x10] sm:$0xf]
  %v150 = vld [vmem:[%s0 + $0x14] sm:$0xf]
  %v151 = vld [vmem:[%s0 + $0x18] sm:$0xf]
  %v152 = vld [vmem:[%s0 + $0x1c] sm:$0xf]
  %v153 = vld [vmem:[%s0 + $0x20] sm:$0xf]
  %v154 = vld [vmem:[%s0 + $0x24] sm:$0xf]
  %v155 = vld [vmem:[%s0 + $0x28] sm:$0xf]
  %v156 = vld [vmem:[%s0 + $0x2c] sm:$0xf]
  %v157 = vld [vmem:[%s0 + $0x30] sm:$0xf]
  %v158 = vld [vmem:[%s0 + $0x34] sm:$0xf]
  %v159 = vld [vmem:[%s0 + $0x38] sm:$0xf]
  %v160 = vld [vmem:[%s0 + $0x3c] sm:$0xf]
  %v161 = vld [vmem:[%s0 + $0x40] sm:$0xf]
  %v162 = vld [vmem:[%s0 + $0x44] sm:$0xf]
  %v163 = vld [vmem:[%s0 + $0x48] sm:$0xf]
  %v164 = vld [vmem:[%s0 + $0x4c] sm:$0xf]
  %v165 = vld [vmem:[%s0 + $0x50] sm:$0xf]
  %v166 = vld [vmem:[%s0 + $0x54] sm:$0xf]
  %v167 = vld [vmem:[%s0 + $0x58] sm:$0xf]
  %v168 = vld [vmem:[%s0 + $0x5c] sm:$0xf]
  %v169 = vld [vmem:[%s0 + $0x60] sm:$0xf]
  %v170 = vld [vmem:[%s0 + $0x64] sm:$0xf]
  %v171 = vld [vmem:[%s0 + $0x68] sm:$0xf]
  %v172 = vld [vmem:[%s0 + $0x6c] sm:$0xf]
  %v173 = vld [vmem:[%s0 + $0x70] sm:$0xf]
  %v174 = vld [vmem:[%s0 + $0x74] sm:$0xf]
  %v175 = vld [vmem:[%s0 + $0x78] sm:$0xf]
  %v176 = vld [vmem:[%s0 + $0x7c] sm:$0xf]
  %v177 = vld [vmem:[%s0 + $0x80] sm:$0xf]
  %v178 = vld [vmem:[%s0 + $0x84] sm:$0xf]
  %v179 = vld [vmem:[%s0 + $0x88] sm:$0xf]
  %v180 = vld [vmem:[%s0 + $0x8c] sm:$0xf]
  %v181 = vld [vmem:[%s0 + $0x90] sm:$0xf]
  %v182 = vld [vmem:[%s0 + $0x94] sm:$0xf]
  %v183 = vld [vmem:[%s0 + $0x98] sm:$0xf]
  %v184 = vld [vmem:[%s0 + $0x9c] sm:$0xf]
  %v185 = vld [vmem:[%s0 + $0xa0] sm:$0xf]
  %v186 = vld [vmem:[%s0 + $0xa4] sm:$0xf]
  %v187 = vld [vmem:[%s0 + $0xa8] sm:$0xf]
  %v188 = vld [vmem:[%s0 + $0xac] sm:$0xf]
  %v189 = vld [vmem:[%s0 + $0xb0] sm:$0xf]
  %v190 = vld [vmem:[%s0 + $0xb4] sm:$0xf]
  %v191 = vld [vmem:[%s0 + $0xb8] sm:$0xf]
  %v192 = vld [vmem:[%s0 + $0xbc] sm:$0xf]
  %v193 = vld [vmem:[%s0 + $0xc0] sm:$0xf]
  %v194 = vld [vmem:[%s0 + $0xc4] sm:$0xf]
  %v195 = vld [vmem:[%s0 + $0xc8] sm:$0xf]
  %v196 = vld [vmem:[%s0 + $0xcc] sm:$0xf]
  %v197 = vld [vmem:[%s0 + $0xd0] sm:$0xf]
  %v198 = vld [vmem:[%s0 + $0xd4] sm:$0xf]
  %v199 = vld [vmem:[%s0 + $0xd8] sm:$0xf]
  %v200 = vld [vmem:[%s0 + $0xdc] sm:$0xf]
  %v201 = vld [vmem:[%s0 + $0xe0] sm:$0xf]
  %v202 = vld [vmem:[%s0 + $0xe4] sm:$0xf]
  %v203 = vld [vmem:[%s0 + $0xe8] sm:$0xf]
  %v204 = vld [vmem:[%s0 + $0xec] sm:$0xf]
  %v205 = vld [vmem:[%s0 + $0xf0] sm:$0xf]
  %v206 = vld [vmem:[%s0 + $0xf4] sm:$0xf]
  %v207 = vld [vmem:[%s0 + $0xf8] sm:$0xf]
  %v208 = vld [vmem:[%s0 + $0xfc] sm:$0xf]
  %v209 = vld [vmem:[%s1] sm:$0xf]
  %v210 = vld [vmem:[%s1 + $0x4] sm:$0xf]
  %v211 = vld [vmem:[%s1 + $0x8] sm:$0xf]
  %v212 = vld [vmem:[%s1 + $0xc] sm:$0xf]
  %v213 = vld [vmem:[%s1 + $0x10] sm:$0xf]
  %v214 = vld [vmem:[%s1 + $0x14] sm:$0xf]
  %v215 = vld [vmem:[%s1 + $0x18] sm:$0xf]
  %v216 = vld [vmem:[%s1 + $0x1c] sm:$0xf]
  %v217 = vld [vmem:[%s1 + $0x20] sm:$0xf]
  %v218 = vld [vmem:[%s1 + $0x24] sm:$0xf]
  %v219 = vld [vmem:[%s1 + $0x28] sm:$0xf]
  %v220 = vld [vmem:[%s1 + $0x2c] sm:$0xf]
  %v221 = vld [vmem:[%s1 + $0x30] sm:$0xf]
  %v222 = vld [vmem:[%s1 + $0x34] sm:$0xf]
  %v223 = vld [vmem:[%s1 + $0x38] sm:$0xf]
  %v224 = vld [vmem:[%s1 + $0x3c] sm:$0xf]
  %v289 = vunpack.c.l.b16 %v145
  %v290 = vunpack.c.l.b16 %v146
  %v291 = vunpack.c.l.b16 %v147
  %v292 = vunpack.c.l.b16 %v148
  %v293 = vunpack.c.l.b16 %v149
  %v294 = vunpack.c.l.b16 %v150
  %v295 = vunpack.c.l.b16 %v151
  %v296 = vunpack.c.l.b16 %v152
  %v297 = vunpack.c.l.b16 %v153
  %v298 = vunpack.c.l.b16 %v154
  %v299 = vunpack.c.l.b16 %v155
  %v300 = vunpack.c.l.b16 %v156
  %v301 = vunpack.c.l.b16 %v157
  %v302 = vunpack.c.l.b16 %v158
  %v303 = vunpack.c.l.b16 %v159
  %v304 = vunpack.c.l.b16 %v160
  %v305 = vunpack.c.l.b16 %v161
  %v306 = vunpack.c.l.b16 %v162
  %v307 = vunpack.c.l.b16 %v163
  %v308 = vunpack.c.l.b16 %v164
  %v309 = vunpack.c.l.b16 %v165
  %v310 = vunpack.c.l.b16 %v166
  %v311 = vunpack.c.l.b16 %v167
  %v312 = vunpack.c.l.b16 %v168
  %v313 = vunpack.c.l.b16 %v169
  %v314 = vunpack.c.l.b16 %v170
  %v315 = vunpack.c.l.b16 %v171
  %v316 = vunpack.c.l.b16 %v172
  %v317 = vunpack.c.l.b16 %v173
  %v318 = vunpack.c.l.b16 %v174
  %v319 = vunpack.c.l.b16 %v175
  %v320 = vunpack.c.l.b16 %v176
  %v321 = vunpack.c.l.b16 %v177
  %v322 = vunpack.c.l.b16 %v178
  %v323 = vunpack.c.l.b16 %v179
  %v324 = vunpack.c.l.b16 %v180
  %v325 = vunpack.c.l.b16 %v181
  %v326 = vunpack.c.l.b16 %v182
  %v327 = vunpack.c.l.b16 %v183
  %v328 = vunpack.c.l.b16 %v184
  %v329 = vunpack.c.l.b16 %v185
  %v330 = vunpack.c.l.b16 %v186
  %v331 = vunpack.c.l.b16 %v187
  %v332 = vunpack.c.l.b16 %v188
  %v333 = vunpack.c.l.b16 %v189
  %v334 = vunpack.c.l.b16 %v190
  %v335 = vunpack.c.l.b16 %v191
  %v336 = vunpack.c.l.b16 %v192
  %v337 = vunpack.c.l.b16 %v193
  %v338 = vunpack.c.l.b16 %v194
  %v339 = vunpack.c.l.b16 %v195
  %v340 = vunpack.c.l.b16 %v196
  %v341 = vunpack.c.l.b16 %v197
  %v342 = vunpack.c.l.b16 %v198
  %v343 = vunpack.c.l.b16 %v199
  %v344 = vunpack.c.l.b16 %v200
  %v345 = vunpack.c.l.b16 %v201
  %v346 = vunpack.c.l.b16 %v202
  %v347 = vunpack.c.l.b16 %v203
  %v348 = vunpack.c.l.b16 %v204
  %v349 = vunpack.c.l.b16 %v205
  %v350 = vunpack.c.l.b16 %v206
  %v351 = vunpack.c.l.b16 %v207
  %v352 = vunpack.c.l.b16 %v208
  %v353 = vpack.c.b16 %v290, %v289
  %v354 = vpack.c.b16 %v292, %v291
  %v355 = vpack.c.b16 %v294, %v293
  %v356 = vpack.c.b16 %v296, %v295
  %v357 = vpack.c.b16 %v298, %v297
  %v358 = vpack.c.b16 %v300, %v299
  %v359 = vpack.c.b16 %v302, %v301
  %v360 = vpack.c.b16 %v304, %v303
  %v361 = vpack.c.b16 %v306, %v305
  %v362 = vpack.c.b16 %v308, %v307
  %v363 = vpack.c.b16 %v310, %v309
  %v364 = vpack.c.b16 %v312, %v311
  %v365 = vpack.c.b16 %v314, %v313
  %v366 = vpack.c.b16 %v316, %v315
  %v367 = vpack.c.b16 %v318, %v317
  %v368 = vpack.c.b16 %v320, %v319
  %v369 = vpack.c.b16 %v322, %v321
  %v370 = vpack.c.b16 %v324, %v323
  %v371 = vpack.c.b16 %v326, %v325
  %v372 = vpack.c.b16 %v328, %v327
  %v373 = vpack.c.b16 %v330, %v329
  %v374 = vpack.c.b16 %v332, %v331
  %v375 = vpack.c.b16 %v334, %v333
  %v376 = vpack.c.b16 %v336, %v335
  %v377 = vpack.c.b16 %v338, %v337
  %v378 = vpack.c.b16 %v340, %v339
  %v379 = vpack.c.b16 %v342, %v341
  %v380 = vpack.c.b16 %v344, %v343
  %v381 = vpack.c.b16 %v346, %v345
  %v382 = vpack.c.b16 %v348, %v347
  %v383 = vpack.c.b16 %v350, %v349
  %v384 = vpack.c.b16 %v352, %v351
  %v433 = vunpack.c.l.b16 %v209
  %v434 = vunpack.c.l.b16 %v210
  %v435 = vunpack.c.l.b16 %v211
  %v436 = vunpack.c.l.b16 %v212
  %v437 = vunpack.c.l.b16 %v213
  %v438 = vunpack.c.l.b16 %v214
  %v439 = vunpack.c.l.b16 %v215
  %v440 = vunpack.c.l.b16 %v216
  %v441 = vunpack.c.l.b16 %v217
  %v442 = vunpack.c.l.b16 %v218
  %v443 = vunpack.c.l.b16 %v219
  %v444 = vunpack.c.l.b16 %v220
  %v445 = vunpack.c.l.b16 %v221
  %v446 = vunpack.c.l.b16 %v222
  %v447 = vunpack.c.l.b16 %v223
  %v448 = vunpack.c.l.b16 %v224
  %v449 = vpack.c.b16 %v434, %v433
  %v450 = vpack.c.b16 %v436, %v435
  %v451 = vpack.c.b16 %v438, %v437
  %v452 = vpack.c.b16 %v440, %v439
  %v453 = vpack.c.b16 %v442, %v441
  %v454 = vpack.c.b16 %v444, %v443
  %v455 = vpack.c.b16 %v446, %v445
  %v456 = vpack.c.b16 %v448, %v447
  %465 = vmatprep.subr.bf16.mxu0 0
  %466 = vmatpush1.bf16.msra.mxu0 %v449
  %467 = vmatprep.subr.bf16.mxu0 0
  %468 = vmatpush1.bf16.msra.mxu0 %v450
  %469 = vmatprep.subr.bf16.mxu0 0
  %470 = vmatpush1.bf16.msra.mxu0 %v451
  %471 = vmatprep.subr.bf16.mxu0 0
  %472 = vmatpush1.bf16.msra.mxu0 %v452
  %473 = vmatprep.subr.bf16.mxu0 0
  %474 = vmatpush1.bf16.msra.mxu0 %v453
  %475 = vmatprep.subr.bf16.mxu0 0
  %476 = vmatpush1.bf16.msra.mxu0 %v454
  %477 = vmatprep.subr.bf16.mxu0 0
  %478 = vmatpush1.bf16.msra.mxu0 %v455
  %479 = vmatprep.subr.bf16.mxu0 0
  %480 = vmatpush1.bf16.msra.mxu0 %v456
  %481 = vmatprep.subr.bf16.mxu0 0
  %482 = vmatpush1.bf16.msra.mxu0 0
  %483 = vmatprep.subr.bf16.mxu0 0
  %484 = vmatpush1.bf16.msra.mxu0 0
  %485 = vmatprep.subr.bf16.mxu0 0
  %486 = vmatpush1.bf16.msra.mxu0 0
  %487 = vmatprep.subr.bf16.mxu0 0
  %488 = vmatpush1.bf16.msra.mxu0 0
  %489 = vmatprep.subr.bf16.mxu0 0
  %490 = vmatpush1.bf16.msra.mxu0 0
  %491 = vmatprep.subr.bf16.mxu0 0
  %492 = vmatpush1.bf16.msra.mxu0 0
  %493 = vmatprep.subr.bf16.mxu0 0
  %494 = vmatpush1.bf16.msra.mxu0 0
  %495 = vmatprep.subr.bf16.mxu0 0
  %496 = vmatpush1.bf16.msra.mxu0 0
  %497 = vmatprep.mubr.bf16.mxu0 0
  %498 = vmatmul.mubr.bf16.gmra.mrb[0].mxu0 %v353
  %v499 = vpop.f32.mrb[0].mxu0
  %v500 = vadd.f32 0.0, %v499
  %v501 = vpop.f32.mrb[0].mxu0
  %v502 = vpop.f32.mrb[0].mxu0
  %v503 = vadd.f32 0.0, %v502
  %v504 = vpop.f32.mrb[0].mxu0
  %505 = vmatprep.mubr.bf16.mxu0 0
  %506 = vmatmul.mubr.bf16.gmra.mrb[0].mxu0 %v354
  %v507 = vpop.f32.mrb[0].mxu0
  %v508 = vadd.f32 0.0, %v507
  %v509 = vpop.f32.mrb[0].mxu0
  %v510 = vpop.f32.mrb[0].mxu0
  %v511 = vadd.f32 0.0, %v510
  %v512 = vpop.f32.mrb[0].mxu0
  %513 = vmatprep.mubr.bf16.mxu0 0
  %514 = vmatmul.mubr.bf16.gmra.mrb[0].mxu0 %v355
  %v515 = vpop.f32.mrb[0].mxu0
  %v516 = vadd.f32 0.0, %v515
  %v517 = vpop.f32.mrb[0].mxu0
  %v518 = vpop.f32.mrb[0].mxu0
  %v519 = vadd.f32 0.0, %v518
  %v520 = vpop.f32.mrb[0].mxu0
  %521 = vmatprep.mubr.bf16.mxu0 0
  %522 = vmatmul.mubr.bf16.gmra.mrb[0].mxu0 %v356
  %v523 = vpop.f32.mrb[0].mxu0
  %v524 = vadd.f32 0.0, %v523
  %v525 = vpop.f32.mrb[0].mxu0
  %v526 = vpop.f32.mrb[0].mxu0
  %v527 = vadd.f32 0.0, %v526
  %v528 = vpop.f32.mrb[0].mxu0
  %529 = vmatprep.mubr.bf16.mxu0 0
  %530 = vmatmul.mubr.bf16.gmra.mrb[0].mxu0 %v357
  %v531 = vpop.f32.mrb[0].mxu0
  %v532 = vadd.f32 0.0, %v531
  %v533 = vpop.f32.mrb[0].mxu0
  %v534 = vpop.f32.mrb[0].mxu0
  %v535 = vadd.f32 0.0, %v534
  %v536 = vpop.f32.mrb[0].mxu0
  %537 = vmatprep.mubr.bf16.mxu0 0
  %538 = vmatmul.mubr.bf16.gmra.mrb[0].mxu0 %v358
  %v539 = vpop.f32.mrb[0].mxu0
  %v540 = vadd.f32 0.0, %v539
  %v541 = vpop.f32.mrb[0].mxu0
  %v542 = vpop.f32.mrb[0].mxu0
  %v543 = vadd.f32 0.0, %v542
  %v544 = vpop.f32.mrb[0].mxu0
  %545 = vmatprep.mubr.bf16.mxu0 0
  %546 = vmatmul.mubr.bf16.gmra.mrb[0].mxu0 %v359
  %v547 = vpop.f32.mrb[0].mxu0
  %v548 = vadd.f32 0.0, %v547
  %v549 = vpop.f32.mrb[0].mxu0
  %v550 = vpop.f32.mrb[0].mxu0
  %v551 = vadd.f32 0.0, %v550
  %v552 = vpop.f32.mrb[0].mxu0
  %553 = vmatprep.mubr.bf16.mxu0 0
  %554 = vmatmul.mubr.bf16.gmra.mrb[0].mxu0 %v360
  %v555 = vpop.f32.mrb[0].mxu0
  %v556 = vadd.f32 0.0, %v555
  %v557 = vpop.f32.mrb[0].mxu0
  %v558 = vpop.f32.mrb[0].mxu0
  %v559 = vadd.f32 0.0, %v558
  %v560 = vpop.f32.mrb[0].mxu0
  %561 = vmatprep.mubr.bf16.mxu0 0
  %562 = vmatmul.mubr.bf16.gmra.mrb[0].mxu0 %v361
  %v563 = vpop.f32.mrb[0].mxu0
  %v564 = vadd.f32 0.0, %v563
  %v565 = vpop.f32.mrb[0].mxu0
  %v566 = vpop.f32.mrb[0].mxu0
  %v567 = vadd.f32 0.0, %v566
  %v568 = vpop.f32.mrb[0].mxu0
  %569 = vmatprep.mubr.bf16.mxu0 0
  %570 = vmatmul.mubr.bf16.gmra.mrb[0].mxu0 %v362
  %v571 = vpop.f32.mrb[0].mxu0
  %v572 = vadd.f32 0.0, %v571
  %v573 = vpop.f32.mrb[0].mxu0
  %v574 = vpop.f32.mrb[0].mxu0
  %v575 = vadd.f32 0.0, %v574
  %v576 = vpop.f32.mrb[0].mxu0
  %577 = vmatprep.mubr.bf16.mxu0 0
  %578 = vmatmul.mubr.bf16.gmra.mrb[0].mxu0 %v363
  %v579 = vpop.f32.mrb[0].mxu0
  %v580 = vadd.f32 0.0, %v579
  %v581 = vpop.f32.mrb[0].mxu0
  %v582 = vpop.f32.mrb[0].mxu0
  %v583 = vadd.f32 0.0, %v582
  %v584 = vpop.f32.mrb[0].mxu0
  %585 = vmatprep.mubr.bf16.mxu0 0
  %586 = vmatmul.mubr.bf16.gmra.mrb[0].mxu0 %v364
  %v587 = vpop.f32.mrb[0].mxu0
  %v588 = vadd.f32 0.0, %v587
  %v589 = vpop.f32.mrb[0].mxu0
  %v590 = vpop.f32.mrb[0].mxu0
  %v591 = vadd.f32 0.0, %v590
  %v592 = vpop.f32.mrb[0].mxu0
  %593 = vmatprep.mubr.bf16.mxu0 0
  %594 = vmatmul.mubr.bf16.gmra.mrb[0].mxu0 %v365
  %v595 = vpop.f32.mrb[0].mxu0
  %v596 = vadd.f32 0.0, %v595
  %v597 = vpop.f32.mrb[0].mxu0
  %v598 = vpop.f32.mrb[0].mxu0
  %v599 = vadd.f32 0.0, %v598
  %v600 = vpop.f32.mrb[0].mxu0
  %601 = vmatprep.mubr.bf16.mxu0 0
  %602 = vmatmul.mubr.bf16.gmra.mrb[0].mxu0 %v366
  %v603 = vpop.f32.mrb[0].mxu0
  %v604 = vadd.f32 0.0, %v603
  %v605 = vpop.f32.mrb[0].mxu0
  %v606 = vpop.f32.mrb[0].mxu0
  %v607 = vadd.f32 0.0, %v606
  %v608 = vpop.f32.mrb[0].mxu0
  %609 = vmatprep.mubr.bf16.mxu0 0
  %610 = vmatmul.mubr.bf16.gmra.mrb[0].mxu0 %v367
  %v611 = vpop.f32.mrb[0].mxu0
  %v612 = vadd.f32 0.0, %v611
  %v613 = vpop.f32.mrb[0].mxu0
  %v614 = vpop.f32.mrb[0].mxu0
  %v615 = vadd.f32 0.0, %v614
  %v616 = vpop.f32.mrb[0].mxu0
  %617 = vmatprep.mubr.bf16.mxu0 0
  %618 = vmatmul.mubr.bf16.gmra.mrb[0].mxu0 %v368
  %v619 = vpop.f32.mrb[0].mxu0
  %v620 = vadd.f32 0.0, %v619
  %v621 = vpop.f32.mrb[0].mxu0
  %v622 = vpop.f32.mrb[0].mxu0
  %v623 = vadd.f32 0.0, %v622
  %v624 = vpop.f32.mrb[0].mxu0
  %625 = vmatprep.mubr.bf16.mxu0 0
  %626 = vmatmul.mubr.bf16.gmra.mrb[0].mxu0 %v369
  %v627 = vpop.f32.mrb[0].mxu0
  %v628 = vadd.f32 0.0, %v627
  %v629 = vpop.f32.mrb[0].mxu0
  %v630 = vpop.f32.mrb[0].mxu0
  %v631 = vadd.f32 0.0, %v630
  %v632 = vpop.f32.mrb[0].mxu0
  %633 = vmatprep.mubr.bf16.mxu0 0
  %634 = vmatmul.mubr.bf16.gmra.mrb[0].mxu0 %v370
  %v635 = vpop.f32.mrb[0].mxu0
  %v636 = vadd.f32 0.0, %v635
  %v637 = vpop.f32.mrb[0].mxu0
  %v638 = vpop.f32.mrb[0].mxu0
  %v639 = vadd.f32 0.0, %v638
  %v640 = vpop.f32.mrb[0].mxu0
  %641 = vmatprep.mubr.bf16.mxu0 0
  %642 = vmatmul.mubr.bf16.gmra.mrb[0].mxu0 %v371
  %v643 = vpop.f32.mrb[0].mxu0
  %v644 = vadd.f32 0.0, %v643
  %v645 = vpop.f32.mrb[0].mxu0
  %v646 = vpop.f32.mrb[0].mxu0
  %v647 = vadd.f32 0.0, %v646
  %v648 = vpop.f32.mrb[0].mxu0
  %649 = vmatprep.mubr.bf16.mxu0 0
  %650 = vmatmul.mubr.bf16.gmra.mrb[0].mxu0 %v372
  %v651 = vpop.f32.mrb[0].mxu0
  %v652 = vadd.f32 0.0, %v651
  %v653 = vpop.f32.mrb[0].mxu0
  %v654 = vpop.f32.mrb[0].mxu0
  %v655 = vadd.f32 0.0, %v654
  %v656 = vpop.f32.mrb[0].mxu0
  %657 = vmatprep.mubr.bf16.mxu0 0
  %658 = vmatmul.mubr.bf16.gmra.mrb[0].mxu0 %v373
  %v659 = vpop.f32.mrb[0].mxu0
  %v660 = vadd.f32 0.0, %v659
  %v661 = vpop.f32.mrb[0].mxu0
  %v662 = vpop.f32.mrb[0].mxu0
  %v663 = vadd.f32 0.0, %v662
  %v664 = vpop.f32.mrb[0].mxu0
  %665 = vmatprep.mubr.bf16.mxu0 0
  %666 = vmatmul.mubr.bf16.gmra.mrb[0].mxu0 %v374
  %v667 = vpop.f32.mrb[0].mxu0
  %v668 = vadd.f32 0.0, %v667
  %v669 = vpop.f32.mrb[0].mxu0
  %v670 = vpop.f32.mrb[0].mxu0
  %v671 = vadd.f32 0.0, %v670
  %v672 = vpop.f32.mrb[0].mxu0
  %673 = vmatprep.mubr.bf16.mxu0 0
  %674 = vmatmul.mubr.bf16.gmra.mrb[0].mxu0 %v375
  %v675 = vpop.f32.mrb[0].mxu0
  %v676 = vadd.f32 0.0, %v675
  %v677 = vpop.f32.mrb[0].mxu0
  %v678 = vpop.f32.mrb[0].mxu0
  %v679 = vadd.f32 0.0, %v678
  %v680 = vpop.f32.mrb[0].mxu0
  %681 = vmatprep.mubr.bf16.mxu0 0
  %682 = vmatmul.mubr.bf16.gmra.mrb[0].mxu0 %v376
  %v683 = vpop.f32.mrb[0].mxu0
  %v684 = vadd.f32 0.0, %v683
  %v685 = vpop.f32.mrb[0].mxu0
  %v686 = vpop.f32.mrb[0].mxu0
  %v687 = vadd.f32 0.0, %v686
  %v688 = vpop.f32.mrb[0].mxu0
  %689 = vmatprep.mubr.bf16.mxu0 0
  %690 = vmatmul.mubr.bf16.gmra.mrb[0].mxu0 %v377
  %v691 = vpop.f32.mrb[0].mxu0
  %v692 = vadd.f32 0.0, %v691
  %v693 = vpop.f32.mrb[0].mxu0
  %v694 = vpop.f32.mrb[0].mxu0
  %v695 = vadd.f32 0.0, %v694
  %v696 = vpop.f32.mrb[0].mxu0
  %697 = vmatprep.mubr.bf16.mxu0 0
  %698 = vmatmul.mubr.bf16.gmra.mrb[0].mxu0 %v378
  %v699 = vpop.f32.mrb[0].mxu0
  %v700 = vadd.f32 0.0, %v699
  %v701 = vpop.f32.mrb[0].mxu0
  %v702 = vpop.f32.mrb[0].mxu0
  %v703 = vadd.f32 0.0, %v702
  %v704 = vpop.f32.mrb[0].mxu0
  %705 = vmatprep.mubr.bf16.mxu0 0
  %706 = vmatmul.mubr.bf16.gmra.mrb[0].mxu0 %v379
  %v707 = vpop.f32.mrb[0].mxu0
  %v708 = vadd.f32 0.0, %v707
  %v709 = vpop.f32.mrb[0].mxu0
  %v710 = vpop.f32.mrb[0].mxu0
  %v711 = vadd.f32 0.0, %v710
  %v712 = vpop.f32.mrb[0].mxu0
  %713 = vmatprep.mubr.bf16.mxu0 0
  %714 = vmatmul.mubr.bf16.gmra.mrb[0].mxu0 %v380
  %v715 = vpop.f32.mrb[0].mxu0
  %v716 = vadd.f32 0.0, %v715
  %v717 = vpop.f32.mrb[0].mxu0
  %v718 = vpop.f32.mrb[0].mxu0
  %v719 = vadd.f32 0.0, %v718
  %v720 = vpop.f32.mrb[0].mxu0
  %721 = vmatprep.mubr.bf16.mxu0 0
  %722 = vmatmul.mubr.bf16.gmra.mrb[0].mxu0 %v381
  %v723 = vpop.f32.mrb[0].mxu0
  %v724 = vadd.f32 0.0, %v723
  %v725 = vpop.f32.mrb[0].mxu0
  %v726 = vpop.f32.mrb[0].mxu0
  %v727 = vadd.f32 0.0, %v726
  %v728 = vpop.f32.mrb[0].mxu0
  %729 = vmatprep.mubr.bf16.mxu0 0
  %730 = vmatmul.mubr.bf16.gmra.mrb[0].mxu0 %v382
  %v731 = vpop.f32.mrb[0].mxu0
  %v732 = vadd.f32 0.0, %v731
  %v733 = vpop.f32.mrb[0].mxu0
  %v734 = vpop.f32.mrb[0].mxu0
  %v735 = vadd.f32 0.0, %v734
  %v736 = vpop.f32.mrb[0].mxu0
  %737 = vmatprep.mubr.bf16.mxu0 0
  %738 = vmatmul.mubr.bf16.gmra.mrb[0].mxu0 %v383
  %v739 = vpop.f32.mrb[0].mxu0
  %v740 = vadd.f32 0.0, %v739
  %v741 = vpop.f32.mrb[0].mxu0
  %v742 = vpop.f32.mrb[0].mxu0
  %v743 = vadd.f32 0.0, %v742
  %v744 = vpop.f32.mrb[0].mxu0
  %745 = vmatprep.mubr.bf16.mxu0 0
  %746 = vmatmul.mubr.bf16.gmra.mrb[0].mxu0 %v384
  %v747 = vpop.f32.mrb[0].mxu0
  %v748 = vadd.f32 0.0, %v747
  %v749 = vpop.f32.mrb[0].mxu0
  %v750 = vpop.f32.mrb[0].mxu0
  %v751 = vadd.f32 0.0, %v750
  %v752 = vpop.f32.mrb[0].mxu0
  %753 = vdwg.mxu0
  %v754 = vadd.f32 %v81, %v500
  %v755 = vadd.f32 %v82, %v503
  %v756 = vadd.f32 %v83, %v508
  %v757 = vadd.f32 %v84, %v511
  %v758 = vadd.f32 %v85, %v516
  %v759 = vadd.f32 %v86, %v519
  %v760 = vadd.f32 %v87, %v524
  %v761 = vadd.f32 %v88, %v527
  %v762 = vadd.f32 %v89, %v532
  %v763 = vadd.f32 %v90, %v535
  %v764 = vadd.f32 %v91, %v540
  %v765 = vadd.f32 %v92, %v543
  %v766 = vadd.f32 %v93, %v548
  %v767 = vadd.f32 %v94, %v551
  %v768 = vadd.f32 %v95, %v556
  %v769 = vadd.f32 %v96, %v559
  %v770 = vadd.f32 %v97, %v564
  %v771 = vadd.f32 %v98, %v567
  %v772 = vadd.f32 %v99, %v572
  %v773 = vadd.f32 %v100, %v575
  %v774 = vadd.f32 %v101, %v580
  %v775 = vadd.f32 %v102, %v583
  %v776 = vadd.f32 %v103, %v588
  %v777 = vadd.f32 %v104, %v591
  %v778 = vadd.f32 %v105, %v596
  %v779 = vadd.f32 %v106, %v599
  %v780 = vadd.f32 %v107, %v604
  %v781 = vadd.f32 %v108, %v607
  %v782 = vadd.f32 %v109, %v612
  %v783 = vadd.f32 %v110, %v615
  %v784 = vadd.f32 %v111, %v620
  %v785 = vadd.f32 %v112, %v623
  %v786 = vadd.f32 %v113, %v628
  %v787 = vadd.f32 %v114, %v631
  %v788 = vadd.f32 %v115, %v636
  %v789 = vadd.f32 %v116, %v639
  %v790 = vadd.f32 %v117, %v644
  %v791 = vadd.f32 %v118, %v647
  %v792 = vadd.f32 %v119, %v652
  %v793 = vadd.f32 %v120, %v655
  %v794 = vadd.f32 %v121, %v660
  %v795 = vadd.f32 %v122, %v663
  %v796 = vadd.f32 %v123, %v668
  %v797 = vadd.f32 %v124, %v671
  %v798 = vadd.f32 %v125, %v676
  %v799 = vadd.f32 %v126, %v679
  %v800 = vadd.f32 %v127, %v684
  %v801 = vadd.f32 %v128, %v687
  %v802 = vadd.f32 %v129, %v692
  %v803 = vadd.f32 %v130, %v695
  %v804 = vadd.f32 %v131, %v700
  %v805 = vadd.f32 %v132, %v703
  %v806 = vadd.f32 %v133, %v708
  %v807 = vadd.f32 %v134, %v711
  %v808 = vadd.f32 %v135, %v716
  %v809 = vadd.f32 %v136, %v719
  %v810 = vadd.f32 %v137, %v724
  %v811 = vadd.f32 %v138, %v727
  %v812 = vadd.f32 %v139, %v732
  %v813 = vadd.f32 %v140, %v735
  %v814 = vadd.f32 %v141, %v740
  %v815 = vadd.f32 %v142, %v743
  %v816 = vadd.f32 %v143, %v748
  %v817 = vadd.f32 %v144, %v751
  %vm818 = vcmask 130048
  %819 = vst.msk [vmem:[#allocation2] sm:$0xff] %vm818, %v754
  %820 = vst.msk [vmem:[#allocation2 + $0x8] sm:$0xff] %vm818, %v755
  %821 = vst.msk [vmem:[#allocation2 + $0x10] sm:$0xff] %vm818, %v756
  %822 = vst.msk [vmem:[#allocation2 + $0x18] sm:$0xff] %vm818, %v757
  %823 = vst.msk [vmem:[#allocation2 + $0x20] sm:$0xff] %vm818, %v758
  %824 = vst.msk [vmem:[#allocation2 + $0x28] sm:$0xff] %vm818, %v759
  %825 = vst.msk [vmem:[#allocation2 + $0x30] sm:$0xff] %vm818, %v760
  %826 = vst.msk [vmem:[#allocation2 + $0x38] sm:$0xff] %vm818, %v761
  %827 = vst.msk [vmem:[#allocation2 + $0x40] sm:$0xff] %vm818, %v762
  %828 = vst.msk [vmem:[#allocation2 + $0x48] sm:$0xff] %vm818, %v763
  %829 = vst.msk [vmem:[#allocation2 + $0x50] sm:$0xff] %vm818, %v764
  %830 = vst.msk [vmem:[#allocation2 + $0x58] sm:$0xff] %vm818, %v765
  %831 = vst.msk [vmem:[#allocation2 + $0x60] sm:$0xff] %vm818, %v766
  %832 = vst.msk [vmem:[#allocation2 + $0x68] sm:$0xff] %vm818, %v767
  %833 = vst.msk [vmem:[#allocation2 + $0x70] sm:$0xff] %vm818, %v768
  %834 = vst.msk [vmem:[#allocation2 + $0x78] sm:$0xff] %vm818, %v769
  %835 = vst.msk [vmem:[#allocation2 + $0x80] sm:$0xff] %vm818, %v770
  %836 = vst.msk [vmem:[#allocation2 + $0x88] sm:$0xff] %vm818, %v771
  %837 = vst.msk [vmem:[#allocation2 + $0x90] sm:$0xff] %vm818, %v772
  %838 = vst.msk [vmem:[#allocation2 + $0x98] sm:$0xff] %vm818, %v773
  %839 = vst.msk [vmem:[#allocation2 + $0xa0] sm:$0xff] %vm818, %v774
  %840 = vst.msk [vmem:[#allocation2 + $0xa8] sm:$0xff] %vm818, %v775
  %841 = vst.msk [vmem:[#allocation2 + $0xb0] sm:$0xff] %vm818, %v776
  %842 = vst.msk [vmem:[#allocation2 + $0xb8] sm:$0xff] %vm818, %v777
  %843 = vst.msk [vmem:[#allocation2 + $0xc0] sm:$0xff] %vm818, %v778
  %844 = vst.msk [vmem:[#allocation2 + $0xc8] sm:$0xff] %vm818, %v779
  %845 = vst.msk [vmem:[#allocation2 + $0xd0] sm:$0xff] %vm818, %v780
  %846 = vst.msk [vmem:[#allocation2 + $0xd8] sm:$0xff] %vm818, %v781
  %847 = vst.msk [vmem:[#allocation2 + $0xe0] sm:$0xff] %vm818, %v782
  %848 = vst.msk [vmem:[#allocation2 + $0xe8] sm:$0xff] %vm818, %v783
  %849 = vst.msk [vmem:[#allocation2 + $0xf0] sm:$0xff] %vm818, %v784
  %850 = vst.msk [vmem:[#allocation2 + $0xf8] sm:$0xff] %vm818, %v785
  %851 = vst.msk [vmem:[#allocation2 + $0x100] sm:$0xff] %vm818, %v786
  %852 = vst.msk [vmem:[#allocation2 + $0x108] sm:$0xff] %vm818, %v787
  %853 = vst.msk [vmem:[#allocation2 + $0x110] sm:$0xff] %vm818, %v788
  %854 = vst.msk [vmem:[#allocation2 + $0x118] sm:$0xff] %vm818, %v789
  %855 = vst.msk [vmem:[#allocation2 + $0x120] sm:$0xff] %vm818, %v790
  %856 = vst.msk [vmem:[#allocation2 + $0x128] sm:$0xff] %vm818, %v791
  %857 = vst.msk [vmem:[#allocation2 + $0x130] sm:$0xff] %vm818, %v792
  %858 = vst.msk [vmem:[#allocation2 + $0x138] sm:$0xff] %vm818, %v793
  %859 = vst.msk [vmem:[#allocation2 + $0x140] sm:$0xff] %vm818, %v794
  %860 = vst.msk [vmem:[#allocation2 + $0x148] sm:$0xff] %vm818, %v795
  %861 = vst.msk [vmem:[#allocation2 + $0x150] sm:$0xff] %vm818, %v796
  %862 = vst.msk [vmem:[#allocation2 + $0x158] sm:$0xff] %vm818, %v797
  %863 = vst.msk [vmem:[#allocation2 + $0x160] sm:$0xff] %vm818, %v798
  %864 = vst.msk [vmem:[#allocation2 + $0x168] sm:$0xff] %vm818, %v799
  %865 = vst.msk [vmem:[#allocation2 + $0x170] sm:$0xff] %vm818, %v800
  %866 = vst.msk [vmem:[#allocation2 + $0x178] sm:$0xff] %vm818, %v801
  %867 = vst.msk [vmem:[#allocation2 + $0x180] sm:$0xff] %vm818, %v802
  %868 = vst.msk [vmem:[#allocation2 + $0x188] sm:$0xff] %vm818, %v803
  %869 = vst.msk [vmem:[#allocation2 + $0x190] sm:$0xff] %vm818, %v804
  %870 = vst.msk [vmem:[#allocation2 + $0x198] sm:$0xff] %vm818, %v805
  %871 = vst.msk [vmem:[#allocation2 + $0x1a0] sm:$0xff] %vm818, %v806
  %872 = vst.msk [vmem:[#allocation2 + $0x1a8] sm:$0xff] %vm818, %v807
  %873 = vst.msk [vmem:[#allocation2 + $0x1b0] sm:$0xff] %vm818, %v808
  %874 = vst.msk [vmem:[#allocation2 + $0x1b8] sm:$0xff] %vm818, %v809
  %875 = vst.msk [vmem:[#allocation2 + $0x1c0] sm:$0xff] %vm818, %v810
  %876 = vst.msk [vmem:[#allocation2 + $0x1c8] sm:$0xff] %vm818, %v811
  %877 = vst.msk [vmem:[#allocation2 + $0x1d0] sm:$0xff] %vm818, %v812
  %878 = vst.msk [vmem:[#allocation2 + $0x1d8] sm:$0xff] %vm818, %v813
  %879 = vst.msk [vmem:[#allocation2 + $0x1e0] sm:$0xff] %vm818, %v814
  %880 = vst.msk [vmem:[#allocation2 + $0x1e8] sm:$0xff] %vm818, %v815
  %881 = vst.msk [vmem:[#allocation2 + $0x1f0] sm:$0xff] %vm818, %v816
  %882 = vst.msk [vmem:[#allocation2 + $0x1f8] sm:$0xff] %vm818, %v817
  // Predicated region
  $region14: #{critic_forward.5} parent=0 // pred_check
    %p883 = pneg %p12
  $region15: #{critic_forward.5} parent=0 // pred_check_branch
    %885 = sbr.rel (%p883) target = $region17
  $region16: #{critic_forward.5} parent=0 // pred_region
    %v886 = vld [vmem:[#allocation2] sm:$0xff]
    %v887 = vld [vmem:[#allocation2 + $0x8] sm:$0xff]
    %v888 = vld [vmem:[#allocation2 + $0x10] sm:$0xff]
    %v889 = vld [vmem:[#allocation2 + $0x18] sm:$0xff]
    %v890 = vld [vmem:[#allocation2 + $0x20] sm:$0xff]
    %v891 = vld [vmem:[#allocation2 + $0x28] sm:$0xff]
    %v892 = vld [vmem:[#allocation2 + $0x30] sm:$0xff]
    %v893 = vld [vmem:[#allocation2 + $0x38] sm:$0xff]
    %v894 = vld [vmem:[#allocation2 + $0x40] sm:$0xff]
    %v895 = vld [vmem:[#allocation2 + $0x48] sm:$0xff]
    %v896 = vld [vmem:[#allocation2 + $0x50] sm:$0xff]
    %v897 = vld [vmem:[#allocation2 + $0x58] sm:$0xff]
    %v898 = vld [vmem:[#allocation2 + $0x60] sm:$0xff]
    %v899 = vld [vmem:[#allocation2 + $0x68] sm:$0xff]
    %v900 = vld [vmem:[#allocation2 + $0x70] sm:$0xff]
    %v901 = vld [vmem:[#allocation2 + $0x78] sm:$0xff]
    %v902 = vld [vmem:[#allocation2 + $0x80] sm:$0xff]
    %v903 = vld [vmem:[#allocation2 + $0x88] sm:$0xff]
    %v904 = vld [vmem:[#allocation2 + $0x90] sm:$0xff]
    %v905 = vld [vmem:[#allocation2 + $0x98] sm:$0xff]
    %v906 = vld [vmem:[#allocation2 + $0xa0] sm:$0xff]
    %v907 = vld [vmem:[#allocation2 + $0xa8] sm:$0xff]
    %v908 = vld [vmem:[#allocation2 + $0xb0] sm:$0xff]
    %v909 = vld [vmem:[#allocation2 + $0xb8] sm:$0xff]
    %v910 = vld [vmem:[#allocation2 + $0xc0] sm:$0xff]
    %v911 = vld [vmem:[#allocation2 + $0xc8] sm:$0xff]
    %v912 = vld [vmem:[#allocation2 + $0xd0] sm:$0xff]
    %v913 = vld [vmem:[#allocation2 + $0xd8] sm:$0xff]
    %v914 = vld [vmem:[#allocation2 + $0xe0] sm:$0xff]
    %v915 = vld [vmem:[#allocation2 + $0xe8] sm:$0xff]
    %v916 = vld [vmem:[#allocation2 + $0xf0] sm:$0xff]
    %v917 = vld [vmem:[#allocation2 + $0xf8] sm:$0xff]
    %v918 = vld [vmem:[#allocation2 + $0x100] sm:$0xff]
    %v919 = vld [vmem:[#allocation2 + $0x108] sm:$0xff]
    %v920 = vld [vmem:[#allocation2 + $0x110] sm:$0xff]
    %v921 = vld [vmem:[#allocation2 + $0x118] sm:$0xff]
    %v922 = vld [vmem:[#allocation2 + $0x120] sm:$0xff]
    %v923 = vld [vmem:[#allocation2 + $0x128] sm:$0xff]
    %v924 = vld [vmem:[#allocation2 + $0x130] sm:$0xff]
    %v925 = vld [vmem:[#allocation2 + $0x138] sm:$0xff]
    %v926 = vld [vmem:[#allocation2 + $0x140] sm:$0xff]
    %v927 = vld [vmem:[#allocation2 + $0x148] sm:$0xff]
    %v928 = vld [vmem:[#allocation2 + $0x150] sm:$0xff]
    %v929 = vld [vmem:[#allocation2 + $0x158] sm:$0xff]
    %v930 = vld [vmem:[#allocation2 + $0x160] sm:$0xff]
    %v931 = vld [vmem:[#allocation2 + $0x168] sm:$0xff]
    %v932 = vld [vmem:[#allocation2 + $0x170] sm:$0xff]
    %v933 = vld [vmem:[#allocation2 + $0x178] sm:$0xff]
    %v934 = vld [vmem:[#allocation2 + $0x180] sm:$0xff]
    %v935 = vld [vmem:[#allocation2 + $0x188] sm:$0xff]
    %v936 = vld [vmem:[#allocation2 + $0x190] sm:$0xff]
    %v937 = vld [vmem:[#allocation2 + $0x198] sm:$0xff]
    %v938 = vld [vmem:[#allocation2 + $0x1a0] sm:$0xff]
    %v939 = vld [vmem:[#allocation2 + $0x1a8] sm:$0xff]
    %v940 = vld [vmem:[#allocation2 + $0x1b0] sm:$0xff]
    %v941 = vld [vmem:[#allocation2 + $0x1b8] sm:$0xff]
    %v942 = vld [vmem:[#allocation2 + $0x1c0] sm:$0xff]
    %v943 = vld [vmem:[#allocation2 + $0x1c8] sm:$0xff]
    %v944 = vld [vmem:[#allocation2 + $0x1d0] sm:$0xff]
    %v945 = vld [vmem:[#allocation2 + $0x1d8] sm:$0xff]
    %v946 = vld [vmem:[#allocation2 + $0x1e0] sm:$0xff]
    %v947 = vld [vmem:[#allocation2 + $0x1e8] sm:$0xff]
    %v948 = vld [vmem:[#allocation2 + $0x1f0] sm:$0xff]
    %v949 = vld [vmem:[#allocation2 + $0x1f8] sm:$0xff]
    %vm950 = vcmp.ge.f32.partialorder %v886, 0.0
    %vm951 = vcmp.ge.f32.partialorder %v887, 0.0
    %vm952 = vcmp.ge.f32.partialorder %v888, 0.0
    %vm953 = vcmp.ge.f32.partialorder %v889, 0.0
    %vm954 = vcmp.ge.f32.partialorder %v890, 0.0
    %vm955 = vcmp.ge.f32.partialorder %v891, 0.0
    %vm956 = vcmp.ge.f32.partialorder %v892, 0.0
    %vm957 = vcmp.ge.f32.partialorder %v893, 0.0
    %vm958 = vcmp.ge.f32.partialorder %v894, 0.0
    %vm959 = vcmp.ge.f32.partialorder %v895, 0.0
    %vm960 = vcmp.ge.f32.partialorder %v896, 0.0
    %vm961 = vcmp.ge.f32.partialorder %v897, 0.0
    %vm962 = vcmp.ge.f32.partialorder %v898, 0.0
    %vm963 = vcmp.ge.f32.partialorder %v899, 0.0
    %vm964 = vcmp.ge.f32.partialorder %v900, 0.0
    %vm965 = vcmp.ge.f32.partialorder %v901, 0.0
    %vm966 = vcmp.ge.f32.partialorder %v902, 0.0
    %vm967 = vcmp.ge.f32.partialorder %v903, 0.0
    %vm968 = vcmp.ge.f32.partialorder %v904, 0.0
    %vm969 = vcmp.ge.f32.partialorder %v905, 0.0
    %vm970 = vcmp.ge.f32.partialorder %v906, 0.0
    %vm971 = vcmp.ge.f32.partialorder %v907, 0.0
    %vm972 = vcmp.ge.f32.partialorder %v908, 0.0
    %vm973 = vcmp.ge.f32.partialorder %v909, 0.0
    %vm974 = vcmp.ge.f32.partialorder %v910, 0.0
    %vm975 = vcmp.ge.f32.partialorder %v911, 0.0
    %vm976 = vcmp.ge.f32.partialorder %v912, 0.0
    %vm977 = vcmp.ge.f32.partialorder %v913, 0.0
    %vm978 = vcmp.ge.f32.partialorder %v914, 0.0
    %vm979 = vcmp.ge.f32.partialorder %v915, 0.0
    %vm980 = vcmp.ge.f32.partialorder %v916, 0.0
    %vm981 = vcmp.ge.f32.partialorder %v917, 0.0
    %vm982 = vcmp.ge.f32.partialorder %v918, 0.0
    %vm983 = vcmp.ge.f32.partialorder %v919, 0.0
    %vm984 = vcmp.ge.f32.partialorder %v920, 0.0
    %vm985 = vcmp.ge.f32.partialorder %v921, 0.0
    %vm986 = vcmp.ge.f32.partialorder %v922, 0.0
    %vm987 = vcmp.ge.f32.partialorder %v923, 0.0
    %vm988 = vcmp.ge.f32.partialorder %v924, 0.0
    %vm989 = vcmp.ge.f32.partialorder %v925, 0.0
    %vm990 = vcmp.ge.f32.partialorder %v926, 0.0
    %vm991 = vcmp.ge.f32.partialorder %v927, 0.0
    %vm992 = vcmp.ge.f32.partialorder %v928, 0.0
    %vm993 = vcmp.ge.f32.partialorder %v929, 0.0
    %vm994 = vcmp.ge.f32.partialorder %v930, 0.0
    %vm995 = vcmp.ge.f32.partialorder %v931, 0.0
    %vm996 = vcmp.ge.f32.partialorder %v932, 0.0
    %vm997 = vcmp.ge.f32.partialorder %v933, 0.0
    %vm998 = vcmp.ge.f32.partialorder %v934, 0.0
    %vm999 = vcmp.ge.f32.partialorder %v935, 0.0
    %vm1000 = vcmp.ge.f32.partialorder %v936, 0.0
    %vm1001 = vcmp.ge.f32.partialorder %v937, 0.0
    %vm1002 = vcmp.ge.f32.partialorder %v938, 0.0
    %vm1003 = vcmp.ge.f32.partialorder %v939, 0.0
    %vm1004 = vcmp.ge.f32.partialorder %v940, 0.0
    %vm1005 = vcmp.ge.f32.partialorder %v941, 0.0
    %vm1006 = vcmp.ge.f32.partialorder %v942, 0.0
    %vm1007 = vcmp.ge.f32.partialorder %v943, 0.0
    %vm1008 = vcmp.ge.f32.partialorder %v944, 0.0
    %vm1009 = vcmp.ge.f32.partialorder %v945, 0.0
    %vm1010 = vcmp.ge.f32.partialorder %v946, 0.0
    %vm1011 = vcmp.ge.f32.partialorder %v947, 0.0
    %vm1012 = vcmp.ge.f32.partialorder %v948, 0.0
    %vm1013 = vcmp.ge.f32.partialorder %v949, 0.0
    %v1014 = vmul.f32 %v886, 0.2
    %v1015 = vmul.f32 %v887, 0.2
    %v1016 = vmul.f32 %v888, 0.2
    %v1017 = vmul.f32 %v889, 0.2
    %v1018 = vmul.f32 %v890, 0.2
    %v1019 = vmul.f32 %v891, 0.2
    %v1020 = vmul.f32 %v892, 0.2
    %v1021 = vmul.f32 %v893, 0.2
    %v1022 = vmul.f32 %v894, 0.2
    %v1023 = vmul.f32 %v895, 0.2
    %v1024 = vmul.f32 %v896, 0.2
    %v1025 = vmul.f32 %v897, 0.2
    %v1026 = vmul.f32 %v898, 0.2
    %v1027 = vmul.f32 %v899, 0.2
    %v1028 = vmul.f32 %v900, 0.2
    %v1029 = vmul.f32 %v901, 0.2
    %v1030 = vmul.f32 %v902, 0.2
    %v1031 = vmul.f32 %v903, 0.2
    %v1032 = vmul.f32 %v904, 0.2
    %v1033 = vmul.f32 %v905, 0.2
    %v1034 = vmul.f32 %v906, 0.2
    %v1035 = vmul.f32 %v907, 0.2
    %v1036 = vmul.f32 %v908, 0.2
    %v1037 = vmul.f32 %v909, 0.2
    %v1038 = vmul.f32 %v910, 0.2
    %v1039 = vmul.f32 %v911, 0.2
    %v1040 = vmul.f32 %v912, 0.2
    %v1041 = vmul.f32 %v913, 0.2
    %v1042 = vmul.f32 %v914, 0.2
    %v1043 = vmul.f32 %v915, 0.2
    %v1044 = vmul.f32 %v916, 0.2
    %v1045 = vmul.f32 %v917, 0.2
    %v1046 = vmul.f32 %v918, 0.2
    %v1047 = vmul.f32 %v919, 0.2
    %v1048 = vmul.f32 %v920, 0.2
    %v1049 = vmul.f32 %v921, 0.2
    %v1050 = vmul.f32 %v922, 0.2
    %v1051 = vmul.f32 %v923, 0.2
    %v1052 = vmul.f32 %v924, 0.2
    %v1053 = vmul.f32 %v925, 0.2
    %v1054 = vmul.f32 %v926, 0.2
    %v1055 = vmul.f32 %v927, 0.2
    %v1056 = vmul.f32 %v928, 0.2
    %v1057 = vmul.f32 %v929, 0.2
    %v1058 = vmul.f32 %v930, 0.2
    %v1059 = vmul.f32 %v931, 0.2
    %v1060 = vmul.f32 %v932, 0.2
    %v1061 = vmul.f32 %v933, 0.2
    %v1062 = vmul.f32 %v934, 0.2
    %v1063 = vmul.f32 %v935, 0.2
    %v1064 = vmul.f32 %v936, 0.2
    %v1065 = vmul.f32 %v937, 0.2
    %v1066 = vmul.f32 %v938, 0.2
    %v1067 = vmul.f32 %v939, 0.2
    %v1068 = vmul.f32 %v940, 0.2
    %v1069 = vmul.f32 %v941, 0.2
    %v1070 = vmul.f32 %v942, 0.2
    %v1071 = vmul.f32 %v943, 0.2
    %v1072 = vmul.f32 %v944, 0.2
    %v1073 = vmul.f32 %v945, 0.2
    %v1074 = vmul.f32 %v946, 0.2
    %v1075 = vmul.f32 %v947, 0.2
    %v1076 = vmul.f32 %v948, 0.2
    %v1077 = vmul.f32 %v949, 0.2
    %v1078 = vsel %vm950, %v886, %v1014
    %v1079 = vsel %vm951, %v887, %v1015
    %v1080 = vsel %vm952, %v888, %v1016
    %v1081 = vsel %vm953, %v889, %v1017
    %v1082 = vsel %vm954, %v890, %v1018
    %v1083 = vsel %vm955, %v891, %v1019
    %v1084 = vsel %vm956, %v892, %v1020
    %v1085 = vsel %vm957, %v893, %v1021
    %v1086 = vsel %vm958, %v894, %v1022
    %v1087 = vsel %vm959, %v895, %v1023
    %v1088 = vsel %vm960, %v896, %v1024
    %v1089 = vsel %vm961, %v897, %v1025
    %v1090 = vsel %vm962, %v898, %v1026
    %v1091 = vsel %vm963, %v899, %v1027
    %v1092 = vsel %vm964, %v900, %v1028
    %v1093 = vsel %vm965, %v901, %v1029
    %v1094 = vsel %vm966, %v902, %v1030
    %v1095 = vsel %vm967, %v903, %v1031
    %v1096 = vsel %vm968, %v904, %v1032
    %v1097 = vsel %vm969, %v905, %v1033
    %v1098 = vsel %vm970, %v906, %v1034
    %v1099 = vsel %vm971, %v907, %v1035
    %v1100 = vsel %vm972, %v908, %v1036
    %v1101 = vsel %vm973, %v909, %v1037
    %v1102 = vsel %vm974, %v910, %v1038
    %v1103 = vsel %vm975, %v911, %v1039
    %v1104 = vsel %vm976, %v912, %v1040
    %v1105 = vsel %vm977, %v913, %v1041
    %v1106 = vsel %vm978, %v914, %v1042
    %v1107 = vsel %vm979, %v915, %v1043
    %v1108 = vsel %vm980, %v916, %v1044
    %v1109 = vsel %vm981, %v917, %v1045
    %v1110 = vsel %vm982, %v918, %v1046
    %v1111 = vsel %vm983, %v919, %v1047
    %v1112 = vsel %vm984, %v920, %v1048
    %v1113 = vsel %vm985, %v921, %v1049
    %v1114 = vsel %vm986, %v922, %v1050
    %v1115 = vsel %vm987, %v923, %v1051
    %v1116 = vsel %vm988, %v924, %v1052
    %v1117 = vsel %vm989, %v925, %v1053
    %v1118 = vsel %vm990, %v926, %v1054
    %v1119 = vsel %vm991, %v927, %v1055
    %v1120 = vsel %vm992, %v928, %v1056
    %v1121 = vsel %vm993, %v929, %v1057
    %v1122 = vsel %vm994, %v930, %v1058
    %v1123 = vsel %vm995, %v931, %v1059
    %v1124 = vsel %vm996, %v932, %v1060
    %v1125 = vsel %vm997, %v933, %v1061
    %v1126 = vsel %vm998, %v934, %v1062
    %v1127 = vsel %vm999, %v935, %v1063
    %v1128 = vsel %vm1000, %v936, %v1064
    %v1129 = vsel %vm1001, %v937, %v1065
    %v1130 = vsel %vm1002, %v938, %v1066
    %v1131 = vsel %vm1003, %v939, %v1067
    %v1132 = vsel %vm1004, %v940, %v1068
    %v1133 = vsel %vm1005, %v941, %v1069
    %v1134 = vsel %vm1006, %v942, %v1070
    %v1135 = vsel %vm1007, %v943, %v1071
    %v1136 = vsel %vm1008, %v944, %v1072
    %v1137 = vsel %vm1009, %v945, %v1073
    %v1138 = vsel %vm1010, %v946, %v1074
    %v1139 = vsel %vm1011, %v947, %v1075
    %v1140 = vsel %vm1012, %v948, %v1076
    %v1141 = vsel %vm1013, %v949, %v1077
    %v1142 = vpack.c.bf16 %v1079, %v1078
    %v1143 = vpack.c.bf16 %v1081, %v1080
    %v1144 = vpack.c.bf16 %v1083, %v1082
    %v1145 = vpack.c.bf16 %v1085, %v1084
    %v1146 = vpack.c.bf16 %v1087, %v1086
    %v1147 = vpack.c.bf16 %v1089, %v1088
    %v1148 = vpack.c.bf16 %v1091, %v1090
    %v1149 = vpack.c.bf16 %v1093, %v1092
    %v1150 = vpack.c.bf16 %v1095, %v1094
    %v1151 = vpack.c.bf16 %v1097, %v1096
    %v1152 = vpack.c.bf16 %v1099, %v1098
    %v1153 = vpack.c.bf16 %v1101, %v1100
    %v1154 = vpack.c.bf16 %v1103, %v1102
    %v1155 = vpack.c.bf16 %v1105, %v1104
    %v1156 = vpack.c.bf16 %v1107, %v1106
    %v1157 = vpack.c.bf16 %v1109, %v1108
    %v1158 = vpack.c.bf16 %v1111, %v1110
    %v1159 = vpack.c.bf16 %v1113, %v1112
    %v1160 = vpack.c.bf16 %v1115, %v1114
    %v1161 = vpack.c.bf16 %v1117, %v1116
    %v1162 = vpack.c.bf16 %v1119, %v1118
    %v1163 = vpack.c.bf16 %v1121, %v1120
    %v1164 = vpack.c.bf16 %v1123, %v1122
    %v1165 = vpack.c.bf16 %v1125, %v1124
    %v1166 = vpack.c.bf16 %v1127, %v1126
    %v1167 = vpack.c.bf16 %v1129, %v1128
    %v1168 = vpack.c.bf16 %v1131, %v1130
    %v1169 = vpack.c.bf16 %v1133, %v1132
    %v1170 = vpack.c.bf16 %v1135, %v1134
    %v1171 = vpack.c.bf16 %v1137, %v1136
    %v1172 = vpack.c.bf16 %v1139, %v1138
    %v1173 = vpack.c.bf16 %v1141, %v1140
    %v1206 = vunpack.c.l.b16 %v1142
    %v1207 = vunpack.c.h.b16 %v1142
    %v1208 = vunpack.c.l.b16 %v1143
    %v1209 = vunpack.c.h.b16 %v1143
    %v1210 = vunpack.c.l.b16 %v1144
    %v1211 = vunpack.c.h.b16 %v1144
    %v1212 = vunpack.c.l.b16 %v1145
    %v1213 = vunpack.c.h.b16 %v1145
    %v1214 = vunpack.c.l.b16 %v1146
    %v1215 = vunpack.c.h.b16 %v1146
    %v1216 = vunpack.c.l.b16 %v1147
    %v1217 = vunpack.c.h.b16 %v1147
    %v1218 = vunpack.c.l.b16 %v1148
    %v1219 = vunpack.c.h.b16 %v1148
    %v1220 = vunpack.c.l.b16 %v1149
    %v1221 = vunpack.c.h.b16 %v1149
    %v1222 = vunpack.c.l.b16 %v1150
    %v1223 = vunpack.c.h.b16 %v1150
    %v1224 = vunpack.c.l.b16 %v1151
    %v1225 = vunpack.c.h.b16 %v1151
    %v1226 = vunpack.c.l.b16 %v1152
    %v1227 = vunpack.c.h.b16 %v1152
    %v1228 = vunpack.c.l.b16 %v1153
    %v1229 = vunpack.c.h.b16 %v1153
    %v1230 = vunpack.c.l.b16 %v1154
    %v1231 = vunpack.c.h.b16 %v1154
    %v1232 = vunpack.c.l.b16 %v1155
    %v1233 = vunpack.c.h.b16 %v1155
    %v1234 = vunpack.c.l.b16 %v1156
    %v1235 = vunpack.c.h.b16 %v1156
    %v1236 = vunpack.c.l.b16 %v1157
    %v1237 = vunpack.c.h.b16 %v1157
    %v1238 = vunpack.c.l.b16 %v1158
    %v1239 = vunpack.c.h.b16 %v1158
    %v1240 = vunpack.c.l.b16 %v1159
    %v1241 = vunpack.c.h.b16 %v1159
    %v1242 = vunpack.c.l.b16 %v1160
    %v1243 = vunpack.c.h.b16 %v1160
    %v1244 = vunpack.c.l.b16 %v1161
    %v1245 = vunpack.c.h.b16 %v1161
    %v1246 = vunpack.c.l.b16 %v1162
    %v1247 = vunpack.c.h.b16 %v1162
    %v1248 = vunpack.c.l.b16 %v1163
    %v1249 = vunpack.c.h.b16 %v1163
    %v1250 = vunpack.c.l.b16 %v1164
    %v1251 = vunpack.c.h.b16 %v1164
    %v1252 = vunpack.c.l.b16 %v1165
    %v1253 = vunpack.c.h.b16 %v1165
    %v1254 = vunpack.c.l.b16 %v1166
    %v1255 = vunpack.c.h.b16 %v1166
    %v1256 = vunpack.c.l.b16 %v1167
    %v1257 = vunpack.c.h.b16 %v1167
    %v1258 = vunpack.c.l.b16 %v1168
    %v1259 = vunpack.c.h.b16 %v1168
    %v1260 = vunpack.c.l.b16 %v1169
    %v1261 = vunpack.c.h.b16 %v1169
    %v1262 = vunpack.c.l.b16 %v1170
    %v1263 = vunpack.c.h.b16 %v1170
    %v1264 = vunpack.c.l.b16 %v1171
    %v1265 = vunpack.c.h.b16 %v1171
    %v1266 = vunpack.c.l.b16 %v1172
    %v1267 = vunpack.c.h.b16 %v1172
    %v1268 = vunpack.c.l.b16 %v1173
    %v1269 = vunpack.c.h.b16 %v1173
    %v1270 = vpack.c.b16 %v1206, %v1206
    %v1271 = vpack.c.b16 %v1207, %v1207
    %v1272 = vpack.c.b16 %v1208, %v1208
    %v1273 = vpack.c.b16 %v1209, %v1209
    %v1274 = vpack.c.b16 %v1210, %v1210
    %v1275 = vpack.c.b16 %v1211, %v1211
    %v1276 = vpack.c.b16 %v1212, %v1212
    %v1277 = vpack.c.b16 %v1213, %v1213
    %v1278 = vpack.c.b16 %v1214, %v1214
    %v1279 = vpack.c.b16 %v1215, %v1215
    %v1280 = vpack.c.b16 %v1216, %v1216
    %v1281 = vpack.c.b16 %v1217, %v1217
    %v1282 = vpack.c.b16 %v1218, %v1218
    %v1283 = vpack.c.b16 %v1219, %v1219
    %v1284 = vpack.c.b16 %v1220, %v1220
    %v1285 = vpack.c.b16 %v1221, %v1221
    %v1286 = vpack.c.b16 %v1222, %v1222
    %v1287 = vpack.c.b16 %v1223, %v1223
    %v1288 = vpack.c.b16 %v1224, %v1224
    %v1289 = vpack.c.b16 %v1225, %v1225
    %v1290 = vpack.c.b16 %v1226, %v1226
    %v1291 = vpack.c.b16 %v1227, %v1227
    %v1292 = vpack.c.b16 %v1228, %v1228
    %v1293 = vpack.c.b16 %v1229, %v1229
    %v1294 = vpack.c.b16 %v1230, %v1230
    %v1295 = vpack.c.b16 %v1231, %v1231
    %v1296 = vpack.c.b16 %v1232, %v1232
    %v1297 = vpack.c.b16 %v1233, %v1233
    %v1298 = vpack.c.b16 %v1234, %v1234
    %v1299 = vpack.c.b16 %v1235, %v1235
    %v1300 = vpack.c.b16 %v1236, %v1236
    %v1301 = vpack.c.b16 %v1237, %v1237
    %v1302 = vpack.c.b16 %v1238, %v1238
    %v1303 = vpack.c.b16 %v1239, %v1239
    %v1304 = vpack.c.b16 %v1240, %v1240
    %v1305 = vpack.c.b16 %v1241, %v1241
    %v1306 = vpack.c.b16 %v1242, %v1242
    %v1307 = vpack.c.b16 %v1243, %v1243
    %v1308 = vpack.c.b16 %v1244, %v1244
    %v1309 = vpack.c.b16 %v1245, %v1245
    %v1310 = vpack.c.b16 %v1246, %v1246
    %v1311 = vpack.c.b16 %v1247, %v1247
    %v1312 = vpack.c.b16 %v1248, %v1248
    %v1313 = vpack.c.b16 %v1249, %v1249
    %v1314 = vpack.c.b16 %v1250, %v1250
    %v1315 = vpack.c.b16 %v1251, %v1251
    %v1316 = vpack.c.b16 %v1252, %v1252
    %v1317 = vpack.c.b16 %v1253, %v1253
    %v1318 = vpack.c.b16 %v1254, %v1254
    %v1319 = vpack.c.b16 %v1255, %v1255
    %v1320 = vpack.c.b16 %v1256, %v1256
    %v1321 = vpack.c.b16 %v1257, %v1257
    %v1322 = vpack.c.b16 %v1258, %v1258
    %v1323 = vpack.c.b16 %v1259, %v1259
    %v1324 = vpack.c.b16 %v1260, %v1260
    %v1325 = vpack.c.b16 %v1261, %v1261
    %v1326 = vpack.c.b16 %v1262, %v1262
    %v1327 = vpack.c.b16 %v1263, %v1263
    %v1328 = vpack.c.b16 %v1264, %v1264
    %v1329 = vpack.c.b16 %v1265, %v1265
    %v1330 = vpack.c.b16 %v1266, %v1266
    %v1331 = vpack.c.b16 %v1267, %v1267
    %v1332 = vpack.c.b16 %v1268, %v1268
    %v1333 = vpack.c.b16 %v1269, %v1269
    %vm1398 = vcmask 125952
    %1399 = vst.msk [vmem:[%s2] sm:$0xf] %vm1398, %v1270
    %1400 = vst.msk [vmem:[%s2 + $0x4] sm:$0xf] %vm1398, %v1271
    %1401 = vst.msk [vmem:[%s2 + $0x8] sm:$0xf] %vm1398, %v1272
    %1402 = vst.msk [vmem:[%s2 + $0xc] sm:$0xf] %vm1398, %v1273
    %1403 = vst.msk [vmem:[%s2 + $0x10] sm:$0xf] %vm1398, %v1274
    %1404 = vst.msk [vmem:[%s2 + $0x14] sm:$0xf] %vm1398, %v1275
    %1405 = vst.msk [vmem:[%s2 + $0x18] sm:$0xf] %vm1398, %v1276
    %1406 = vst.msk [vmem:[%s2 + $0x1c] sm:$0xf] %vm1398, %v1277
    %1407 = vst.msk [vmem:[%s2 + $0x20] sm:$0xf] %vm1398, %v1278
    %1408 = vst.msk [vmem:[%s2 + $0x24] sm:$0xf] %vm1398, %v1279
    %1409 = vst.msk [vmem:[%s2 + $0x28] sm:$0xf] %vm1398, %v1280
    %1410 = vst.msk [vmem:[%s2 + $0x2c] sm:$0xf] %vm1398, %v1281
    %1411 = vst.msk [vmem:[%s2 + $0x30] sm:$0xf] %vm1398, %v1282
    %1412 = vst.msk [vmem:[%s2 + $0x34] sm:$0xf] %vm1398, %v1283
    %1413 = vst.msk [vmem:[%s2 + $0x38] sm:$0xf] %vm1398, %v1284
    %1414 = vst.msk [vmem:[%s2 + $0x3c] sm:$0xf] %vm1398, %v1285
    %1415 = vst.msk [vmem:[%s2 + $0x40] sm:$0xf] %vm1398, %v1286
    %1416 = vst.msk [vmem:[%s2 + $0x44] sm:$0xf] %vm1398, %v1287
    %1417 = vst.msk [vmem:[%s2 + $0x48] sm:$0xf] %vm1398, %v1288
    %1418 = vst.msk [vmem:[%s2 + $0x4c] sm:$0xf] %vm1398, %v1289
    %1419 = vst.msk [vmem:[%s2 + $0x50] sm:$0xf] %vm1398, %v1290
    %1420 = vst.msk [vmem:[%s2 + $0x54] sm:$0xf] %vm1398, %v1291
    %1421 = vst.msk [vmem:[%s2 + $0x58] sm:$0xf] %vm1398, %v1292
    %1422 = vst.msk [vmem:[%s2 + $0x5c] sm:$0xf] %vm1398, %v1293
    %1423 = vst.msk [vmem:[%s2 + $0x60] sm:$0xf] %vm1398, %v1294
    %1424 = vst.msk [vmem:[%s2 + $0x64] sm:$0xf] %vm1398, %v1295
    %1425 = vst.msk [vmem:[%s2 + $0x68] sm:$0xf] %vm1398, %v1296
    %1426 = vst.msk [vmem:[%s2 + $0x6c] sm:$0xf] %vm1398, %v1297
    %1427 = vst.msk [vmem:[%s2 + $0x70] sm:$0xf] %vm1398, %v1298
    %1428 = vst.msk [vmem:[%s2 + $0x74] sm:$0xf] %vm1398, %v1299
    %1429 = vst.msk [vmem:[%s2 + $0x78] sm:$0xf] %vm1398, %v1300
    %1430 = vst.msk [vmem:[%s2 + $0x7c] sm:$0xf] %vm1398, %v1301
    %1431 = vst.msk [vmem:[%s2 + $0x80] sm:$0xf] %vm1398, %v1302
    %1432 = vst.msk [vmem:[%s2 + $0x84] sm:$0xf] %vm1398, %v1303
    %1433 = vst.msk [vmem:[%s2 + $0x88] sm:$0xf] %vm1398, %v1304
    %1434 = vst.msk [vmem:[%s2 + $0x8c] sm:$0xf] %vm1398, %v1305
    %1435 = vst.msk [vmem:[%s2 + $0x90] sm:$0xf] %vm1398, %v1306
    %1436 = vst.msk [vmem:[%s2 + $0x94] sm:$0xf] %vm1398, %v1307
    %1437 = vst.msk [vmem:[%s2 + $0x98] sm:$0xf] %vm1398, %v1308
    %1438 = vst.msk [vmem:[%s2 + $0x9c] sm:$0xf] %vm1398, %v1309
    %1439 = vst.msk [vmem:[%s2 + $0xa0] sm:$0xf] %vm1398, %v1310
    %1440 = vst.msk [vmem:[%s2 + $0xa4] sm:$0xf] %vm1398, %v1311
    %1441 = vst.msk [vmem:[%s2 + $0xa8] sm:$0xf] %vm1398, %v1312
    %1442 = vst.msk [vmem:[%s2 + $0xac] sm:$0xf] %vm1398, %v1313
    %1443 = vst.msk [vmem:[%s2 + $0xb0] sm:$0xf] %vm1398, %v1314
    %1444 = vst.msk [vmem:[%s2 + $0xb4] sm:$0xf] %vm1398, %v1315
    %1445 = vst.msk [vmem:[%s2 + $0xb8] sm:$0xf] %vm1398, %v1316
    %1446 = vst.msk [vmem:[%s2 + $0xbc] sm:$0xf] %vm1398, %v1317
    %1447 = vst.msk [vmem:[%s2 + $0xc0] sm:$0xf] %vm1398, %v1318
    %1448 = vst.msk [vmem:[%s2 + $0xc4] sm:$0xf] %vm1398, %v1319
    %1449 = vst.msk [vmem:[%s2 + $0xc8] sm:$0xf] %vm1398, %v1320
    %1450 = vst.msk [vmem:[%s2 + $0xcc] sm:$0xf] %vm1398, %v1321
    %1451 = vst.msk [vmem:[%s2 + $0xd0] sm:$0xf] %vm1398, %v1322
    %1452 = vst.msk [vmem:[%s2 + $0xd4] sm:$0xf] %vm1398, %v1323
    %1453 = vst.msk [vmem:[%s2 + $0xd8] sm:$0xf] %vm1398, %v1324
    %1454 = vst.msk [vmem:[%s2 + $0xdc] sm:$0xf] %vm1398, %v1325
    %1455 = vst.msk [vmem:[%s2 + $0xe0] sm:$0xf] %vm1398, %v1326
    %1456 = vst.msk [vmem:[%s2 + $0xe4] sm:$0xf] %vm1398, %v1327
    %1457 = vst.msk [vmem:[%s2 + $0xe8] sm:$0xf] %vm1398, %v1328
    %1458 = vst.msk [vmem:[%s2 + $0xec] sm:$0xf] %vm1398, %v1329
    %1459 = vst.msk [vmem:[%s2 + $0xf0] sm:$0xf] %vm1398, %v1330
    %1460 = vst.msk [vmem:[%s2 + $0xf4] sm:$0xf] %vm1398, %v1331
    %1461 = vst.msk [vmem:[%s2 + $0xf8] sm:$0xf] %vm1398, %v1332
    %1462 = vst.msk [vmem:[%s2 + $0xfc] sm:$0xf] %vm1398, %v1333
  $region17: #{critic_forward.5} parent=0 // pred_fallthru
    _
  // Predicated region
  $region18: #{critic_forward.5} parent=0 // pred_check
    _
  $region19: #{critic_forward.5} parent=0 // pred_check_branch
    %1464 = sbr.rel (0) target = $region21
  $region20: #{critic_forward.5} parent=0 // pred_region
    _
  $region21: #{critic_forward.5} parent=0 // pred_fallthru
    _
  // Predicated region
  $region22: #{critic_forward.5} parent=0 // pred_check
    _
  $region23: #{critic_forward.5} parent=0 // pred_check_branch
    %1466 = sbr.rel (0) target = $region25
  $region24: #{critic_forward.5} parent=0 // pred_region
    _
  $region25: #{critic_forward.5} parent=0 // pred_fallthru
    _

// kernel: critic_forward.6
$region0: #{critic_forward.6}
  #allocation0 [shape = 'u32[]', space=smem, size = 0x4, offset = 0x4, fixed_abs, tag = 'smem constant byte address 0x4 - core index']
  #allocation1 [shape = 'u32[144,128]{1,0:T(1,128)}', space=vmem, size = 0x12000, scoped, tag = 'internal scratch']
  #allocation2 [shape = 'f32[128,32]{1,0:T(8,128)}', space=vmem, size = 0x10000, scoped, tag = 'scratch operand']
  %s0 = inlined_call_operand.vmem [shape: bf16[128,256], index: 0, kind: input, shape index: {}]
  %s1 = inlined_call_operand.vmem [shape: bf16[256,32], index: 1, kind: input, shape index: {}]
  %s2 = inlined_call_operand.vmem [shape: bf16[128,32], index: 2, kind: output, shape index: {}]
  %s3 = sld [smem:[#allocation0]]
  $region26: #{critic_forward.6} parent=0
    _
  %s5 = ssub.s32 1, %s3
  %s6 = scalar_select 0, %s5, %s3
  // Predicated region
  $region2: #{critic_forward.6} parent=0 // pred_check
    _
  $region3: #{critic_forward.6} parent=0 // pred_check_branch
    %8 = sbr.rel (0) target = $region5
  $region4: #{critic_forward.6} parent=0 // pred_region
    _
  $region5: #{critic_forward.6} parent=0 // pred_fallthru
    _
  // Predicated region
  $region6: #{critic_forward.6} parent=0 // pred_check
    _
  $region7: #{critic_forward.6} parent=0 // pred_check_branch
    %10 = sbr.rel (0) target = $region9
  $region8: #{critic_forward.6} parent=0 // pred_region
    _
  $region9: #{critic_forward.6} parent=0 // pred_fallthru
    _
  %p12 = scmp.eq.s32.totalorder 0, 0
  // Predicated region
  $region10: #{critic_forward.6} parent=0 // pred_check
    %p13 = pneg %p12
  $region11: #{critic_forward.6} parent=0 // pred_check_branch
    %15 = sbr.rel (%p13) target = $region13
  $region12: #{critic_forward.6} parent=0 // pred_region
    %vm16 = vcmask 261120
    %17 = vst.msk [vmem:[#allocation2] sm:$0xff] %vm16, 0.0
    %18 = vst.msk [vmem:[#allocation2 + $0x8] sm:$0xff] %vm16, 0.0
    %19 = vst.msk [vmem:[#allocation2 + $0x10] sm:$0xff] %vm16, 0.0
    %20 = vst.msk [vmem:[#allocation2 + $0x18] sm:$0xff] %vm16, 0.0
    %21 = vst.msk [vmem:[#allocation2 + $0x20] sm:$0xff] %vm16, 0.0
    %22 = vst.msk [vmem:[#allocation2 + $0x28] sm:$0xff] %vm16, 0.0
    %23 = vst.msk [vmem:[#allocation2 + $0x30] sm:$0xff] %vm16, 0.0
    %24 = vst.msk [vmem:[#allocation2 + $0x38] sm:$0xff] %vm16, 0.0
    %25 = vst.msk [vmem:[#allocation2 + $0x40] sm:$0xff] %vm16, 0.0
    %26 = vst.msk [vmem:[#allocation2 + $0x48] sm:$0xff] %vm16, 0.0
    %27 = vst.msk [vmem:[#allocation2 + $0x50] sm:$0xff] %vm16, 0.0
    %28 = vst.msk [vmem:[#allocation2 + $0x58] sm:$0xff] %vm16, 0.0
    %29 = vst.msk [vmem:[#allocation2 + $0x60] sm:$0xff] %vm16, 0.0
    %30 = vst.msk [vmem:[#allocation2 + $0x68] sm:$0xff] %vm16, 0.0
    %31 = vst.msk [vmem:[#allocation2 + $0x70] sm:$0xff] %vm16, 0.0
    %32 = vst.msk [vmem:[#allocation2 + $0x78] sm:$0xff] %vm16, 0.0
  $region13: #{critic_forward.6} parent=0 // pred_fallthru
    _
  %v33 = vld [vmem:[#allocation2] sm:$0xff]
  %v34 = vld [vmem:[#allocation2 + $0x8] sm:$0xff]
  %v35 = vld [vmem:[#allocation2 + $0x10] sm:$0xff]
  %v36 = vld [vmem:[#allocation2 + $0x18] sm:$0xff]
  %v37 = vld [vmem:[#allocation2 + $0x20] sm:$0xff]
  %v38 = vld [vmem:[#allocation2 + $0x28] sm:$0xff]
  %v39 = vld [vmem:[#allocation2 + $0x30] sm:$0xff]
  %v40 = vld [vmem:[#allocation2 + $0x38] sm:$0xff]
  %v41 = vld [vmem:[#allocation2 + $0x40] sm:$0xff]
  %v42 = vld [vmem:[#allocation2 + $0x48] sm:$0xff]
  %v43 = vld [vmem:[#allocation2 + $0x50] sm:$0xff]
  %v44 = vld [vmem:[#allocation2 + $0x58] sm:$0xff]
  %v45 = vld [vmem:[#allocation2 + $0x60] sm:$0xff]
  %v46 = vld [vmem:[#allocation2 + $0x68] sm:$0xff]
  %v47 = vld [vmem:[#allocation2 + $0x70] sm:$0xff]
  %v48 = vld [vmem:[#allocation2 + $0x78] sm:$0xff]
  %v49 = vld [vmem:[%s0] sm:$0xff]
  %v50 = vld [vmem:[%s0 + $0x8] sm:$0xff]
  %v51 = vld [vmem:[%s0 + $0x10] sm:$0xff]
  %v52 = vld [vmem:[%s0 + $0x18] sm:$0xff]
  %v53 = vld [vmem:[%s0 + $0x20] sm:$0xff]
  %v54 = vld [vmem:[%s0 + $0x28] sm:$0xff]
  %v55 = vld [vmem:[%s0 + $0x30] sm:$0xff]
  %v56 = vld [vmem:[%s0 + $0x38] sm:$0xff]
  %v57 = vld [vmem:[%s0 + $0x40] sm:$0xff]
  %v58 = vld [vmem:[%s0 + $0x48] sm:$0xff]
  %v59 = vld [vmem:[%s0 + $0x50] sm:$0xff]
  %v60 = vld [vmem:[%s0 + $0x58] sm:$0xff]
  %v61 = vld [vmem:[%s0 + $0x60] sm:$0xff]
  %v62 = vld [vmem:[%s0 + $0x68] sm:$0xff]
  %v63 = vld [vmem:[%s0 + $0x70] sm:$0xff]
  %v64 = vld [vmem:[%s0 + $0x78] sm:$0xff]
  %v65 = vld [vmem:[%s1] sm:$0xf]
  %v66 = vld [vmem:[%s1 + $0x4] sm:$0xf]
  %v67 = vld [vmem:[%s1 + $0x8] sm:$0xf]
  %v68 = vld [vmem:[%s1 + $0xc] sm:$0xf]
  %v69 = vld [vmem:[%s1 + $0x10] sm:$0xf]
  %v70 = vld [vmem:[%s1 + $0x14] sm:$0xf]
  %v71 = vld [vmem:[%s1 + $0x18] sm:$0xf]
  %v72 = vld [vmem:[%s1 + $0x1c] sm:$0xf]
  %v73 = vld [vmem:[%s1 + $0x20] sm:$0xf]
  %v74 = vld [vmem:[%s1 + $0x24] sm:$0xf]
  %v75 = vld [vmem:[%s1 + $0x28] sm:$0xf]
  %v76 = vld [vmem:[%s1 + $0x2c] sm:$0xf]
  %v77 = vld [vmem:[%s1 + $0x30] sm:$0xf]
  %v78 = vld [vmem:[%s1 + $0x34] sm:$0xf]
  %v79 = vld [vmem:[%s1 + $0x38] sm:$0xf]
  %v80 = vld [vmem:[%s1 + $0x3c] sm:$0xf]
  %v81 = vld [vmem:[%s1 + $0x40] sm:$0xf]
  %v82 = vld [vmem:[%s1 + $0x44] sm:$0xf]
  %v83 = vld [vmem:[%s1 + $0x48] sm:$0xf]
  %v84 = vld [vmem:[%s1 + $0x4c] sm:$0xf]
  %v85 = vld [vmem:[%s1 + $0x50] sm:$0xf]
  %v86 = vld [vmem:[%s1 + $0x54] sm:$0xf]
  %v87 = vld [vmem:[%s1 + $0x58] sm:$0xf]
  %v88 = vld [vmem:[%s1 + $0x5c] sm:$0xf]
  %v89 = vld [vmem:[%s1 + $0x60] sm:$0xf]
  %v90 = vld [vmem:[%s1 + $0x64] sm:$0xf]
  %v91 = vld [vmem:[%s1 + $0x68] sm:$0xf]
  %v92 = vld [vmem:[%s1 + $0x6c] sm:$0xf]
  %v93 = vld [vmem:[%s1 + $0x70] sm:$0xf]
  %v94 = vld [vmem:[%s1 + $0x74] sm:$0xf]
  %v95 = vld [vmem:[%s1 + $0x78] sm:$0xf]
  %v96 = vld [vmem:[%s1 + $0x7c] sm:$0xf]
  %v113 = vunpack.c.l.b16 %v49
  %v114 = vunpack.c.h.b16 %v49
  %v115 = vunpack.c.l.b16 %v50
  %v116 = vunpack.c.h.b16 %v50
  %v117 = vunpack.c.l.b16 %v51
  %v118 = vunpack.c.h.b16 %v51
  %v119 = vunpack.c.l.b16 %v52
  %v120 = vunpack.c.h.b16 %v52
  %v121 = vunpack.c.l.b16 %v53
  %v122 = vunpack.c.h.b16 %v53
  %v123 = vunpack.c.l.b16 %v54
  %v124 = vunpack.c.h.b16 %v54
  %v125 = vunpack.c.l.b16 %v55
  %v126 = vunpack.c.h.b16 %v55
  %v127 = vunpack.c.l.b16 %v56
  %v128 = vunpack.c.h.b16 %v56
  %v129 = vunpack.c.l.b16 %v57
  %v130 = vunpack.c.h.b16 %v57
  %v131 = vunpack.c.l.b16 %v58
  %v132 = vunpack.c.h.b16 %v58
  %v133 = vunpack.c.l.b16 %v59
  %v134 = vunpack.c.h.b16 %v59
  %v135 = vunpack.c.l.b16 %v60
  %v136 = vunpack.c.h.b16 %v60
  %v137 = vunpack.c.l.b16 %v61
  %v138 = vunpack.c.h.b16 %v61
  %v139 = vunpack.c.l.b16 %v62
  %v140 = vunpack.c.h.b16 %v62
  %v141 = vunpack.c.l.b16 %v63
  %v142 = vunpack.c.h.b16 %v63
  %v143 = vunpack.c.l.b16 %v64
  %v144 = vunpack.c.h.b16 %v64
  %v145 = vpack.c.b16 %v115, %v113
  %v146 = vpack.c.b16 %v116, %v114
  %v147 = vpack.c.b16 %v119, %v117
  %v148 = vpack.c.b16 %v120, %v118
  %v149 = vpack.c.b16 %v123, %v121
  %v150 = vpack.c.b16 %v124, %v122
  %v151 = vpack.c.b16 %v127, %v125
  %v152 = vpack.c.b16 %v128, %v126
  %v153 = vpack.c.b16 %v131, %v129
  %v154 = vpack.c.b16 %v132, %v130
  %v155 = vpack.c.b16 %v135, %v133
  %v156 = vpack.c.b16 %v136, %v134
  %v157 = vpack.c.b16 %v139, %v137
  %v158 = vpack.c.b16 %v140, %v138
  %v159 = vpack.c.b16 %v143, %v141
  %v160 = vpack.c.b16 %v144, %v142
  %v209 = vunpack.c.l.b16 %v65
  %v210 = vunpack.c.l.b16 %v66
  %v211 = vunpack.c.l.b16 %v67
  %v212 = vunpack.c.l.b16 %v68
  %v213 = vunpack.c.l.b16 %v69
  %v214 = vunpack.c.l.b16 %v70
  %v215 = vunpack.c.l.b16 %v71
  %v216 = vunpack.c.l.b16 %v72
  %v217 = vunpack.c.l.b16 %v73
  %v218 = vunpack.c.l.b16 %v74
  %v219 = vunpack.c.l.b16 %v75
  %v220 = vunpack.c.l.b16 %v76
  %v221 = vunpack.c.l.b16 %v77
  %v222 = vunpack.c.l.b16 %v78
  %v223 = vunpack.c.l.b16 %v79
  %v224 = vunpack.c.l.b16 %v80
  %v225 = vunpack.c.l.b16 %v81
  %v226 = vunpack.c.l.b16 %v82
  %v227 = vunpack.c.l.b16 %v83
  %v228 = vunpack.c.l.b16 %v84
  %v229 = vunpack.c.l.b16 %v85
  %v230 = vunpack.c.l.b16 %v86
  %v231 = vunpack.c.l.b16 %v87
  %v232 = vunpack.c.l.b16 %v88
  %v233 = vunpack.c.l.b16 %v89
  %v234 = vunpack.c.l.b16 %v90
  %v235 = vunpack.c.l.b16 %v91
  %v236 = vunpack.c.l.b16 %v92
  %v237 = vunpack.c.l.b16 %v93
  %v238 = vunpack.c.l.b16 %v94
  %v239 = vunpack.c.l.b16 %v95
  %v240 = vunpack.c.l.b16 %v96
  %v241 = vpack.c.b16 %v210, %v209
  %v242 = vpack.c.b16 %v212, %v211
  %v243 = vpack.c.b16 %v214, %v213
  %v244 = vpack.c.b16 %v216, %v215
  %v245 = vpack.c.b16 %v218, %v217
  %v246 = vpack.c.b16 %v220, %v219
  %v247 = vpack.c.b16 %v222, %v221
  %v248 = vpack.c.b16 %v224, %v223
  %v249 = vpack.c.b16 %v226, %v225
  %v250 = vpack.c.b16 %v228, %v227
  %v251 = vpack.c.b16 %v230, %v229
  %v252 = vpack.c.b16 %v232, %v231
  %v253 = vpack.c.b16 %v234, %v233
  %v254 = vpack.c.b16 %v236, %v235
  %v255 = vpack.c.b16 %v238, %v237
  %v256 = vpack.c.b16 %v240, %v239
  %273 = vmatprep.subr.bf16.mxu0 0
  %274 = vmatpush1.bf16.msra.mxu0 %v241
  %275 = vmatprep.subr.bf16.mxu0 0
  %276 = vmatpush1.bf16.msra.mxu0 %v242
  %277 = vmatprep.subr.bf16.mxu0 0
  %278 = vmatpush1.bf16.msra.mxu0 %v243
  %279 = vmatprep.subr.bf16.mxu0 0
  %280 = vmatpush1.bf16.msra.mxu0 %v244
  %281 = vmatprep.subr.bf16.mxu0 0
  %282 = vmatpush1.bf16.msra.mxu0 %v245
  %283 = vmatprep.subr.bf16.mxu0 0
  %284 = vmatpush1.bf16.msra.mxu0 %v246
  %285 = vmatprep.subr.bf16.mxu0 0
  %286 = vmatpush1.bf16.msra.mxu0 %v247
  %287 = vmatprep.subr.bf16.mxu0 0
  %288 = vmatpush1.bf16.msra.mxu0 %v248
  %289 = vmatprep.subr.bf16.mxu0 0
  %290 = vmatpush1.bf16.msra.mxu0 %v249
  %291 = vmatprep.subr.bf16.mxu0 0
  %292 = vmatpush1.bf16.msra.mxu0 %v250
  %293 = vmatprep.subr.bf16.mxu0 0
  %294 = vmatpush1.bf16.msra.mxu0 %v251
  %295 = vmatprep.subr.bf16.mxu0 0
  %296 = vmatpush1.bf16.msra.mxu0 %v252
  %297 = vmatprep.subr.bf16.mxu0 0
  %298 = vmatpush1.bf16.msra.mxu0 %v253
  %299 = vmatprep.subr.bf16.mxu0 0
  %300 = vmatpush1.bf16.msra.mxu0 %v254
  %301 = vmatprep.subr.bf16.mxu0 0
  %302 = vmatpush1.bf16.msra.mxu0 %v255
  %303 = vmatprep.subr.bf16.mxu0 0
  %304 = vmatpush1.bf16.msra.mxu0 %v256
  %305 = vmatprep.mubr.bf16.mxu0 %v146
  %306 = vmatmul.mubr.bf16.gmra.mrb[0].mxu0 %v145
  %v307 = vpop.f32.mrb[0].mxu0
  %v308 = vadd.f32 0.0, %v307
  %v309 = vpop.f32.mrb[0].mxu0
  %v310 = vpop.f32.mrb[0].mxu0
  %v311 = vadd.f32 0.0, %v310
  %v312 = vpop.f32.mrb[0].mxu0
  %313 = vmatprep.mubr.bf16.mxu0 %v148
  %314 = vmatmul.mubr.bf16.gmra.mrb[0].mxu0 %v147
  %v315 = vpop.f32.mrb[0].mxu0
  %v316 = vadd.f32 0.0, %v315
  %v317 = vpop.f32.mrb[0].mxu0
  %v318 = vpop.f32.mrb[0].mxu0
  %v319 = vadd.f32 0.0, %v318
  %v320 = vpop.f32.mrb[0].mxu0
  %321 = vmatprep.mubr.bf16.mxu0 %v150
  %322 = vmatmul.mubr.bf16.gmra.mrb[0].mxu0 %v149
  %v323 = vpop.f32.mrb[0].mxu0
  %v324 = vadd.f32 0.0, %v323
  %v325 = vpop.f32.mrb[0].mxu0
  %v326 = vpop.f32.mrb[0].mxu0
  %v327 = vadd.f32 0.0, %v326
  %v328 = vpop.f32.mrb[0].mxu0
  %329 = vmatprep.mubr.bf16.mxu0 %v152
  %330 = vmatmul.mubr.bf16.gmra.mrb[0].mxu0 %v151
  %v331 = vpop.f32.mrb[0].mxu0
  %v332 = vadd.f32 0.0, %v331
  %v333 = vpop.f32.mrb[0].mxu0
  %v334 = vpop.f32.mrb[0].mxu0
  %v335 = vadd.f32 0.0, %v334
  %v336 = vpop.f32.mrb[0].mxu0
  %337 = vmatprep.mubr.bf16.mxu0 %v154
  %338 = vmatmul.mubr.bf16.gmra.mrb[0].mxu0 %v153
  %v339 = vpop.f32.mrb[0].mxu0
  %v340 = vadd.f32 0.0, %v339
  %v341 = vpop.f32.mrb[0].mxu0
  %v342 = vpop.f32.mrb[0].mxu0
  %v343 = vadd.f32 0.0, %v342
  %v344 = vpop.f32.mrb[0].mxu0
  %345 = vmatprep.mubr.bf16.mxu0 %v156
  %346 = vmatmul.mubr.bf16.gmra.mrb[0].mxu0 %v155
  %v347 = vpop.f32.mrb[0].mxu0
  %v348 = vadd.f32 0.0, %v347
  %v349 = vpop.f32.mrb[0].mxu0
  %v350 = vpop.f32.mrb[0].mxu0
  %v351 = vadd.f32 0.0, %v350
  %v352 = vpop.f32.mrb[0].mxu0
  %353 = vmatprep.mubr.bf16.mxu0 %v158
  %354 = vmatmul.mubr.bf16.gmra.mrb[0].mxu0 %v157
  %v355 = vpop.f32.mrb[0].mxu0
  %v356 = vadd.f32 0.0, %v355
  %v357 = vpop.f32.mrb[0].mxu0
  %v358 = vpop.f32.mrb[0].mxu0
  %v359 = vadd.f32 0.0, %v358
  %v360 = vpop.f32.mrb[0].mxu0
  %361 = vmatprep.mubr.bf16.mxu0 %v160
  %362 = vmatmul.mubr.bf16.gmra.mrb[0].mxu0 %v159
  %v363 = vpop.f32.mrb[0].mxu0
  %v364 = vadd.f32 0.0, %v363
  %v365 = vpop.f32.mrb[0].mxu0
  %v366 = vpop.f32.mrb[0].mxu0
  %v367 = vadd.f32 0.0, %v366
  %v368 = vpop.f32.mrb[0].mxu0
  %369 = vdwg.mxu0
  %v370 = vadd.f32 %v33, %v308
  %v371 = vadd.f32 %v34, %v311
  %v372 = vadd.f32 %v35, %v316
  %v373 = vadd.f32 %v36, %v319
  %v374 = vadd.f32 %v37, %v324
  %v375 = vadd.f32 %v38, %v327
  %v376 = vadd.f32 %v39, %v332
  %v377 = vadd.f32 %v40, %v335
  %v378 = vadd.f32 %v41, %v340
  %v379 = vadd.f32 %v42, %v343
  %v380 = vadd.f32 %v43, %v348
  %v381 = vadd.f32 %v44, %v351
  %v382 = vadd.f32 %v45, %v356
  %v383 = vadd.f32 %v46, %v359
  %v384 = vadd.f32 %v47, %v364
  %v385 = vadd.f32 %v48, %v367
  %vm386 = vcmask 261120
  %387 = vst.msk [vmem:[#allocation2] sm:$0xff] %vm386, %v370
  %388 = vst.msk [vmem:[#allocation2 + $0x8] sm:$0xff] %vm386, %v371
  %389 = vst.msk [vmem:[#allocation2 + $0x10] sm:$0xff] %vm386, %v372
  %390 = vst.msk [vmem:[#allocation2 + $0x18] sm:$0xff] %vm386, %v373
  %391 = vst.msk [vmem:[#allocation2 + $0x20] sm:$0xff] %vm386, %v374
  %392 = vst.msk [vmem:[#allocation2 + $0x28] sm:$0xff] %vm386, %v375
  %393 = vst.msk [vmem:[#allocation2 + $0x30] sm:$0xff] %vm386, %v376
  %394 = vst.msk [vmem:[#allocation2 + $0x38] sm:$0xff] %vm386, %v377
  %395 = vst.msk [vmem:[#allocation2 + $0x40] sm:$0xff] %vm386, %v378
  %396 = vst.msk [vmem:[#allocation2 + $0x48] sm:$0xff] %vm386, %v379
  %397 = vst.msk [vmem:[#allocation2 + $0x50] sm:$0xff] %vm386, %v380
  %398 = vst.msk [vmem:[#allocation2 + $0x58] sm:$0xff] %vm386, %v381
  %399 = vst.msk [vmem:[#allocation2 + $0x60] sm:$0xff] %vm386, %v382
  %400 = vst.msk [vmem:[#allocation2 + $0x68] sm:$0xff] %vm386, %v383
  %401 = vst.msk [vmem:[#allocation2 + $0x70] sm:$0xff] %vm386, %v384
  %402 = vst.msk [vmem:[#allocation2 + $0x78] sm:$0xff] %vm386, %v385
  // Predicated region
  $region14: #{critic_forward.6} parent=0 // pred_check
    %p403 = pneg %p12
  $region15: #{critic_forward.6} parent=0 // pred_check_branch
    %405 = sbr.rel (%p403) target = $region17
  $region16: #{critic_forward.6} parent=0 // pred_region
    %v406 = vld [vmem:[#allocation2] sm:$0xff]
    %v407 = vld [vmem:[#allocation2 + $0x8] sm:$0xff]
    %v408 = vld [vmem:[#allocation2 + $0x10] sm:$0xff]
    %v409 = vld [vmem:[#allocation2 + $0x18] sm:$0xff]
    %v410 = vld [vmem:[#allocation2 + $0x20] sm:$0xff]
    %v411 = vld [vmem:[#allocation2 + $0x28] sm:$0xff]
    %v412 = vld [vmem:[#allocation2 + $0x30] sm:$0xff]
    %v413 = vld [vmem:[#allocation2 + $0x38] sm:$0xff]
    %v414 = vld [vmem:[#allocation2 + $0x40] sm:$0xff]
    %v415 = vld [vmem:[#allocation2 + $0x48] sm:$0xff]
    %v416 = vld [vmem:[#allocation2 + $0x50] sm:$0xff]
    %v417 = vld [vmem:[#allocation2 + $0x58] sm:$0xff]
    %v418 = vld [vmem:[#allocation2 + $0x60] sm:$0xff]
    %v419 = vld [vmem:[#allocation2 + $0x68] sm:$0xff]
    %v420 = vld [vmem:[#allocation2 + $0x70] sm:$0xff]
    %v421 = vld [vmem:[#allocation2 + $0x78] sm:$0xff]
    %vm422 = vcmp.ge.f32.partialorder %v406, 0.0
    %vm423 = vcmp.ge.f32.partialorder %v407, 0.0
    %vm424 = vcmp.ge.f32.partialorder %v408, 0.0
    %vm425 = vcmp.ge.f32.partialorder %v409, 0.0
    %vm426 = vcmp.ge.f32.partialorder %v410, 0.0
    %vm427 = vcmp.ge.f32.partialorder %v411, 0.0
    %vm428 = vcmp.ge.f32.partialorder %v412, 0.0
    %vm429 = vcmp.ge.f32.partialorder %v413, 0.0
    %vm430 = vcmp.ge.f32.partialorder %v414, 0.0
    %vm431 = vcmp.ge.f32.partialorder %v415, 0.0
    %vm432 = vcmp.ge.f32.partialorder %v416, 0.0
    %vm433 = vcmp.ge.f32.partialorder %v417, 0.0
    %vm434 = vcmp.ge.f32.partialorder %v418, 0.0
    %vm435 = vcmp.ge.f32.partialorder %v419, 0.0
    %vm436 = vcmp.ge.f32.partialorder %v420, 0.0
    %vm437 = vcmp.ge.f32.partialorder %v421, 0.0
    %v438 = vmul.f32 %v406, 0.2
    %v439 = vmul.f32 %v407, 0.2
    %v440 = vmul.f32 %v408, 0.2
    %v441 = vmul.f32 %v409, 0.2
    %v442 = vmul.f32 %v410, 0.2
    %v443 = vmul.f32 %v411, 0.2
    %v444 = vmul.f32 %v412, 0.2
    %v445 = vmul.f32 %v413, 0.2
    %v446 = vmul.f32 %v414, 0.2
    %v447 = vmul.f32 %v415, 0.2
    %v448 = vmul.f32 %v416, 0.2
    %v449 = vmul.f32 %v417, 0.2
    %v450 = vmul.f32 %v418, 0.2
    %v451 = vmul.f32 %v419, 0.2
    %v452 = vmul.f32 %v420, 0.2
    %v453 = vmul.f32 %v421, 0.2
    %v454 = vsel %vm422, %v406, %v438
    %v455 = vsel %vm423, %v407, %v439
    %v456 = vsel %vm424, %v408, %v440
    %v457 = vsel %vm425, %v409, %v441
    %v458 = vsel %vm426, %v410, %v442
    %v459 = vsel %vm427, %v411, %v443
    %v460 = vsel %vm428, %v412, %v444
    %v461 = vsel %vm429, %v413, %v445
    %v462 = vsel %vm430, %v414, %v446
    %v463 = vsel %vm431, %v415, %v447
    %v464 = vsel %vm432, %v416, %v448
    %v465 = vsel %vm433, %v417, %v449
    %v466 = vsel %vm434, %v418, %v450
    %v467 = vsel %vm435, %v419, %v451
    %v468 = vsel %vm436, %v420, %v452
    %v469 = vsel %vm437, %v421, %v453
    %v470 = vpack.c.bf16 %v455, %v454
    %v471 = vpack.c.bf16 %v457, %v456
    %v472 = vpack.c.bf16 %v459, %v458
    %v473 = vpack.c.bf16 %v461, %v460
    %v474 = vpack.c.bf16 %v463, %v462
    %v475 = vpack.c.bf16 %v465, %v464
    %v476 = vpack.c.bf16 %v467, %v466
    %v477 = vpack.c.bf16 %v469, %v468
    %v486 = vunpack.c.l.b16 %v470
    %v487 = vunpack.c.h.b16 %v470
    %v488 = vunpack.c.l.b16 %v471
    %v489 = vunpack.c.h.b16 %v471
    %v490 = vunpack.c.l.b16 %v472
    %v491 = vunpack.c.h.b16 %v472
    %v492 = vunpack.c.l.b16 %v473
    %v493 = vunpack.c.h.b16 %v473
    %v494 = vunpack.c.l.b16 %v474
    %v495 = vunpack.c.h.b16 %v474
    %v496 = vunpack.c.l.b16 %v475
    %v497 = vunpack.c.h.b16 %v475
    %v498 = vunpack.c.l.b16 %v476
    %v499 = vunpack.c.h.b16 %v476
    %v500 = vunpack.c.l.b16 %v477
    %v501 = vunpack.c.h.b16 %v477
    %v502 = vpack.c.b16 %v486, %v486
    %v503 = vpack.c.b16 %v487, %v487
    %v504 = vpack.c.b16 %v488, %v488
    %v505 = vpack.c.b16 %v489, %v489
    %v506 = vpack.c.b16 %v490, %v490
    %v507 = vpack.c.b16 %v491, %v491
    %v508 = vpack.c.b16 %v492, %v492
    %v509 = vpack.c.b16 %v493, %v493
    %v510 = vpack.c.b16 %v494, %v494
    %v511 = vpack.c.b16 %v495, %v495
    %v512 = vpack.c.b16 %v496, %v496
    %v513 = vpack.c.b16 %v497, %v497
    %v514 = vpack.c.b16 %v498, %v498
    %v515 = vpack.c.b16 %v499, %v499
    %v516 = vpack.c.b16 %v500, %v500
    %v517 = vpack.c.b16 %v501, %v501
    %vm534 = vcmask 257024
    %535 = vst.msk [vmem:[%s2] sm:$0xf] %vm534, %v502
    %536 = vst.msk [vmem:[%s2 + $0x4] sm:$0xf] %vm534, %v503
    %537 = vst.msk [vmem:[%s2 + $0x8] sm:$0xf] %vm534, %v504
    %538 = vst.msk [vmem:[%s2 + $0xc] sm:$0xf] %vm534, %v505
    %539 = vst.msk [vmem:[%s2 + $0x10] sm:$0xf] %vm534, %v506
    %540 = vst.msk [vmem:[%s2 + $0x14] sm:$0xf] %vm534, %v507
    %541 = vst.msk [vmem:[%s2 + $0x18] sm:$0xf] %vm534, %v508
    %542 = vst.msk [vmem:[%s2 + $0x1c] sm:$0xf] %vm534, %v509
    %543 = vst.msk [vmem:[%s2 + $0x20] sm:$0xf] %vm534, %v510
    %544 = vst.msk [vmem:[%s2 + $0x24] sm:$0xf] %vm534, %v511
    %545 = vst.msk [vmem:[%s2 + $0x28] sm:$0xf] %vm534, %v512
    %546 = vst.msk [vmem:[%s2 + $0x2c] sm:$0xf] %vm534, %v513
    %547 = vst.msk [vmem:[%s2 + $0x30] sm:$0xf] %vm534, %v514
    %548 = vst.msk [vmem:[%s2 + $0x34] sm:$0xf] %vm534, %v515
    %549 = vst.msk [vmem:[%s2 + $0x38] sm:$0xf] %vm534, %v516
    %550 = vst.msk [vmem:[%s2 + $0x3c] sm:$0xf] %vm534, %v517
  $region17: #{critic_forward.6} parent=0 // pred_fallthru
    _
  // Predicated region
  $region18: #{critic_forward.6} parent=0 // pred_check
    _
  $region19: #{critic_forward.6} parent=0 // pred_check_branch
    %552 = sbr.rel (0) target = $region21
  $region20: #{critic_forward.6} parent=0 // pred_region
    _
  $region21: #{critic_forward.6} parent=0 // pred_fallthru
    _
  // Predicated region
  $region22: #{critic_forward.6} parent=0 // pred_check
    _
  $region23: #{critic_forward.6} parent=0 // pred_check_branch
    %554 = sbr.rel (0) target = $region25
  $region24: #{critic_forward.6} parent=0 // pred_region
    _
  $region25: #{critic_forward.6} parent=0 // pred_fallthru
    _

// kernel: critic_forward.7
$region0: #{critic_forward.7}
  #allocation0 [shape = 'u32[]', space=smem, size = 0x4, offset = 0x4, fixed_abs, tag = 'smem constant byte address 0x4 - core index']
  #allocation1 [shape = 'u32[144,128]{1,0:T(1,128)}', space=vmem, size = 0x12000, scoped, tag = 'internal scratch']
  #allocation2 [shape = 'f32[32,64]{1,0:T(8,128)}', space=vmem, size = 0x4000, scoped, tag = 'scratch operand']
  %s0 = inlined_call_operand.vmem [shape: bf16[32,512], index: 0, kind: input, shape index: {}]
  %s1 = inlined_call_operand.vmem [shape: bf16[512,64], index: 1, kind: input, shape index: {}]
  %s2 = inlined_call_operand.vmem [shape: f32[32,64], index: 2, kind: input, shape index: {}]
  %s3 = inlined_call_operand.vmem [shape: f32[8,32], index: 3, kind: input, shape index: {}]
  %s4 = inlined_call_operand.vmem [shape: f32[8,1], index: 4, kind: output, shape index: {}]
  %s5 = sld [smem:[#allocation0]]
  $region34: #{critic_forward.7} parent=0
    _
  %s7 = ssub.s32 1, %s5
  %s8 = scalar_select 0, %s7, %s5
  // Predicated region
  $region2: #{critic_forward.7} parent=0 // pred_check
    _
  $region3: #{critic_forward.7} parent=0 // pred_check_branch
    %10 = sbr.rel (0) target = $region5
  $region4: #{critic_forward.7} parent=0 // pred_region
    _
  $region5: #{critic_forward.7} parent=0 // pred_fallthru
    _
  // Predicated region
  $region6: #{critic_forward.7} parent=0 // pred_check
    _
  $region7: #{critic_forward.7} parent=0 // pred_check_branch
    %12 = sbr.rel (0) target = $region9
  $region8: #{critic_forward.7} parent=0 // pred_region
    _
  $region9: #{critic_forward.7} parent=0 // pred_fallthru
    _
  // Predicated region
  $region10: #{critic_forward.7} parent=0 // pred_check
    _
  $region11: #{critic_forward.7} parent=0 // pred_check_branch
    %14 = sbr.rel (0) target = $region13
  $region12: #{critic_forward.7} parent=0 // pred_region
    _
  $region13: #{critic_forward.7} parent=0 // pred_fallthru
    _
  // Predicated region
  $region14: #{critic_forward.7} parent=0 // pred_check
    _
  $region15: #{critic_forward.7} parent=0 // pred_check_branch
    %16 = sbr.rel (0) target = $region17
  $region16: #{critic_forward.7} parent=0 // pred_region
    _
  $region17: #{critic_forward.7} parent=0 // pred_fallthru
    _
  %p18 = scmp.eq.s32.totalorder 0, 0
  // Predicated region
  $region18: #{critic_forward.7} parent=0 // pred_check
    %p19 = pneg %p18
  $region19: #{critic_forward.7} parent=0 // pred_check_branch
    %21 = sbr.rel (%p19) target = $region21
  $region20: #{critic_forward.7} parent=0 // pred_region
    %vm22 = vcmask 523264
    %23 = vst.msk [vmem:[#allocation2] sm:$0xff] %vm22, 0.0
    %24 = vst.msk [vmem:[#allocation2 + $0x8] sm:$0xff] %vm22, 0.0
    %25 = vst.msk [vmem:[#allocation2 + $0x10] sm:$0xff] %vm22, 0.0
    %26 = vst.msk [vmem:[#allocation2 + $0x18] sm:$0xff] %vm22, 0.0
  $region21: #{critic_forward.7} parent=0 // pred_fallthru
    _
  %v27 = vld [vmem:[#allocation2] sm:$0xff]
  %v28 = vld [vmem:[#allocation2 + $0x8] sm:$0xff]
  %v29 = vld [vmem:[#allocation2 + $0x10] sm:$0xff]
  %v30 = vld [vmem:[#allocation2 + $0x18] sm:$0xff]
  %v31 = vld [vmem:[%s0] sm:$0xff]
  %v32 = vld [vmem:[%s0 + $0x8] sm:$0xff]
  %v33 = vld [vmem:[%s0 + $0x10] sm:$0xff]
  %v34 = vld [vmem:[%s0 + $0x18] sm:$0xff]
  %v35 = vld [vmem:[%s0 + $0x20] sm:$0xff]
  %v36 = vld [vmem:[%s0 + $0x28] sm:$0xff]
  %v37 = vld [vmem:[%s0 + $0x30] sm:$0xff]
  %v38 = vld [vmem:[%s0 + $0x38] sm:$0xff]
  %v39 = vld [vmem:[%s1] sm:$0xf]
  %v40 = vld [vmem:[%s1 + $0x4] sm:$0xf]
  %v41 = vld [vmem:[%s1 + $0x8] sm:$0xf]
  %v42 = vld [vmem:[%s1 + $0xc] sm:$0xf]
  %v43 = vld [vmem:[%s1 + $0x10] sm:$0xf]
  %v44 = vld [vmem:[%s1 + $0x14] sm:$0xf]
  %v45 = vld [vmem:[%s1 + $0x18] sm:$0xf]
  %v46 = vld [vmem:[%s1 + $0x1c] sm:$0xf]
  %v47 = vld [vmem:[%s1 + $0x20] sm:$0xf]
  %v48 = vld [vmem:[%s1 + $0x24] sm:$0xf]
  %v49 = vld [vmem:[%s1 + $0x28] sm:$0xf]
  %v50 = vld [vmem:[%s1 + $0x2c] sm:$0xf]
  %v51 = vld [vmem:[%s1 + $0x30] sm:$0xf]
  %v52 = vld [vmem:[%s1 + $0x34] sm:$0xf]
  %v53 = vld [vmem:[%s1 + $0x38] sm:$0xf]
  %v54 = vld [vmem:[%s1 + $0x3c] sm:$0xf]
  %v55 = vld [vmem:[%s1 + $0x40] sm:$0xf]
  %v56 = vld [vmem:[%s1 + $0x44] sm:$0xf]
  %v57 = vld [vmem:[%s1 + $0x48] sm:$0xf]
  %v58 = vld [vmem:[%s1 + $0x4c] sm:$0xf]
  %v59 = vld [vmem:[%s1 + $0x50] sm:$0xf]
  %v60 = vld [vmem:[%s1 + $0x54] sm:$0xf]
  %v61 = vld [vmem:[%s1 + $0x58] sm:$0xf]
  %v62 = vld [vmem:[%s1 + $0x5c] sm:$0xf]
  %v63 = vld [vmem:[%s1 + $0x60] sm:$0xf]
  %v64 = vld [vmem:[%s1 + $0x64] sm:$0xf]
  %v65 = vld [vmem:[%s1 + $0x68] sm:$0xf]
  %v66 = vld [vmem:[%s1 + $0x6c] sm:$0xf]
  %v67 = vld [vmem:[%s1 + $0x70] sm:$0xf]
  %v68 = vld [vmem:[%s1 + $0x74] sm:$0xf]
  %v69 = vld [vmem:[%s1 + $0x78] sm:$0xf]
  %v70 = vld [vmem:[%s1 + $0x7c] sm:$0xf]
  %v71 = vld [vmem:[%s1 + $0x80] sm:$0xf]
  %v72 = vld [vmem:[%s1 + $0x84] sm:$0xf]
  %v73 = vld [vmem:[%s1 + $0x88] sm:$0xf]
  %v74 = vld [vmem:[%s1 + $0x8c] sm:$0xf]
  %v75 = vld [vmem:[%s1 + $0x90] sm:$0xf]
  %v76 = vld [vmem:[%s1 + $0x94] sm:$0xf]
  %v77 = vld [vmem:[%s1 + $0x98] sm:$0xf]
  %v78 = vld [vmem:[%s1 + $0x9c] sm:$0xf]
  %v79 = vld [vmem:[%s1 + $0xa0] sm:$0xf]
  %v80 = vld [vmem:[%s1 + $0xa4] sm:$0xf]
  %v81 = vld [vmem:[%s1 + $0xa8] sm:$0xf]
  %v82 = vld [vmem:[%s1 + $0xac] sm:$0xf]
  %v83 = vld [vmem:[%s1 + $0xb0] sm:$0xf]
  %v84 = vld [vmem:[%s1 + $0xb4] sm:$0xf]
  %v85 = vld [vmem:[%s1 + $0xb8] sm:$0xf]
  %v86 = vld [vmem:[%s1 + $0xbc] sm:$0xf]
  %v87 = vld [vmem:[%s1 + $0xc0] sm:$0xf]
  %v88 = vld [vmem:[%s1 + $0xc4] sm:$0xf]
  %v89 = vld [vmem:[%s1 + $0xc8] sm:$0xf]
  %v90 = vld [vmem:[%s1 + $0xcc] sm:$0xf]
  %v91 = vld [vmem:[%s1 + $0xd0] sm:$0xf]
  %v92 = vld [vmem:[%s1 + $0xd4] sm:$0xf]
  %v93 = vld [vmem:[%s1 + $0xd8] sm:$0xf]
  %v94 = vld [vmem:[%s1 + $0xdc] sm:$0xf]
  %v95 = vld [vmem:[%s1 + $0xe0] sm:$0xf]
  %v96 = vld [vmem:[%s1 + $0xe4] sm:$0xf]
  %v97 = vld [vmem:[%s1 + $0xe8] sm:$0xf]
  %v98 = vld [vmem:[%s1 + $0xec] sm:$0xf]
  %v99 = vld [vmem:[%s1 + $0xf0] sm:$0xf]
  %v100 = vld [vmem:[%s1 + $0xf4] sm:$0xf]
  %v101 = vld [vmem:[%s1 + $0xf8] sm:$0xf]
  %v102 = vld [vmem:[%s1 + $0xfc] sm:$0xf]
  %v111 = vunpack.c.l.b16 %v31
  %v112 = vunpack.c.h.b16 %v31
  %v113 = vunpack.c.l.b16 %v32
  %v114 = vunpack.c.h.b16 %v32
  %v115 = vunpack.c.l.b16 %v33
  %v116 = vunpack.c.h.b16 %v33
  %v117 = vunpack.c.l.b16 %v34
  %v118 = vunpack.c.h.b16 %v34
  %v119 = vunpack.c.l.b16 %v35
  %v120 = vunpack.c.h.b16 %v35
  %v121 = vunpack.c.l.b16 %v36
  %v122 = vunpack.c.h.b16 %v36
  %v123 = vunpack.c.l.b16 %v37
  %v124 = vunpack.c.h.b16 %v37
  %v125 = vunpack.c.l.b16 %v38
  %v126 = vunpack.c.h.b16 %v38
  %v127 = vpack.c.b16 %v115, %v111
  %v128 = vpack.c.b16 %v116, %v112
  %v129 = vpack.c.b16 %v117, %v113
  %v130 = vpack.c.b16 %v118, %v114
  %v131 = vpack.c.b16 %v123, %v119
  %v132 = vpack.c.b16 %v124, %v120
  %v133 = vpack.c.b16 %v125, %v121
  %v134 = vpack.c.b16 %v126, %v122
  %v207 = vunpack.c.l.b16 %v39
  %v208 = vunpack.c.l.b16 %v40
  %v209 = vunpack.c.l.b16 %v41
  %v210 = vunpack.c.l.b16 %v42
  %v211 = vunpack.c.l.b16 %v43
  %v212 = vunpack.c.l.b16 %v44
  %v213 = vunpack.c.l.b16 %v45
  %v214 = vunpack.c.l.b16 %v46
  %v215 = vunpack.c.l.b16 %v47
  %v216 = vunpack.c.l.b16 %v48
  %v217 = vunpack.c.l.b16 %v49
  %v218 = vunpack.c.l.b16 %v50
  %v219 = vunpack.c.l.b16 %v51
  %v220 = vunpack.c.l.b16 %v52
  %v221 = vunpack.c.l.b16 %v53
  %v222 = vunpack.c.l.b16 %v54
  %v223 = vunpack.c.l.b16 %v55
  %v224 = vunpack.c.l.b16 %v56
  %v225 = vunpack.c.l.b16 %v57
  %v226 = vunpack.c.l.b16 %v58
  %v227 = vunpack.c.l.b16 %v59
  %v228 = vunpack.c.l.b16 %v60
  %v229 = vunpack.c.l.b16 %v61
  %v230 = vunpack.c.l.b16 %v62
  %v231 = vunpack.c.l.b16 %v63
  %v232 = vunpack.c.l.b16 %v64
  %v233 = vunpack.c.l.b16 %v65
  %v234 = vunpack.c.l.b16 %v66
  %v235 = vunpack.c.l.b16 %v67
  %v236 = vunpack.c.l.b16 %v68
  %v237 = vunpack.c.l.b16 %v69
  %v238 = vunpack.c.l.b16 %v70
  %v239 = vunpack.c.l.b16 %v71
  %v240 = vunpack.c.l.b16 %v72
  %v241 = vunpack.c.l.b16 %v73
  %v242 = vunpack.c.l.b16 %v74
  %v243 = vunpack.c.l.b16 %v75
  %v244 = vunpack.c.l.b16 %v76
  %v245 = vunpack.c.l.b16 %v77
  %v246 = vunpack.c.l.b16 %v78
  %v247 = vunpack.c.l.b16 %v79
  %v248 = vunpack.c.l.b16 %v80
  %v249 = vunpack.c.l.b16 %v81
  %v250 = vunpack.c.l.b16 %v82
  %v251 = vunpack.c.l.b16 %v83
  %v252 = vunpack.c.l.b16 %v84
  %v253 = vunpack.c.l.b16 %v85
  %v254 = vunpack.c.l.b16 %v86
  %v255 = vunpack.c.l.b16 %v87
  %v256 = vunpack.c.l.b16 %v88
  %v257 = vunpack.c.l.b16 %v89
  %v258 = vunpack.c.l.b16 %v90
  %v259 = vunpack.c.l.b16 %v91
  %v260 = vunpack.c.l.b16 %v92
  %v261 = vunpack.c.l.b16 %v93
  %v262 = vunpack.c.l.b16 %v94
  %v263 = vunpack.c.l.b16 %v95
  %v264 = vunpack.c.l.b16 %v96
  %v265 = vunpack.c.l.b16 %v97
  %v266 = vunpack.c.l.b16 %v98
  %v267 = vunpack.c.l.b16 %v99
  %v268 = vunpack.c.l.b16 %v100
  %v269 = vunpack.c.l.b16 %v101
  %v270 = vunpack.c.l.b16 %v102
  %v271 = vpack.c.b16 %v208, %v207
  %v272 = vpack.c.b16 %v210, %v209
  %v273 = vpack.c.b16 %v212, %v211
  %v274 = vpack.c.b16 %v214, %v213
  %v275 = vpack.c.b16 %v216, %v215
  %v276 = vpack.c.b16 %v218, %v217
  %v277 = vpack.c.b16 %v220, %v219
  %v278 = vpack.c.b16 %v222, %v221
  %v279 = vpack.c.b16 %v224, %v223
  %v280 = vpack.c.b16 %v226, %v225
  %v281 = vpack.c.b16 %v228, %v227
  %v282 = vpack.c.b16 %v230, %v229
  %v283 = vpack.c.b16 %v232, %v231
  %v284 = vpack.c.b16 %v234, %v233
  %v285 = vpack.c.b16 %v236, %v235
  %v286 = vpack.c.b16 %v238, %v237
  %v287 = vpack.c.b16 %v240, %v239
  %v288 = vpack.c.b16 %v242, %v241
  %v289 = vpack.c.b16 %v244, %v243
  %v290 = vpack.c.b16 %v246, %v245
  %v291 = vpack.c.b16 %v248, %v247
  %v292 = vpack.c.b16 %v250, %v249
  %v293 = vpack.c.b16 %v252, %v251
  %v294 = vpack.c.b16 %v254, %v253
  %v295 = vpack.c.b16 %v256, %v255
  %v296 = vpack.c.b16 %v258, %v257
  %v297 = vpack.c.b16 %v260, %v259
  %v298 = vpack.c.b16 %v262, %v261
  %v299 = vpack.c.b16 %v264, %v263
  %v300 = vpack.c.b16 %v266, %v265
  %v301 = vpack.c.b16 %v268, %v267
  %v302 = vpack.c.b16 %v270, %v269
  %335 = vmatprep.subr.bf16.mxu0 0
  %336 = vmatpush1.bf16.msra.mxu0 %v271
  %337 = vmatprep.subr.bf16.mxu0 0
  %338 = vmatpush1.bf16.msra.mxu0 %v272
  %339 = vmatprep.subr.bf16.mxu0 0
  %340 = vmatpush1.bf16.msra.mxu0 %v273
  %341 = vmatprep.subr.bf16.mxu0 0
  %342 = vmatpush1.bf16.msra.mxu0 %v274
  %343 = vmatprep.subr.bf16.mxu0 0
  %344 = vmatpush1.bf16.msra.mxu0 %v275
  %345 = vmatprep.subr.bf16.mxu0 0
  %346 = vmatpush1.bf16.msra.mxu0 %v276
  %347 = vmatprep.subr.bf16.mxu0 0
  %348 = vmatpush1.bf16.msra.mxu0 %v277
  %349 = vmatprep.subr.bf16.mxu0 0
  %350 = vmatpush1.bf16.msra.mxu0 %v278
  %351 = vmatprep.subr.bf16.mxu0 0
  %352 = vmatpush1.bf16.msra.mxu0 %v279
  %353 = vmatprep.subr.bf16.mxu0 0
  %354 = vmatpush1.bf16.msra.mxu0 %v280
  %355 = vmatprep.subr.bf16.mxu0 0
  %356 = vmatpush1.bf16.msra.mxu0 %v281
  %357 = vmatprep.subr.bf16.mxu0 0
  %358 = vmatpush1.bf16.msra.mxu0 %v282
  %359 = vmatprep.subr.bf16.mxu0 0
  %360 = vmatpush1.bf16.msra.mxu0 %v283
  %361 = vmatprep.subr.bf16.mxu0 0
  %362 = vmatpush1.bf16.msra.mxu0 %v284
  %363 = vmatprep.subr.bf16.mxu0 0
  %364 = vmatpush1.bf16.msra.mxu0 %v285
  %365 = vmatprep.subr.bf16.mxu0 0
  %366 = vmatpush1.bf16.msra.mxu0 %v286
  %367 = vmatprep.mubr.bf16.mxu0 %v128
  %368 = vmatmul.mubr.bf16.gmra.mrb[0].mxu0 %v127
  %v369 = vpop.f32.mrb[0].mxu0
  %v370 = vadd.f32 0.0, %v369
  %v371 = vpop.f32.mrb[0].mxu0
  %v372 = vpop.f32.mrb[0].mxu0
  %v373 = vadd.f32 0.0, %v372
  %v374 = vpop.f32.mrb[0].mxu0
  %375 = vmatprep.mubr.bf16.mxu0 %v132
  %376 = vmatmul.mubr.bf16.gmra.mrb[0].mxu0 %v131
  %v377 = vpop.f32.mrb[0].mxu0
  %v378 = vadd.f32 0.0, %v377
  %v379 = vpop.f32.mrb[0].mxu0
  %v380 = vpop.f32.mrb[0].mxu0
  %v381 = vadd.f32 0.0, %v380
  %v382 = vpop.f32.mrb[0].mxu0
  %383 = vdwg.mxu0
  %384 = vmatprep.subr.bf16.mxu0 0
  %385 = vmatpush1.bf16.msra.mxu0 %v287
  %386 = vmatprep.subr.bf16.mxu0 0
  %387 = vmatpush1.bf16.msra.mxu0 %v288
  %388 = vmatprep.subr.bf16.mxu0 0
  %389 = vmatpush1.bf16.msra.mxu0 %v289
  %390 = vmatprep.subr.bf16.mxu0 0
  %391 = vmatpush1.bf16.msra.mxu0 %v290
  %392 = vmatprep.subr.bf16.mxu0 0
  %393 = vmatpush1.bf16.msra.mxu0 %v291
  %394 = vmatprep.subr.bf16.mxu0 0
  %395 = vmatpush1.bf16.msra.mxu0 %v292
  %396 = vmatprep.subr.bf16.mxu0 0
  %397 = vmatpush1.bf16.msra.mxu0 %v293
  %398 = vmatprep.subr.bf16.mxu0 0
  %399 = vmatpush1.bf16.msra.mxu0 %v294
  %400 = vmatprep.subr.bf16.mxu0 0
  %401 = vmatpush1.bf16.msra.mxu0 %v295
  %402 = vmatprep.subr.bf16.mxu0 0
  %403 = vmatpush1.bf16.msra.mxu0 %v296
  %404 = vmatprep.subr.bf16.mxu0 0
  %405 = vmatpush1.bf16.msra.mxu0 %v297
  %406 = vmatprep.subr.bf16.mxu0 0
  %407 = vmatpush1.bf16.msra.mxu0 %v298
  %408 = vmatprep.subr.bf16.mxu0 0
  %409 = vmatpush1.bf16.msra.mxu0 %v299
  %410 = vmatprep.subr.bf16.mxu0 0
  %411 = vmatpush1.bf16.msra.mxu0 %v300
  %412 = vmatprep.subr.bf16.mxu0 0
  %413 = vmatpush1.bf16.msra.mxu0 %v301
  %414 = vmatprep.subr.bf16.mxu0 0
  %415 = vmatpush1.bf16.msra.mxu0 %v302
  %416 = vmatprep.mubr.bf16.mxu0 %v130
  %417 = vmatmul.mubr.bf16.gmra.mrb[0].mxu0 %v129
  %v418 = vpop.f32.mrb[0].mxu0
  %v419 = vadd.f32 %v370, %v418
  %v420 = vpop.f32.mrb[0].mxu0
  %v421 = vpop.f32.mrb[0].mxu0
  %v422 = vadd.f32 %v373, %v421
  %v423 = vpop.f32.mrb[0].mxu0
  %424 = vmatprep.mubr.bf16.mxu0 %v134
  %425 = vmatmul.mubr.bf16.gmra.mrb[0].mxu0 %v133
  %v426 = vpop.f32.mrb[0].mxu0
  %v427 = vadd.f32 %v378, %v426
  %v428 = vpop.f32.mrb[0].mxu0
  %v429 = vpop.f32.mrb[0].mxu0
  %v430 = vadd.f32 %v381, %v429
  %v431 = vpop.f32.mrb[0].mxu0
  %432 = vdwg.mxu0
  %v433 = vadd.f32 %v27, %v419
  %v434 = vadd.f32 %v28, %v422
  %v435 = vadd.f32 %v29, %v427
  %v436 = vadd.f32 %v30, %v430
  %vm437 = vcmask 523264
  %438 = vst.msk [vmem:[#allocation2] sm:$0xff] %vm437, %v433
  %439 = vst.msk [vmem:[#allocation2 + $0x8] sm:$0xff] %vm437, %v434
  %440 = vst.msk [vmem:[#allocation2 + $0x10] sm:$0xff] %vm437, %v435
  %441 = vst.msk [vmem:[#allocation2 + $0x18] sm:$0xff] %vm437, %v436
  // Predicated region
  $region22: #{critic_forward.7} parent=0 // pred_check
    %p442 = pneg %p18
  $region23: #{critic_forward.7} parent=0 // pred_check_branch
    %444 = sbr.rel (%p442) target = $region25
  $region24: #{critic_forward.7} parent=0 // pred_region
    %v445 = vld [vmem:[#allocation2] sm:$0xff]
    %v446 = vld [vmem:[#allocation2 + $0x8] sm:$0xff]
    %v447 = vld [vmem:[#allocation2 + $0x10] sm:$0xff]
    %v448 = vld [vmem:[#allocation2 + $0x18] sm:$0xff]
    %vm449 = vcmp.ge.f32.partialorder %v445, 0.0
    %vm450 = vcmp.ge.f32.partialorder %v446, 0.0
    %vm451 = vcmp.ge.f32.partialorder %v447, 0.0
    %vm452 = vcmp.ge.f32.partialorder %v448, 0.0
    %v453 = vmul.f32 %v445, 0.2
    %v454 = vmul.f32 %v446, 0.2
    %v455 = vmul.f32 %v447, 0.2
    %v456 = vmul.f32 %v448, 0.2
    %v457 = vsel %vm449, %v445, %v453
    %v458 = vsel %vm450, %v446, %v454
    %v459 = vsel %vm451, %v447, %v455
    %v460 = vsel %vm452, %v448, %v456
    %v461 = vld [vmem:[%s2] sm:$0xff]
    %v462 = vld [vmem:[%s2 + $0x8] sm:$0xff]
    %v463 = vld [vmem:[%s2 + $0x10] sm:$0xff]
    %v464 = vld [vmem:[%s2 + $0x18] sm:$0xff]
    %v465 = vmul.f32 %v457, %v461
    %v466 = vmul.f32 %v458, %v462
    %v467 = vmul.f32 %v459, %v463
    %v468 = vmul.f32 %v460, %v464
    %v469 = vld [vmem:[%s3] sm:$0xff]
    %vm470 = vcmask 261120
    %v472 = vsel %vm470, %v469, 0
    %474 = vmatprep.subr.mxu0 0.0
    %475 = vmatpush1.msra.mxu0 %v465
    %476 = vmatprep.subr.mxu0 0.0
    %477 = vmatpush1.msra.mxu0 %v466
    %478 = vmatprep.subr.mxu0 0.0
    %479 = vmatpush1.msra.mxu0 %v467
    %480 = vmatprep.subr.mxu0 0.0
    %481 = vmatpush1.msra.mxu0 %v468
    %482 = vmatprep.subr.mxu0 0.0
    %483 = vmatpush1.msra.mxu0 0.0
    %484 = vmatprep.subr.mxu0 0.0
    %485 = vmatpush1.msra.mxu0 0.0
    %486 = vmatprep.subr.mxu0 0.0
    %487 = vmatpush1.msra.mxu0 0.0
    %488 = vmatprep.subr.mxu0 0.0
    %489 = vmatpush1.msra.mxu0 0.0
    %490 = vmatprep.subr.mxu0 0.0
    %491 = vmatpush1.msra.mxu0 0.0
    %492 = vmatprep.subr.mxu0 0.0
    %493 = vmatpush1.msra.mxu0 0.0
    %494 = vmatprep.subr.mxu0 0.0
    %495 = vmatpush1.msra.mxu0 0.0
    %496 = vmatprep.subr.mxu0 0.0
    %497 = vmatpush1.msra.mxu0 0.0
    %498 = vmatprep.subr.mxu0 0.0
    %499 = vmatpush1.msra.mxu0 0.0
    %500 = vmatprep.subr.mxu0 0.0
    %501 = vmatpush1.msra.mxu0 0.0
    %502 = vmatprep.subr.mxu0 0.0
    %503 = vmatpush1.msra.mxu0 0.0
    %504 = vmatprep.subr.mxu0 0.0
    %505 = vmatpush1.msra.mxu0 0.0
    %506 = vmatprep.subr.mxu0 0.0
    %507 = vmatpush1.msra.mxu0 0.0
    %508 = vmatprep.subr.mxu0 0.0
    %509 = vmatpush1.msra.mxu0 0.0
    %510 = vmatprep.subr.mxu0 0.0
    %511 = vmatpush1.msra.mxu0 0.0
    %512 = vmatprep.subr.mxu0 0.0
    %513 = vmatpush1.msra.mxu0 0.0
    %514 = vmatprep.subr.mxu0 0.0
    %515 = vmatpush1.msra.mxu0 0.0
    %516 = vmatprep.subr.mxu0 0.0
    %517 = vmatpush1.msra.mxu0 0.0
    %518 = vmatprep.subr.mxu0 0.0
    %519 = vmatpush1.msra.mxu0 0.0
    %520 = vmatprep.subr.mxu0 0.0
    %521 = vmatpush1.msra.mxu0 0.0
    %522 = vmatprep.subr.mxu0 0.0
    %523 = vmatpush1.msra.mxu0 0.0
    %524 = vmatprep.subr.mxu0 0.0
    %525 = vmatpush1.msra.mxu0 0.0
    %526 = vmatprep.subr.mxu0 0.0
    %527 = vmatpush1.msra.mxu0 0.0
    %528 = vmatprep.subr.mxu0 0.0
    %529 = vmatpush1.msra.mxu0 0.0
    %530 = vmatprep.subr.mxu0 0.0
    %531 = vmatpush1.msra.mxu0 0.0
    %532 = vmatprep.subr.mxu0 0.0
    %533 = vmatpush1.msra.mxu0 0.0
    %534 = vmatprep.subr.mxu0 0.0
    %535 = vmatpush1.msra.mxu0 0.0
    %536 = vmatprep.subr.mxu0 0.0
    %537 = vmatpush1.msra.mxu0 0.0
    %538 = vmatprep.mubr.f32.mxu0 0.0
    %539 = vmatmul.mubr.f32.gmra.mrb[0].mxu0 %v472
    %v540 = vpop.f32.mrb[0].mxu0
    %v541 = vadd.f32 0.0, %v540
    %v542 = vpop.f32.mrb[0].mxu0
    %543 = vdwg.mxu0
    %v544 = vsel %vm437, %v541, 0.0
    %545 = vadd.xlane.f32.xlu0 %v544
    %v546 = vpop.xlane.xlu0 %545
    %vm547 = vcmask 7168
    %548 = vst.msk [vmem:[%s4] sm:$0xff] %vm547, %v546
  $region25: #{critic_forward.7} parent=0 // pred_fallthru
    _
  // Predicated region
  $region26: #{critic_forward.7} parent=0 // pred_check
    _
  $region27: #{critic_forward.7} parent=0 // pred_check_branch
    %550 = sbr.rel (0) target = $region29
  $region28: #{critic_forward.7} parent=0 // pred_region
    _
  $region29: #{critic_forward.7} parent=0 // pred_fallthru
    _
  // Predicated region
  $region30: #{critic_forward.7} parent=0 // pred_check
    _
  $region31: #{critic_forward.7} parent=0 // pred_check_branch
    %552 = sbr.rel (0) target = $region33
  $region32: #{critic_forward.7} parent=0 // pred_region
    _
  $region33: #{critic_forward.7} parent=0 // pred_fallthru
    _

</llo_original>
